<compile_context>
chip_gen: v7x
topology: tpu7x:2x2x1
jax: 0.10.0
libtpu: 0.0.40
codegen_flags: <defaults>
</compile_context>

<pallas_src>
import functools

import jax
import jax.numpy as jnp
from jax.experimental import pallas as pl
from jax.experimental.pallas import tpu as pltpu

LANE = 128  # pad channel dims to a multiple of this (256 also reasonable on v6e/v7x)


def _round_up(x, m):
    return (x + m - 1) // m * m


def _bottleneck_kernel(x_ref, w1_ref, b1_ref, w2_ref, b2_ref, w3_ref, b3_ref,
                       wsk_ref, bsk_ref, o_ref, pbuf, cbuf, *, H, W, KH, KW):
    """Fused bottleneck block, one image per grid step.

    x_ref  : (1, H*W, Cin4)        flattened NHWC input (spatially unpadded)
    w1_ref : (Cin4, Cm)            1x1 conv #1        (Cm = lane-padded mid channels)
    w2_ref : (KH*KW*Cm, Cm)        3x3 conv, im2col (tap-major) layout
    w3_ref : (Cm, Cp)              1x1 conv #2        (Cp = lane-padded out channels)
    wsk_ref: (Cin4, Cp)            1x1 skip conv (identity-extended if skip==Identity)
    b*_ref : (1, C)                biases, zero in padded channels
    o_ref  : (1, H*W, Cp)          lane-dense output block
    pbuf   : VMEM (H+2, W+2, Cm)   zero-halo scratch feeding the 3x3 conv
    cbuf   : VMEM (H*W, KH*KW*Cm)  im2col scratch
    """
    HW = H * W
    Cm = w1_ref.shape[1]

    # Zero the halo scratch once; per-step writes only touch the interior, so the
    # 1-pixel zero border is reused by every image.
    @pl.when(pl.program_id(0) == 0)
    def _init():
        pbuf[...] = jnp.zeros_like(pbuf)

    x = x_ref[0]                                   # (HW, Cin4)
    a0 = jnp.maximum(x, 0.0)                       # in-place ReLU: feeds main AND skip

    # --- 1x1 conv #1 + ReLU: one MXU contraction over Cin4 ---
    h1 = jnp.dot(a0, w1_ref[...], preferred_element_type=jnp.float32) + b1_ref[...]
    h1 = jnp.maximum(h1, 0.0)                      # (HW, Cm)

    # --- write interior of the zero-halo VMEM scratch (no HBM jnp.pad round trip) ---
    pbuf[pl.ds(1, H), pl.ds(1, W), :] = h1.reshape(H, W, Cm)

    # --- 3x3 conv as ONE fat contraction: im2col into VMEM, then a single dot ---
    for kh in range(KH):                           # static, unrolled 3x3 tap loop
        for kw in range(KW):
            j = kh * KW + kw
            patch = pbuf[pl.ds(kh, H), pl.ds(kw, W), :].reshape(HW, Cm)
            cbuf[:, pl.ds(j * Cm, Cm)] = patch     # lane-aligned: j*Cm is a 128 multiple
    h2 = jnp.dot(cbuf[...], w2_ref[...], preferred_element_type=jnp.float32) + b2_ref[...]
    h2 = jnp.maximum(h2, 0.0)                      # (HW, Cm)

    # --- 1x1 conv #2 + 1x1 skip conv, fused residual add; lane-dense store ---
    out = jnp.dot(h2, w3_ref[...], preferred_element_type=jnp.float32) + b3_ref[...]
    out = out + jnp.dot(a0, wsk_ref[...], preferred_element_type=jnp.float32) + bsk_ref[...]
    o_ref[0] = out.astype(o_ref.dtype)


def _prep_kernel_params(params):
    """PyTorch OIHW conv params -> lane-padded kernel layouts (channels last)."""
    w1, b1 = params["w1"], params["b1"]            # (Cm, Cin4, 1, 1), (Cm,)
    w2, b2 = params["w2"], params["b2"]            # (Cm, Cm, KH, KW), (Cm,)
    w3, b3 = params["w3"], params["b3"]            # (C4, Cm, 1, 1),  (C4,)
    cm, cin4 = w1.shape[0], w1.shape[1]
    c4 = w3.shape[0]
    kh, kw = w2.shape[2], w2.shape[3]

    cm_p = _round_up(cm, LANE)
    c4_p = _round_up(c4, LANE)

    if params.get("wsk") is None:                  # skip == nn.Identity() (in_ch == out_ch)
        wsk = jnp.eye(cin4, c4, dtype=w1.dtype)
        bsk = jnp.zeros((c4,), w1.dtype)
    else:
        wsk = params["wsk"][:, :, 0, 0].T          # (Cin4, C4)
        bsk = params["bsk"]

    def padc(a, n):                                # zero-pad last dim to n
        return jnp.pad(a, [(0, 0)] * (a.ndim - 1) + [(0, n - a.shape[-1])])

    w1_k = padc(w1[:, :, 0, 0].T, cm_p)                                   # (Cin4, Cm_p)
    b1_k = padc(b1.reshape(1, cm), cm_p)
    w2_t = jnp.transpose(w2, (2, 3, 1, 0))                                # (KH,KW,Cin,Cout)
    w2_t = jnp.pad(w2_t, ((0, 0), (0, 0), (0, cm_p - cm), (0, cm_p - cm)))
    w2_k = w2_t.reshape(kh * kw * cm_p, cm_p)                             # tap-major rows
    b2_k = padc(b2.reshape(1, cm), cm_p)
    w3_k = jnp.pad(w3[:, :, 0, 0].T, ((0, cm_p - cm), (0, c4_p - c4)))    # (Cm_p, C4_p)
    b3_k = padc(b3.reshape(1, c4), c4_p)
    wsk_k = padc(wsk, c4_p)                                               # (Cin4, C4_p)
    bsk_k = padc(bsk.reshape(1, c4), c4_p)
    return (w1_k, b1_k, w2_k, b2_k, w3_k, b3_k, wsk_k, bsk_k), (kh, kw, c4, c4_p, cm_p)


def bottleneck_forward_nhwc(x_nhwc, params):
    """Fused BottleneckBlock forward, NHWC in/out (preferred end-to-end layout)."""
    N, H, W, Cin4 = x_nhwc.shape
    (w1, b1, w2, b2, w3, b3, wsk, bsk), (KH, KW, C4, C4p, Cmp) = _prep_kernel_params(params)
    HW = H * W
    x2 = x_nhwc.reshape(N, HW, Cin4)               # contiguous; no relayout

    kernel = functools.partial(_bottleneck_kernel, H=H, W=W, KH=KH, KW=KW)

    flops = 2 * N * HW * (Cin4 * Cmp + KH * KW * Cmp * Cmp + Cmp * C4p + Cin4 * C4p)
    bytes_accessed = 4 * (x2.size + N * HW * C4p
                          + w1.size + w2.size + w3.size + wsk.size)
    cost = pl.CostEstimate(flops=flops, transcendentals=0, bytes_accessed=bytes_accessed)

    out = pl.pallas_call(
        kernel,
        out_shape=jax.ShapeDtypeStruct((N, HW, C4p), x_nhwc.dtype),
        grid_spec=pltpu.PrefetchScalarGridSpec(
            num_scalar_prefetch=0,
            grid=(N,),
            in_specs=[
                pl.BlockSpec((1, HW, Cin4), lambda n: (n, 0, 0)),
                pl.BlockSpec(w1.shape, lambda n: (0, 0)),
                pl.BlockSpec(b1.shape, lambda n: (0, 0)),
                pl.BlockSpec(w2.shape, lambda n: (0, 0)),
                pl.BlockSpec(b2.shape, lambda n: (0, 0)),
                pl.BlockSpec(w3.shape, lambda n: (0, 0)),
                pl.BlockSpec(b3.shape, lambda n: (0, 0)),
                pl.BlockSpec(wsk.shape, lambda n: (0, 0)),
                pl.BlockSpec(bsk.shape, lambda n: (0, 0)),
            ],
            out_specs=pl.BlockSpec((1, HW, C4p), lambda n: (n, 0, 0)),
            scratch_shapes=[
                pltpu.VMEM((H + KH - 1, W + KW - 1, Cmp), jnp.float32),   # halo scratch
                pltpu.VMEM((HW, KH * KW * Cmp), jnp.float32),             # im2col scratch
            ],
        ),
        compiler_params=pltpu.CompilerParams(dimension_semantics=("parallel",)),
        cost_estimate=cost,
    )(x2, w1, b1, w2, b2, w3, b3, wsk, bsk)

    return out[:, :, :C4].reshape(N, H, W, C4)     # drop lane padding


def bottleneck_forward_nchw(x_nchw, params):
    """PyTorch-layout entry point: one NCHW<->NHWC transpose pair around the fused
    kernel (use bottleneck_forward_nhwc directly to avoid them entirely)."""
    x_nhwc = jnp.transpose(x_nchw, (0, 2, 3, 1))
    y = bottleneck_forward_nhwc(x_nhwc, params)
    return jnp.transpose(y, (0, 3, 1, 2))


def _init_params(key, in_channels, out_channels, expansion=4, k=3):
    """Deterministic nn.Conv2d-style (kaiming-uniform-like) init, PyTorch OIHW layouts."""
    cin4 = in_channels * expansion
    cm = out_channels
    c4 = out_channels * expansion
    ks = jax.random.split(key, 8)

    def conv_init(kw_key, kb_key, cout, cin, kh, kw):
        fan_in = cin * kh * kw
        bound = 1.0 / (fan_in ** 0.5)
        w = jax.random.uniform(kw_key, (cout, cin, kh, kw), jnp.float32, -bound, bound)
        b = jax.random.uniform(kb_key, (cout,), jnp.float32, -bound, bound)
        return w, b

    w1, b1 = conv_init(ks[0], ks[1], cm, cin4, 1, 1)
    w2, b2 = conv_init(ks[2], ks[3], cm, cm, k, k)
    w3, b3 = conv_init(ks[4], ks[5], c4, cm, 1, 1)
    p = dict(w1=w1, b1=b1, w2=w2, b2=b2, w3=w3, b3=b3)
    if in_channels != out_channels:
        wsk, bsk = conv_init(ks[6], ks[7], c4, cin4, 1, 1)
        p.update(wsk=wsk, bsk=bsk)
    else:
        p.update(wsk=None, bsk=None)
    return p


def _reference_nchw(x, p):
    """Pure-JAX (lax conv) reference of the PyTorch forward, including the in-place-ReLU
    semantics: nn.ReLU(inplace=True) inside `main` mutates x before self.skip(x) runs."""
    def conv(v, w, b, pad):
        y = jax.lax.conv_general_dilated(
            v, w, window_strides=(1, 1), padding=((pad, pad), (pad, pad)),
            dimension_numbers=("NCHW", "OIHW", "NCHW"))
        return y + b.reshape(1, -1, 1, 1)

    a0 = jnp.maximum(x, 0.0)
    h = jnp.maximum(conv(a0, p["w1"], p["b1"], 0), 0.0)
    h = jnp.maximum(conv(h, p["w2"], p["b2"], 1), 0.0)
    h = conv(h, p["w3"], p["b3"], 0)
    s = a0 if p.get("wsk") is None else conv(a0, p["wsk"], p["bsk"], 0)
    return h + s


if __name__ == "__main__":
    in_channels, out_channels, expansion = 4, 8, 4
    N, H, W = 2, 16, 16
    cin4 = in_channels * expansion                 # block input channels = 16

    key = jax.random.PRNGKey(0)
    kx, kp = jax.random.split(key)
    x = jax.random.normal(kx, (N, cin4, H, W), dtype=jnp.float32)
    params = _init_params(kp, in_channels, out_channels, expansion)

    out = bottleneck_forward_nchw(x, params)
    out = jax.block_until_ready(out)

    ref = _reference_nchw(x, params)
    assert out.shape == (N, out_channels * expansion, H, W)
    assert jnp.allclose(out, ref, atol=1e-4, rtol=1e-4), "mismatch vs reference"

    print("KERNEL_OK")
</pallas_src>

<mosaic_0001>
module attributes {stable_mosaic.version = 11 : i64} {
  func.func @_bottleneck_kernel(%arg0: i32, %arg1: memref<1x256x16xf32, #tpu.memory_space<vmem>>, %arg2: memref<16x128xf32, #tpu.memory_space<vmem>>, %arg3: memref<1x128xf32, #tpu.memory_space<vmem>>, %arg4: memref<1152x128xf32, #tpu.memory_space<vmem>>, %arg5: memref<1x128xf32, #tpu.memory_space<vmem>>, %arg6: memref<128x128xf32, #tpu.memory_space<vmem>>, %arg7: memref<1x128xf32, #tpu.memory_space<vmem>>, %arg8: memref<16x128xf32, #tpu.memory_space<vmem>>, %arg9: memref<1x128xf32, #tpu.memory_space<vmem>>, %arg10: memref<1x256x128xf32, #tpu.memory_space<vmem>>, %arg11: memref<18x18x128xf32, #tpu.memory_space<vmem>>, %arg12: memref<256x1152xf32, #tpu.memory_space<vmem>>) attributes {dimension_semantics = [#tpu.dimension_semantics<parallel>], iteration_bounds = array<i64: 2>, scalar_prefetch = 0 : i64, scratch_operands = 2 : i64, tpu.core_type = #tpu.core_type<tc>, window_params = [{transform_indices = @transform_0, window_bounds = array<i64: 1, 256, 16>}, {pipeline_mode = #tpu.pipeline_mode<synchronous>, transform_indices = @transform_1, window_bounds = array<i64: 16, 128>}, {pipeline_mode = #tpu.pipeline_mode<synchronous>, transform_indices = @transform_2, window_bounds = array<i64: 1, 128>}, {pipeline_mode = #tpu.pipeline_mode<synchronous>, transform_indices = @transform_3, window_bounds = array<i64: 1152, 128>}, {pipeline_mode = #tpu.pipeline_mode<synchronous>, transform_indices = @transform_4, window_bounds = array<i64: 1, 128>}, {pipeline_mode = #tpu.pipeline_mode<synchronous>, transform_indices = @transform_5, window_bounds = array<i64: 128, 128>}, {pipeline_mode = #tpu.pipeline_mode<synchronous>, transform_indices = @transform_6, window_bounds = array<i64: 1, 128>}, {pipeline_mode = #tpu.pipeline_mode<synchronous>, transform_indices = @transform_7, window_bounds = array<i64: 16, 128>}, {pipeline_mode = #tpu.pipeline_mode<synchronous>, transform_indices = @transform_8, window_bounds = array<i64: 1, 128>}, {transform_indices = @transform_9, window_bounds = array<i64: 1, 256, 128>}]} {
    %c0_i32 = arith.constant 0 : i32
    %0 = arith.cmpi eq, %arg0, %c0_i32 : i32
    %1 = arith.extui %0 : i1 to i32
    %c0_i32_0 = arith.constant 0 : i32
    %2 = arith.cmpi ne, %1, %c0_i32_0 : i32
    scf.if %2 {
      %cst_68 = arith.constant 0.000000e+00 : f32
      %65 = vector.broadcast %cst_68 : f32 to vector<18x18x128xf32>
      %c0_69 = arith.constant 0 : index
      %c0_70 = arith.constant 0 : index
      %c0_71 = arith.constant 0 : index
      %66 = vector.load %arg11[%c0_69, %c0_70, %c0_71] : memref<18x18x128xf32, #tpu.memory_space<vmem>>, vector<18x18x128xf32>
      tpu.vector_store %arg11[%c0_69, %c0_70, %c0_71], %65 {strides = array<i32>} : memref<18x18x128xf32, #tpu.memory_space<vmem>>, vector<18x18x128xf32>,
    } else {
    }
    %c0 = arith.constant 0 : index
    %c0_1 = arith.constant 0 : index
    %c0_2 = arith.constant 0 : index
    %3 = vector.load %arg1[%c0, %c0_1, %c0_2] : memref<1x256x16xf32, #tpu.memory_space<vmem>>, vector<1x256x16xf32>
    %4 = vector.shape_cast %3 : vector<1x256x16xf32> to vector<256x16xf32>
    %cst = arith.constant 0.000000e+00 : f32
    %5 = vector.broadcast %cst : f32 to vector<256x16xf32>
    %6 = arith.maximumf %4, %5 : vector<256x16xf32>
    %c0_3 = arith.constant 0 : index
    %c0_4 = arith.constant 0 : index
    %7 = vector.load %arg2[%c0_3, %c0_4] : memref<16x128xf32, #tpu.memory_space<vmem>>, vector<16x128xf32>
    %cst_5 = arith.constant dense<0.000000e+00> : vector<256x128xf32>
    %8 = tpu.matmul %6, %7, %cst_5 {dimension_numbers = #tpu.dot_dimension_numbers<[1], [0], [0], [1], [0, 0, 1, 1], [], []>} : vector<256x16xf32>, vector<16x128xf32>, vector<256x128xf32> -> vector<256x128xf32>
    %c0_6 = arith.constant 0 : index
    %c0_7 = arith.constant 0 : index
    %9 = vector.load %arg3[%c0_6, %c0_7] : memref<1x128xf32, #tpu.memory_space<vmem>>, vector<1x128xf32>
    %10 = vector.broadcast %9 : vector<1x128xf32> to vector<256x128xf32>
    %11 = arith.addf %8, %10 : vector<256x128xf32>
    %cst_8 = arith.constant 0.000000e+00 : f32
    %12 = vector.broadcast %cst_8 : f32 to vector<256x128xf32>
    %13 = arith.maximumf %11, %12 : vector<256x128xf32>
    %14 = vector.shape_cast %13 : vector<256x128xf32> to vector<16x16x128xf32>
    %c1 = arith.constant 1 : index
    %c1_9 = arith.constant 1 : index
    %c0_10 = arith.constant 0 : index
    %15 = vector.load %arg11[%c1, %c1_9, %c0_10] : memref<18x18x128xf32, #tpu.memory_space<vmem>>, vector<16x16x128xf32>
    tpu.vector_store %arg11[%c1, %c1_9, %c0_10], %14 {strides = array<i32>} : memref<18x18x128xf32, #tpu.memory_space<vmem>>, vector<16x16x128xf32>,
    %c0_11 = arith.constant 0 : index
    %c0_12 = arith.constant 0 : index
    %c0_13 = arith.constant 0 : index
    %16 = vector.load %arg11[%c0_11, %c0_12, %c0_13] : memref<18x18x128xf32, #tpu.memory_space<vmem>>, vector<16x16x128xf32>
    %17 = vector.shape_cast %16 : vector<16x16x128xf32> to vector<256x128xf32>
    %c0_14 = arith.constant 0 : index
    %c0_15 = arith.constant 0 : index
    %18 = vector.load %arg12[%c0_14, %c0_15] : memref<256x1152xf32, #tpu.memory_space<vmem>>, vector<256x128xf32>
    tpu.vector_store %arg12[%c0_14, %c0_15], %17 {strides = array<i32>} : memref<256x1152xf32, #tpu.memory_space<vmem>>, vector<256x128xf32>,
    %c0_16 = arith.constant 0 : index
    %c1_17 = arith.constant 1 : index
    %c0_18 = arith.constant 0 : index
    %19 = vector.load %arg11[%c0_16, %c1_17, %c0_18] : memref<18x18x128xf32, #tpu.memory_space<vmem>>, vector<16x16x128xf32>
    %20 = vector.shape_cast %19 : vector<16x16x128xf32> to vector<256x128xf32>
    %c0_19 = arith.constant 0 : index
    %c128 = arith.constant 128 : index
    %21 = vector.load %arg12[%c0_19, %c128] : memref<256x1152xf32, #tpu.memory_space<vmem>>, vector<256x128xf32>
    tpu.vector_store %arg12[%c0_19, %c128], %20 {strides = array<i32>} : memref<256x1152xf32, #tpu.memory_space<vmem>>, vector<256x128xf32>,
    %c0_20 = arith.constant 0 : index
    %c2 = arith.constant 2 : index
    %c0_21 = arith.constant 0 : index
    %22 = vector.load %arg11[%c0_20, %c2, %c0_21] : memref<18x18x128xf32, #tpu.memory_space<vmem>>, vector<16x16x128xf32>
    %23 = vector.shape_cast %22 : vector<16x16x128xf32> to vector<256x128xf32>
    %c0_22 = arith.constant 0 : index
    %c256 = arith.constant 256 : index
    %24 = vector.load %arg12[%c0_22, %c256] : memref<256x1152xf32, #tpu.memory_space<vmem>>, vector<256x128xf32>
    tpu.vector_store %arg12[%c0_22, %c256], %23 {strides = array<i32>} : memref<256x1152xf32, #tpu.memory_space<vmem>>, vector<256x128xf32>,
    %c1_23 = arith.constant 1 : index
    %c0_24 = arith.constant 0 : index
    %c0_25 = arith.constant 0 : index
    %25 = vector.load %arg11[%c1_23, %c0_24, %c0_25] : memref<18x18x128xf32, #tpu.memory_space<vmem>>, vector<16x16x128xf32>
    %26 = vector.shape_cast %25 : vector<16x16x128xf32> to vector<256x128xf32>
    %c0_26 = arith.constant 0 : index
    %c384 = arith.constant 384 : index
    %27 = vector.load %arg12[%c0_26, %c384] : memref<256x1152xf32, #tpu.memory_space<vmem>>, vector<256x128xf32>
    tpu.vector_store %arg12[%c0_26, %c384], %26 {strides = array<i32>} : memref<256x1152xf32, #tpu.memory_space<vmem>>, vector<256x128xf32>,
    %c1_27 = arith.constant 1 : index
    %c1_28 = arith.constant 1 : index
    %c0_29 = arith.constant 0 : index
    %28 = vector.load %arg11[%c1_27, %c1_28, %c0_29] : memref<18x18x128xf32, #tpu.memory_space<vmem>>, vector<16x16x128xf32>
    %29 = vector.shape_cast %28 : vector<16x16x128xf32> to vector<256x128xf32>
    %c0_30 = arith.constant 0 : index
    %c512 = arith.constant 512 : index
    %30 = vector.load %arg12[%c0_30, %c512] : memref<256x1152xf32, #tpu.memory_space<vmem>>, vector<256x128xf32>
    tpu.vector_store %arg12[%c0_30, %c512], %29 {strides = array<i32>} : memref<256x1152xf32, #tpu.memory_space<vmem>>, vector<256x128xf32>,
    %c1_31 = arith.constant 1 : index
    %c2_32 = arith.constant 2 : index
    %c0_33 = arith.constant 0 : index
    %31 = vector.load %arg11[%c1_31, %c2_32, %c0_33] : memref<18x18x128xf32, #tpu.memory_space<vmem>>, vector<16x16x128xf32>
    %32 = vector.shape_cast %31 : vector<16x16x128xf32> to vector<256x128xf32>
    %c0_34 = arith.constant 0 : index
    %c640 = arith.constant 640 : index
    %33 = vector.load %arg12[%c0_34, %c640] : memref<256x1152xf32, #tpu.memory_space<vmem>>, vector<256x128xf32>
    tpu.vector_store %arg12[%c0_34, %c640], %32 {strides = array<i32>} : memref<256x1152xf32, #tpu.memory_space<vmem>>, vector<256x128xf32>,
    %c2_35 = arith.constant 2 : index
    %c0_36 = arith.constant 0 : index
    %c0_37 = arith.constant 0 : index
    %34 = vector.load %arg11[%c2_35, %c0_36, %c0_37] : memref<18x18x128xf32, #tpu.memory_space<vmem>>, vector<16x16x128xf32>
    %35 = vector.shape_cast %34 : vector<16x16x128xf32> to vector<256x128xf32>
    %c0_38 = arith.constant 0 : index
    %c768 = arith.constant 768 : index
    %36 = vector.load %arg12[%c0_38, %c768] : memref<256x1152xf32, #tpu.memory_space<vmem>>, vector<256x128xf32>
    tpu.vector_store %arg12[%c0_38, %c768], %35 {strides = array<i32>} : memref<256x1152xf32, #tpu.memory_space<vmem>>, vector<256x128xf32>,
    %c2_39 = arith.constant 2 : index
    %c1_40 = arith.constant 1 : index
    %c0_41 = arith.constant 0 : index
    %37 = vector.load %arg11[%c2_39, %c1_40, %c0_41] : memref<18x18x128xf32, #tpu.memory_space<vmem>>, vector<16x16x128xf32>
    %38 = vector.shape_cast %37 : vector<16x16x128xf32> to vector<256x128xf32>
    %c0_42 = arith.constant 0 : index
    %c896 = arith.constant 896 : index
    %39 = vector.load %arg12[%c0_42, %c896] : memref<256x1152xf32, #tpu.memory_space<vmem>>, vector<256x128xf32>
    tpu.vector_store %arg12[%c0_42, %c896], %38 {strides = array<i32>} : memref<256x1152xf32, #tpu.memory_space<vmem>>, vector<256x128xf32>,
    %c2_43 = arith.constant 2 : index
    %c2_44 = arith.constant 2 : index
    %c0_45 = arith.constant 0 : index
    %40 = vector.load %arg11[%c2_43, %c2_44, %c0_45] : memref<18x18x128xf32, #tpu.memory_space<vmem>>, vector<16x16x128xf32>
    %41 = vector.shape_cast %40 : vector<16x16x128xf32> to vector<256x128xf32>
    %c0_46 = arith.constant 0 : index
    %c1024 = arith.constant 1024 : index
    %42 = vector.load %arg12[%c0_46, %c1024] : memref<256x1152xf32, #tpu.memory_space<vmem>>, vector<256x128xf32>
    tpu.vector_store %arg12[%c0_46, %c1024], %41 {strides = array<i32>} : memref<256x1152xf32, #tpu.memory_space<vmem>>, vector<256x128xf32>,
    %c0_47 = arith.constant 0 : index
    %c0_48 = arith.constant 0 : index
    %43 = vector.load %arg12[%c0_47, %c0_48] : memref<256x1152xf32, #tpu.memory_space<vmem>>, vector<256x1152xf32>
    %c0_49 = arith.constant 0 : index
    %c0_50 = arith.constant 0 : index
    %44 = vector.load %arg4[%c0_49, %c0_50] : memref<1152x128xf32, #tpu.memory_space<vmem>>, vector<1152x128xf32>
    %cst_51 = arith.constant dense<0.000000e+00> : vector<256x128xf32>
    %45 = tpu.matmul %43, %44, %cst_51 {dimension_numbers = #tpu.dot_dimension_numbers<[1], [0], [0], [1], [0, 0, 1, 1], [], []>} : vector<256x1152xf32>, vector<1152x128xf32>, vector<256x128xf32> -> vector<256x128xf32>
    %c0_52 = arith.constant 0 : index
    %c0_53 = arith.constant 0 : index
    %46 = vector.load %arg5[%c0_52, %c0_53] : memref<1x128xf32, #tpu.memory_space<vmem>>, vector<1x128xf32>
    %47 = vector.broadcast %46 : vector<1x128xf32> to vector<256x128xf32>
    %48 = arith.addf %45, %47 : vector<256x128xf32>
    %cst_54 = arith.constant 0.000000e+00 : f32
    %49 = vector.broadcast %cst_54 : f32 to vector<256x128xf32>
    %50 = arith.maximumf %48, %49 : vector<256x128xf32>
    %c0_55 = arith.constant 0 : index
    %c0_56 = arith.constant 0 : index
    %51 = vector.load %arg6[%c0_55, %c0_56] : memref<128x128xf32, #tpu.memory_space<vmem>>, vector<128x128xf32>
    %cst_57 = arith.constant dense<0.000000e+00> : vector<256x128xf32>
    %52 = tpu.matmul %50, %51, %cst_57 {dimension_numbers = #tpu.dot_dimension_numbers<[1], [0], [0], [1], [0, 0, 1, 1], [], []>} : vector<256x128xf32>, vector<128x128xf32>, vector<256x128xf32> -> vector<256x128xf32>
    %c0_58 = arith.constant 0 : index
    %c0_59 = arith.constant 0 : index
    %53 = vector.load %arg7[%c0_58, %c0_59] : memref<1x128xf32, #tpu.memory_space<vmem>>, vector<1x128xf32>
    %54 = vector.broadcast %53 : vector<1x128xf32> to vector<256x128xf32>
    %55 = arith.addf %52, %54 : vector<256x128xf32>
    %c0_60 = arith.constant 0 : index
    %c0_61 = arith.constant 0 : index
    %56 = vector.load %arg8[%c0_60, %c0_61] : memref<16x128xf32, #tpu.memory_space<vmem>>, vector<16x128xf32>
    %cst_62 = arith.constant dense<0.000000e+00> : vector<256x128xf32>
    %57 = tpu.matmul %6, %56, %cst_62 {dimension_numbers = #tpu.dot_dimension_numbers<[1], [0], [0], [1], [0, 0, 1, 1], [], []>} : vector<256x16xf32>, vector<16x128xf32>, vector<256x128xf32> -> vector<256x128xf32>
    %58 = arith.addf %55, %57 : vector<256x128xf32>
    %c0_63 = arith.constant 0 : index
    %c0_64 = arith.constant 0 : index
    %59 = vector.load %arg9[%c0_63, %c0_64] : memref<1x128xf32, #tpu.memory_space<vmem>>, vector<1x128xf32>
    %60 = vector.broadcast %59 : vector<1x128xf32> to vector<256x128xf32>
    %61 = arith.addf %58, %60 : vector<256x128xf32>
    %c0_65 = arith.constant 0 : index
    %c0_66 = arith.constant 0 : index
    %c0_67 = arith.constant 0 : index
    %62 = vector.load %arg10[%c0_65, %c0_66, %c0_67] : memref<1x256x128xf32, #tpu.memory_space<vmem>>, vector<1x256x128xf32>
    %63 = vector.shape_cast %62 : vector<1x256x128xf32> to vector<256x128xf32>
    %64 = vector.shape_cast %61 : vector<256x128xf32> to vector<1x256x128xf32>
    tpu.vector_store %arg10[%c0_65, %c0_66, %c0_67], %64 {strides = array<i32>} : memref<1x256x128xf32, #tpu.memory_space<vmem>>, vector<1x256x128xf32>,
    return
  }
  func.func @transform_0(%arg0: i32) -> (i32, i32, i32) {
    %c0_i32 = arith.constant 0 : i32
    %c0_i32_0 = arith.constant 0 : i32
    %c0_i32_1 = arith.constant 0 : i32
    return %arg0, %c0_i32, %c0_i32_0 : i32, i32, i32
  }
  func.func @transform_1(%arg0: i32) -> (i32, i32) {
    %c0_i32 = arith.constant 0 : i32
    %c0_i32_0 = arith.constant 0 : i32
    %c0_i32_1 = arith.constant 0 : i32
    return %c0_i32, %c0_i32_0 : i32, i32
  }
  func.func @transform_2(%arg0: i32) -> (i32, i32) {
    %c0_i32 = arith.constant 0 : i32
    %c0_i32_0 = arith.constant 0 : i32
    %c0_i32_1 = arith.constant 0 : i32
    return %c0_i32, %c0_i32_0 : i32, i32
  }
  func.func @transform_3(%arg0: i32) -> (i32, i32) {
    %c0_i32 = arith.constant 0 : i32
    %c0_i32_0 = arith.constant 0 : i32
    %c0_i32_1 = arith.constant 0 : i32
    return %c0_i32, %c0_i32_0 : i32, i32
  }
  func.func @transform_4(%arg0: i32) -> (i32, i32) {
    %c0_i32 = arith.constant 0 : i32
    %c0_i32_0 = arith.constant 0 : i32
    %c0_i32_1 = arith.constant 0 : i32
    return %c0_i32, %c0_i32_0 : i32, i32
  }
  func.func @transform_5(%arg0: i32) -> (i32, i32) {
    %c0_i32 = arith.constant 0 : i32
    %c0_i32_0 = arith.constant 0 : i32
    %c0_i32_1 = arith.constant 0 : i32
    return %c0_i32, %c0_i32_0 : i32, i32
  }
  func.func @transform_6(%arg0: i32) -> (i32, i32) {
    %c0_i32 = arith.constant 0 : i32
    %c0_i32_0 = arith.constant 0 : i32
    %c0_i32_1 = arith.constant 0 : i32
    return %c0_i32, %c0_i32_0 : i32, i32
  }
  func.func @transform_7(%arg0: i32) -> (i32, i32) {
    %c0_i32 = arith.constant 0 : i32
    %c0_i32_0 = arith.constant 0 : i32
    %c0_i32_1 = arith.constant 0 : i32
    return %c0_i32, %c0_i32_0 : i32, i32
  }
  func.func @transform_8(%arg0: i32) -> (i32, i32) {
    %c0_i32 = arith.constant 0 : i32
    %c0_i32_0 = arith.constant 0 : i32
    %c0_i32_1 = arith.constant 0 : i32
    return %c0_i32, %c0_i32_0 : i32, i32
  }
  func.func @transform_9(%arg0: i32) -> (i32, i32, i32) {
    %c0_i32 = arith.constant 0 : i32
    %c0_i32_0 = arith.constant 0 : i32
    %c0_i32_1 = arith.constant 0 : i32
    return %arg0, %c0_i32, %c0_i32_0 : i32, i32, i32
  }
}

</mosaic_0001>

<llo_original>
// kernel: tpu_custom_call.1
$region0: #{tpu_custom_call.1}
  #allocation0 [shape = 'u32[]', space=smem, size = 0x4, offset = 0x4, fixed_abs, tag = 'smem constant byte address 0x4 - core index']
  #allocation1 [shape = 'u32[144,128]{1,0:T(1,128)}', space=vmem, size = 0x12000, scoped, tag = 'internal scratch']
  #allocation2 [shape = 'f32[18,18,128]{2,1,0:T(8,128)}', space=vmem, size = 0x36000, scoped, tag = 'scratch operand']
  #allocation3 [shape = 'f32[256,1152]{1,0:T(8,128)}', space=vmem, size = 0x120000, scoped, tag = 'scratch operand']
  %s0 = inlined_call_operand.vmem [shape: f32[2,256,16], index: 0, kind: input, shape index: {}]
  %s1 = inlined_call_operand.vmem [shape: f32[16,128], index: 1, kind: input, shape index: {}]
  %s2 = inlined_call_operand.vmem [shape: f32[1,128], index: 2, kind: input, shape index: {}]
  %s3 = inlined_call_operand.hbm [shape: f32[1152,128], index: 3, kind: input, shape index: {}]
  %s4 = inlined_call_operand.vmem [shape: f32[1,128], index: 4, kind: input, shape index: {}]
  %s5 = inlined_call_operand.vmem [shape: f32[128,128], index: 5, kind: input, shape index: {}]
  %s6 = inlined_call_operand.vmem [shape: f32[1,128], index: 6, kind: input, shape index: {}]
  %s7 = inlined_call_operand.vmem [shape: f32[16,128], index: 7, kind: input, shape index: {}]
  %s8 = inlined_call_operand.vmem [shape: f32[1,128], index: 8, kind: input, shape index: {}]
  %s9 = inlined_call_operand.hbm [shape: f32[2,256,128], index: 9, kind: output, shape index: {}]
  %s10 = sld [smem:[#allocation0]]
  $region77: #{tpu_custom_call.1} parent=0
    _
  %s12 = ssub.s32 1, %s10
  %s13 = scalar_select 0, %s12, %s10
  $region1: #{tpu_custom_call.1} parent=0
    #allocation4 [shape = 'u8[589824]{0}', space=vmem, size = 0x90000, scoped, tag = 'input window, operand 3, single buffered']
    #allocation5 [shape = 's32[2]{0}', space=sflag, size = 0x8, scoped, tag = 'scoped memory for tpu_custom_call.1']
    #allocation6 [shape = 's32[2]{0}', space=sflag, size = 0x8, scoped, tag = 'scoped memory for tpu_custom_call.1']
    #allocation7 [shape = 'u8[262144]{0}', space=vmem, size = 0x40000, scoped, tag = 'output window, operand 0']
    %14 = vsyncpa [#allocation5], 0
    %15 = vsyncpa [#allocation6], 0
    %s16 = scalar_lea.sflag [#allocation6], 1
    %17 = vsyncpa %s16, 0
    loop: start=0, step=1, limit=4
    $region2: #{tpu_custom_call.1} parent=1 // loop_pre_header
      _
    $region3: #{tpu_custom_call.1} parent=1 // loop_header
      %s19 = sphi 0, %s23
      %p20 = scmp.ge.s32.totalorder %s19, 4
      %s29 = sphi 0, %s31
      %s32 = sphi 0, %s29
      %s33 = sphi 0, %s32
      %s49 = sphi 0, %s33
      %s53 = sphi 0, %s53
      %s55 = sphi 0, %s53
      %s56 = sphi 0, %s55
      %s70 = sphi 0, %s56
      %s74 = sphi 0, %s74
      %s76 = sphi 0, %s74
      %s77 = sphi 0, %s76
      %s91 = sphi 0, %s77
      %s95 = sphi 0, %s95
      %s97 = sphi 0, %s95
      %s98 = sphi 0, %s97
      %s112 = sphi 0, %s98
      %s116 = sphi 0, %s116
      %s118 = sphi 0, %s116
      %s119 = sphi 0, %s118
      %s133 = sphi 0, %s119
      %s137 = sphi 0, %s137
      %s139 = sphi 0, %s137
      %s140 = sphi 0, %s139
      %s154 = sphi 0, %s140
      %s158 = sphi 0, %s158
      %s160 = sphi 0, %s158
      %s161 = sphi 0, %s160
      %s175 = sphi 0, %s161
      %s179 = sphi 0, %s179
      %s181 = sphi 0, %s179
      %s182 = sphi 0, %s181
      %s196 = sphi 0, %s182
      %s200 = sphi 0, %s200
      %s202 = sphi 0, %s200
      %s203 = sphi 0, %s202
      %s217 = sphi 0, %s203
      %s223 = sphi 0, %s225
      %s226 = sphi 0, %s223
      %s227 = sphi 0, %s226
      %s243 = sphi 0, %s227
    $region4: #{tpu_custom_call.1} parent=1 // loop_header_branch
      %22 = sbr.rel (%p20) target = $region8
    $region5: #{tpu_custom_call.1} parent=1 // loop_body
      %s24 = ssub.s32 %s19, 1
      %s25 = ssub.s32 %s19, 2
      %s26 = sadd.s32 %s19, 1
      %s27 = ssub.s32 %s19, %s26
      %p28 = scmp.eq.s32.totalorder %s27, 0
      %s30 = sadd.s32 %s29, 1
      %s31 = scalar_select %p28, %s29, %s30
      %p34 = pneg %p28
      %p35 = scmp.eq.s32.totalorder %s19, 1
      %p36 = por %p34, %p35
      %p37 = scmp.ne.s32.totalorder %s29, %s32
      %p38 = scmp.eq.s32.totalorder %s19, 0
      %p39 = por %p37, %p38
      %p40 = scmp.ne.s32.totalorder %s29, %s32
      %p41 = scmp.eq.s32.totalorder %s24, 1
      %p42 = por %p40, %p41
      %p43 = scmp.ne.s32.totalorder %s32, %s33
      %p44 = scmp.eq.s32.totalorder %s24, 0
      %p45 = por %p43, %p44
      %p46 = scmp.ne.s32.totalorder %s32, %s33
      %p47 = scmp.eq.s32.totalorder %s25, 1
      %p48 = por %p46, %p47
      %p50 = scmp.ne.s32.totalorder %s33, %s49
      %p51 = scmp.eq.s32.totalorder %s25, 0
      %p52 = por %p50, %p51
      %s54 = sadd.s32 %s53, 1
      %p57 = scmp.eq.s32.totalorder %s19, 1
      %p58 = scmp.ne.s32.totalorder %s53, %s55
      %p59 = scmp.eq.s32.totalorder %s19, 0
      %p60 = por %p58, %p59
      %p61 = scmp.ne.s32.totalorder %s53, %s55
      %p62 = scmp.eq.s32.totalorder %s24, 1
      %p63 = por %p61, %p62
      %p64 = scmp.ne.s32.totalorder %s55, %s56
      %p65 = scmp.eq.s32.totalorder %s24, 0
      %p66 = por %p64, %p65
      %p67 = scmp.ne.s32.totalorder %s55, %s56
      %p68 = scmp.eq.s32.totalorder %s25, 1
      %p69 = por %p67, %p68
      %p71 = scmp.ne.s32.totalorder %s56, %s70
      %p72 = scmp.eq.s32.totalorder %s25, 0
      %p73 = por %p71, %p72
      %s75 = sadd.s32 %s74, 1
      %p78 = scmp.eq.s32.totalorder %s19, 1
      %p79 = scmp.ne.s32.totalorder %s74, %s76
      %p80 = scmp.eq.s32.totalorder %s19, 0
      %p81 = por %p79, %p80
      %p82 = scmp.ne.s32.totalorder %s74, %s76
      %p83 = scmp.eq.s32.totalorder %s24, 1
      %p84 = por %p82, %p83
      %p85 = scmp.ne.s32.totalorder %s76, %s77
      %p86 = scmp.eq.s32.totalorder %s24, 0
      %p87 = por %p85, %p86
      %p88 = scmp.ne.s32.totalorder %s76, %s77
      %p89 = scmp.eq.s32.totalorder %s25, 1
      %p90 = por %p88, %p89
      %p92 = scmp.ne.s32.totalorder %s77, %s91
      %p93 = scmp.eq.s32.totalorder %s25, 0
      %p94 = por %p92, %p93
      %s96 = sadd.s32 %s95, 1
      %p99 = scmp.eq.s32.totalorder %s19, 1
      %p100 = scmp.ne.s32.totalorder %s95, %s97
      %p101 = scmp.eq.s32.totalorder %s19, 0
      %p102 = por %p100, %p101
      %p103 = scmp.ne.s32.totalorder %s95, %s97
      %p104 = scmp.eq.s32.totalorder %s24, 1
      %p105 = por %p103, %p104
      %p106 = scmp.ne.s32.totalorder %s97, %s98
      %p107 = scmp.eq.s32.totalorder %s24, 0
      %p108 = por %p106, %p107
      %p109 = scmp.ne.s32.totalorder %s97, %s98
      %p110 = scmp.eq.s32.totalorder %s25, 1
      %p111 = por %p109, %p110
      %p113 = scmp.ne.s32.totalorder %s98, %s112
      %p114 = scmp.eq.s32.totalorder %s25, 0
      %p115 = por %p113, %p114
      %s117 = sadd.s32 %s116, 1
      %p120 = scmp.eq.s32.totalorder %s19, 1
      %p121 = scmp.ne.s32.totalorder %s116, %s118
      %p122 = scmp.eq.s32.totalorder %s19, 0
      %p123 = por %p121, %p122
      %p124 = scmp.ne.s32.totalorder %s116, %s118
      %p125 = scmp.eq.s32.totalorder %s24, 1
      %p126 = por %p124, %p125
      %p127 = scmp.ne.s32.totalorder %s118, %s119
      %p128 = scmp.eq.s32.totalorder %s24, 0
      %p129 = por %p127, %p128
      %p130 = scmp.ne.s32.totalorder %s118, %s119
      %p131 = scmp.eq.s32.totalorder %s25, 1
      %p132 = por %p130, %p131
      %p134 = scmp.ne.s32.totalorder %s119, %s133
      %p135 = scmp.eq.s32.totalorder %s25, 0
      %p136 = por %p134, %p135
      %s138 = sadd.s32 %s137, 1
      %p141 = scmp.eq.s32.totalorder %s19, 1
      %p142 = scmp.ne.s32.totalorder %s137, %s139
      %p143 = scmp.eq.s32.totalorder %s19, 0
      %p144 = por %p142, %p143
      %p145 = scmp.ne.s32.totalorder %s137, %s139
      %p146 = scmp.eq.s32.totalorder %s24, 1
      %p147 = por %p145, %p146
      %p148 = scmp.ne.s32.totalorder %s139, %s140
      %p149 = scmp.eq.s32.totalorder %s24, 0
      %p150 = por %p148, %p149
      %p151 = scmp.ne.s32.totalorder %s139, %s140
      %p152 = scmp.eq.s32.totalorder %s25, 1
      %p153 = por %p151, %p152
      %p155 = scmp.ne.s32.totalorder %s140, %s154
      %p156 = scmp.eq.s32.totalorder %s25, 0
      %p157 = por %p155, %p156
      %s159 = sadd.s32 %s158, 1
      %p162 = scmp.eq.s32.totalorder %s19, 1
      %p163 = scmp.ne.s32.totalorder %s158, %s160
      %p164 = scmp.eq.s32.totalorder %s19, 0
      %p165 = por %p163, %p164
      %p166 = scmp.ne.s32.totalorder %s158, %s160
      %p167 = scmp.eq.s32.totalorder %s24, 1
      %p168 = por %p166, %p167
      %p169 = scmp.ne.s32.totalorder %s160, %s161
      %p170 = scmp.eq.s32.totalorder %s24, 0
      %p171 = por %p169, %p170
      %p172 = scmp.ne.s32.totalorder %s160, %s161
      %p173 = scmp.eq.s32.totalorder %s25, 1
      %p174 = por %p172, %p173
      %p176 = scmp.ne.s32.totalorder %s161, %s175
      %p177 = scmp.eq.s32.totalorder %s25, 0
      %p178 = por %p176, %p177
      %s180 = sadd.s32 %s179, 1
      %p183 = scmp.eq.s32.totalorder %s19, 1
      %p184 = scmp.ne.s32.totalorder %s179, %s181
      %p185 = scmp.eq.s32.totalorder %s19, 0
      %p186 = por %p184, %p185
      %p187 = scmp.ne.s32.totalorder %s179, %s181
      %p188 = scmp.eq.s32.totalorder %s24, 1
      %p189 = por %p187, %p188
      %p190 = scmp.ne.s32.totalorder %s181, %s182
      %p191 = scmp.eq.s32.totalorder %s24, 0
      %p192 = por %p190, %p191
      %p193 = scmp.ne.s32.totalorder %s181, %s182
      %p194 = scmp.eq.s32.totalorder %s25, 1
      %p195 = por %p193, %p194
      %p197 = scmp.ne.s32.totalorder %s182, %s196
      %p198 = scmp.eq.s32.totalorder %s25, 0
      %p199 = por %p197, %p198
      %s201 = sadd.s32 %s200, 1
      %p204 = scmp.eq.s32.totalorder %s19, 1
      %p205 = scmp.ne.s32.totalorder %s200, %s202
      %p206 = scmp.eq.s32.totalorder %s19, 0
      %p207 = por %p205, %p206
      %p208 = scmp.ne.s32.totalorder %s200, %s202
      %p209 = scmp.eq.s32.totalorder %s24, 1
      %p210 = por %p208, %p209
      %p211 = scmp.ne.s32.totalorder %s202, %s203
      %p212 = scmp.eq.s32.totalorder %s24, 0
      %p213 = por %p211, %p212
      %p214 = scmp.ne.s32.totalorder %s202, %s203
      %p215 = scmp.eq.s32.totalorder %s25, 1
      %p216 = por %p214, %p215
      %p218 = scmp.ne.s32.totalorder %s203, %s217
      %p219 = scmp.eq.s32.totalorder %s25, 0
      %p220 = por %p218, %p219
      %s221 = ssub.s32 %s19, %s26
      %p222 = scmp.eq.s32.totalorder %s221, 0
      %s224 = sadd.s32 %s223, 1
      %s225 = scalar_select %p222, %s223, %s224
      %p228 = pneg %p222
      %p229 = scmp.eq.s32.totalorder %s19, 1
      %p230 = por %p228, %p229
      %p231 = scmp.ne.s32.totalorder %s223, %s226
      %p232 = scmp.eq.s32.totalorder %s19, 0
      %p233 = por %p231, %p232
      %p234 = scmp.ne.s32.totalorder %s223, %s226
      %p235 = scmp.eq.s32.totalorder %s24, 1
      %p236 = por %p234, %p235
      %p237 = scmp.ne.s32.totalorder %s226, %s227
      %p238 = scmp.eq.s32.totalorder %s24, 0
      %p239 = por %p237, %p238
      %p240 = scmp.ne.s32.totalorder %s226, %s227
      %p241 = scmp.eq.s32.totalorder %s25, 1
      %p242 = por %p240, %p241
      %p244 = scmp.ne.s32.totalorder %s227, %s243
      %p245 = scmp.eq.s32.totalorder %s25, 0
      %p246 = por %p244, %p245
      %p247 = scmp.le.s32.totalorder 1, %s19
      %p248 = scmp.lt.s32.totalorder %s19, 3
      %p249 = pnand %p247, %p248
      %p250 = pneg %p249
      // Predicated region
      $region9: #{tpu_custom_call.1} parent=5 // pred_check
        _
      $region10: #{tpu_custom_call.1} parent=5 // pred_check_branch
        %252 = sbr.rel (%p249) target = $region12
      $region11: #{tpu_custom_call.1} parent=5 // pred_region
        %s253 = ssub.s32 %s19, 1
        // Predicated region
        $region13: #{tpu_custom_call.1} parent=11 // pred_check
          %p254 = pneg %p66
        $region14: #{tpu_custom_call.1} parent=11 // pred_check_branch
          %256 = sbr.rel (%p254) target = $region16
        $region15: #{tpu_custom_call.1} parent=11 // pred_region
          _
        $region16: #{tpu_custom_call.1} parent=11 // pred_fallthru
          _
        // Predicated region
        $region17: #{tpu_custom_call.1} parent=11 // pred_check
          %p257 = pneg %p87
        $region18: #{tpu_custom_call.1} parent=11 // pred_check_branch
          %259 = sbr.rel (%p257) target = $region20
        $region19: #{tpu_custom_call.1} parent=11 // pred_region
          _
        $region20: #{tpu_custom_call.1} parent=11 // pred_fallthru
          _
        // Predicated region
        $region21: #{tpu_custom_call.1} parent=11 // pred_check
          %p260 = pneg %p108
        $region22: #{tpu_custom_call.1} parent=11 // pred_check_branch
          %262 = sbr.rel (%p260) target = $region24
        $region23: #{tpu_custom_call.1} parent=11 // pred_region
          %s264 = ssub.s32 18432, 18432
          %265 = vsyncadd [#allocation5], %s264
          %s266 = sshll.u32 [#allocation4], 4
          %s267 = int_to_ptr.vmem [resolvable:$true] %s266
          %272 = dma.hbm_to_vmem [thread:$0]  %s3, 18432, %s267, [#allocation5], 128, 128, 8
        $region24: #{tpu_custom_call.1} parent=11 // pred_fallthru
          _
        // Predicated region
        $region25: #{tpu_custom_call.1} parent=11 // pred_check
          %p273 = pneg %p129
        $region26: #{tpu_custom_call.1} parent=11 // pred_check_branch
          %275 = sbr.rel (%p273) target = $region28
        $region27: #{tpu_custom_call.1} parent=11 // pred_region
          _
        $region28: #{tpu_custom_call.1} parent=11 // pred_fallthru
          _
        // Predicated region
        $region29: #{tpu_custom_call.1} parent=11 // pred_check
          %p276 = pneg %p150
        $region30: #{tpu_custom_call.1} parent=11 // pred_check_branch
          %278 = sbr.rel (%p276) target = $region32
        $region31: #{tpu_custom_call.1} parent=11 // pred_region
          _
        $region32: #{tpu_custom_call.1} parent=11 // pred_fallthru
          _
        // Predicated region
        $region33: #{tpu_custom_call.1} parent=11 // pred_check
          %p279 = pneg %p171
        $region34: #{tpu_custom_call.1} parent=11 // pred_check_branch
          %281 = sbr.rel (%p279) target = $region36
        $region35: #{tpu_custom_call.1} parent=11 // pred_region
          _
        $region36: #{tpu_custom_call.1} parent=11 // pred_fallthru
          _
        // Predicated region
        $region37: #{tpu_custom_call.1} parent=11 // pred_check
          %p282 = pneg %p192
        $region38: #{tpu_custom_call.1} parent=11 // pred_check_branch
          %284 = sbr.rel (%p282) target = $region40
        $region39: #{tpu_custom_call.1} parent=11 // pred_region
          _
        $region40: #{tpu_custom_call.1} parent=11 // pred_fallthru
          _
        // Predicated region
        $region41: #{tpu_custom_call.1} parent=11 // pred_check
          %p285 = pneg %p213
        $region42: #{tpu_custom_call.1} parent=11 // pred_check_branch
          %287 = sbr.rel (%p285) target = $region44
        $region43: #{tpu_custom_call.1} parent=11 // pred_region
          _
        $region44: #{tpu_custom_call.1} parent=11 // pred_fallthru
          _
      $region12: #{tpu_custom_call.1} parent=5 // pred_fallthru
        _
      %p288 = scmp.lt.s32.totalorder %s19, 2
      // Predicated region
      $region45: #{tpu_custom_call.1} parent=5 // pred_check
        %p289 = pneg %p288
      $region46: #{tpu_custom_call.1} parent=5 // pred_check_branch
        %291 = sbr.rel (%p289) target = $region48
      $region47: #{tpu_custom_call.1} parent=5 // pred_region
        // Predicated region
        $region49: #{tpu_custom_call.1} parent=47 // pred_check
          %p292 = pneg %p39
        $region50: #{tpu_custom_call.1} parent=47 // pred_check_branch
          %294 = sbr.rel (%p292) target = $region52
        $region51: #{tpu_custom_call.1} parent=47 // pred_region
          %p295 = scmp.lt.s32.totalorder %s19, 1
          %s296 = scalar_select %p295, %s19, 1
          %s297 = smul.addr %s296, 32
          %s298 = smul.addr %s297, 8
          %s299 = scalar_lea.vmem %s0, %s298
        $region52: #{tpu_custom_call.1} parent=47 // pred_fallthru
          _
      $region48: #{tpu_custom_call.1} parent=5 // pred_fallthru
        _
      %p300 = scmp.le.s32.totalorder 1, %s19
      %p301 = scmp.lt.s32.totalorder %s19, 3
      %p302 = pnand %p300, %p301
      %p303 = pneg %p302
      // Predicated region
      $region53: #{tpu_custom_call.1} parent=5 // pred_check
        _
      $region54: #{tpu_custom_call.1} parent=5 // pred_check_branch
        %305 = sbr.rel (%p302) target = $region56
      $region55: #{tpu_custom_call.1} parent=5 // pred_region
        %s306 = ssub.s32 %s19, 1
        // Predicated region
        $region57: #{tpu_custom_call.1} parent=55 // pred_check
          %p307 = pneg %p108
        $region58: #{tpu_custom_call.1} parent=55 // pred_check_branch
          %309 = sbr.rel (%p307) target = $region60
        $region59: #{tpu_custom_call.1} parent=55 // pred_region
          %310 = dma.done [#allocation5], 18432
        $region60: #{tpu_custom_call.1} parent=55 // pred_fallthru
          _
        %p311 = scmp.lt.s32.totalorder %s24, 1
        %s312 = scalar_select %p311, %s24, 1
        %s313 = smul.addr %s312, 32
        %s314 = smul.addr %s313, 8
        %s315 = scalar_lea.vmem %s0, %s314
        %p316 = pneg %p45
        %p317 = pneg %p42
        %p318 = pneg %p66
        %p319 = pneg %p63
        %p320 = pneg %p87
        %p321 = pneg %p84
        %p322 = pneg %p108
        %p323 = pneg %p105
        %p324 = pneg %p129
        %p325 = pneg %p126
        %p326 = pneg %p150
        %p327 = pneg %p147
        %p328 = pneg %p171
        %p329 = pneg %p168
        %p330 = pneg %p192
        %p331 = pneg %p189
        %p332 = pneg %p213
        %p333 = pneg %p210
        %p334 = pneg %p239
        %p335 = pneg %p236
        %s336 = sand.u32 %s226, 1
        %s337 = scalar_lea.sflag [#allocation6], %s336
        %s338 = sand.u32 %s226, 1
        %s339 = smul.addr %s338, 256
        %s340 = scalar_lea.vmem [#allocation7], %s339
        %p341 = scmp.lt.s32.totalorder %s24, 1
        %s342 = scalar_select %p341, %s24, 1
        %s343 = smul.addr %s342, 32
        %s344 = smul.addr %s343, 8
        %s345 = scalar_lea.vmem %s0, %s344
        %p346 = scmp.eq.s32.totalorder %s24, 0
        // Predicated region
        $region61: #{tpu_custom_call.1} parent=55 // pred_check
          %p347 = pneg %p346
        $region62: #{tpu_custom_call.1} parent=55 // pred_check_branch
          %349 = sbr.rel (%p347) target = $region64
        $region63: #{tpu_custom_call.1} parent=55 // pred_region
          %350 = vst [vmem:[#allocation2] sm:$0xff] 0.0
          %351 = vst [vmem:[#allocation2 + $0x8] sm:$0xff] 0.0
          %352 = vst [vmem:[#allocation2 + $0x10] sm:$0x3] 0.0
          %353 = vst [vmem:[#allocation2 + $0x18] sm:$0xff] 0.0
          %354 = vst [vmem:[#allocation2 + $0x20] sm:$0xff] 0.0
          %355 = vst [vmem:[#allocation2 + $0x28] sm:$0x3] 0.0
          %356 = vst [vmem:[#allocation2 + $0x30] sm:$0xff] 0.0
          %357 = vst [vmem:[#allocation2 + $0x38] sm:$0xff] 0.0
          %358 = vst [vmem:[#allocation2 + $0x40] sm:$0x3] 0.0
          %359 = vst [vmem:[#allocation2 + $0x48] sm:$0xff] 0.0
          %360 = vst [vmem:[#allocation2 + $0x50] sm:$0xff] 0.0
          %361 = vst [vmem:[#allocation2 + $0x58] sm:$0x3] 0.0
          %362 = vst [vmem:[#allocation2 + $0x60] sm:$0xff] 0.0
          %363 = vst [vmem:[#allocation2 + $0x68] sm:$0xff] 0.0
          %364 = vst [vmem:[#allocation2 + $0x70] sm:$0x3] 0.0
          %365 = vst [vmem:[#allocation2 + $0x78] sm:$0xff] 0.0
          %366 = vst [vmem:[#allocation2 + $0x80] sm:$0xff] 0.0
          %367 = vst [vmem:[#allocation2 + $0x88] sm:$0x3] 0.0
          %368 = vst [vmem:[#allocation2 + $0x90] sm:$0xff] 0.0
          %369 = vst [vmem:[#allocation2 + $0x98] sm:$0xff] 0.0
          %370 = vst [vmem:[#allocation2 + $0xa0] sm:$0x3] 0.0
          %371 = vst [vmem:[#allocation2 + $0xa8] sm:$0xff] 0.0
          %372 = vst [vmem:[#allocation2 + $0xb0] sm:$0xff] 0.0
          %373 = vst [vmem:[#allocation2 + $0xb8] sm:$0x3] 0.0
          %374 = vst [vmem:[#allocation2 + $0xc0] sm:$0xff] 0.0
          %375 = vst [vmem:[#allocation2 + $0xc8] sm:$0xff] 0.0
          %376 = vst [vmem:[#allocation2 + $0xd0] sm:$0x3] 0.0
          %377 = vst [vmem:[#allocation2 + $0xd8] sm:$0xff] 0.0
          %378 = vst [vmem:[#allocation2 + $0xe0] sm:$0xff] 0.0
          %379 = vst [vmem:[#allocation2 + $0xe8] sm:$0x3] 0.0
          %380 = vst [vmem:[#allocation2 + $0xf0] sm:$0xff] 0.0
          %381 = vst [vmem:[#allocation2 + $0xf8] sm:$0xff] 0.0
          %382 = vst [vmem:[#allocation2 + $0x100] sm:$0x3] 0.0
          %383 = vst [vmem:[#allocation2 + $0x108] sm:$0xff] 0.0
          %384 = vst [vmem:[#allocation2 + $0x110] sm:$0xff] 0.0
          %385 = vst [vmem:[#allocation2 + $0x118] sm:$0x3] 0.0
          %386 = vst [vmem:[#allocation2 + $0x120] sm:$0xff] 0.0
          %387 = vst [vmem:[#allocation2 + $0x128] sm:$0xff] 0.0
          %388 = vst [vmem:[#allocation2 + $0x130] sm:$0x3] 0.0
          %389 = vst [vmem:[#allocation2 + $0x138] sm:$0xff] 0.0
          %390 = vst [vmem:[#allocation2 + $0x140] sm:$0xff] 0.0
          %391 = vst [vmem:[#allocation2 + $0x148] sm:$0x3] 0.0
          %392 = vst [vmem:[#allocation2 + $0x150] sm:$0xff] 0.0
          %393 = vst [vmem:[#allocation2 + $0x158] sm:$0xff] 0.0
          %394 = vst [vmem:[#allocation2 + $0x160] sm:$0x3] 0.0
          %395 = vst [vmem:[#allocation2 + $0x168] sm:$0xff] 0.0
          %396 = vst [vmem:[#allocation2 + $0x170] sm:$0xff] 0.0
          %397 = vst [vmem:[#allocation2 + $0x178] sm:$0x3] 0.0
          %398 = vst [vmem:[#allocation2 + $0x180] sm:$0xff] 0.0
          %399 = vst [vmem:[#allocation2 + $0x188] sm:$0xff] 0.0
          %400 = vst [vmem:[#allocation2 + $0x190] sm:$0x3] 0.0
          %401 = vst [vmem:[#allocation2 + $0x198] sm:$0xff] 0.0
          %402 = vst [vmem:[#allocation2 + $0x1a0] sm:$0xff] 0.0
          %403 = vst [vmem:[#allocation2 + $0x1a8] sm:$0x3] 0.0
        $region64: #{tpu_custom_call.1} parent=55 // pred_fallthru
          _
        %v404 = vld [vmem:[%s345] sm:$0xff]
        %v405 = vld [vmem:[%s345 + $0x8] sm:$0xff]
        %v406 = vld [vmem:[%s345 + $0x10] sm:$0xff]
        %v407 = vld [vmem:[%s345 + $0x18] sm:$0xff]
        %v408 = vld [vmem:[%s345 + $0x20] sm:$0xff]
        %v409 = vld [vmem:[%s345 + $0x28] sm:$0xff]
        %v410 = vld [vmem:[%s345 + $0x30] sm:$0xff]
        %v411 = vld [vmem:[%s345 + $0x38] sm:$0xff]
        %v412 = vld [vmem:[%s345 + $0x40] sm:$0xff]
        %v413 = vld [vmem:[%s345 + $0x48] sm:$0xff]
        %v414 = vld [vmem:[%s345 + $0x50] sm:$0xff]
        %v415 = vld [vmem:[%s345 + $0x58] sm:$0xff]
        %v416 = vld [vmem:[%s345 + $0x60] sm:$0xff]
        %v417 = vld [vmem:[%s345 + $0x68] sm:$0xff]
        %v418 = vld [vmem:[%s345 + $0x70] sm:$0xff]
        %v419 = vld [vmem:[%s345 + $0x78] sm:$0xff]
        %v420 = vld [vmem:[%s345 + $0x80] sm:$0xff]
        %v421 = vld [vmem:[%s345 + $0x88] sm:$0xff]
        %v422 = vld [vmem:[%s345 + $0x90] sm:$0xff]
        %v423 = vld [vmem:[%s345 + $0x98] sm:$0xff]
        %v424 = vld [vmem:[%s345 + $0xa0] sm:$0xff]
        %v425 = vld [vmem:[%s345 + $0xa8] sm:$0xff]
        %v426 = vld [vmem:[%s345 + $0xb0] sm:$0xff]
        %v427 = vld [vmem:[%s345 + $0xb8] sm:$0xff]
        %v428 = vld [vmem:[%s345 + $0xc0] sm:$0xff]
        %v429 = vld [vmem:[%s345 + $0xc8] sm:$0xff]
        %v430 = vld [vmem:[%s345 + $0xd0] sm:$0xff]
        %v431 = vld [vmem:[%s345 + $0xd8] sm:$0xff]
        %v432 = vld [vmem:[%s345 + $0xe0] sm:$0xff]
        %v433 = vld [vmem:[%s345 + $0xe8] sm:$0xff]
        %v434 = vld [vmem:[%s345 + $0xf0] sm:$0xff]
        %v435 = vld [vmem:[%s345 + $0xf8] sm:$0xff]
        %v436 = vmax.f32 %v404, 0.0
        %v437 = vmax.f32 %v405, 0.0
        %v438 = vmax.f32 %v406, 0.0
        %v439 = vmax.f32 %v407, 0.0
        %v440 = vmax.f32 %v408, 0.0
        %v441 = vmax.f32 %v409, 0.0
        %v442 = vmax.f32 %v410, 0.0
        %v443 = vmax.f32 %v411, 0.0
        %v444 = vmax.f32 %v412, 0.0
        %v445 = vmax.f32 %v413, 0.0
        %v446 = vmax.f32 %v414, 0.0
        %v447 = vmax.f32 %v415, 0.0
        %v448 = vmax.f32 %v416, 0.0
        %v449 = vmax.f32 %v417, 0.0
        %v450 = vmax.f32 %v418, 0.0
        %v451 = vmax.f32 %v419, 0.0
        %v452 = vmax.f32 %v420, 0.0
        %v453 = vmax.f32 %v421, 0.0
        %v454 = vmax.f32 %v422, 0.0
        %v455 = vmax.f32 %v423, 0.0
        %v456 = vmax.f32 %v424, 0.0
        %v457 = vmax.f32 %v425, 0.0
        %v458 = vmax.f32 %v426, 0.0
        %v459 = vmax.f32 %v427, 0.0
        %v460 = vmax.f32 %v428, 0.0
        %v461 = vmax.f32 %v429, 0.0
        %v462 = vmax.f32 %v430, 0.0
        %v463 = vmax.f32 %v431, 0.0
        %v464 = vmax.f32 %v432, 0.0
        %v465 = vmax.f32 %v433, 0.0
        %v466 = vmax.f32 %v434, 0.0
        %v467 = vmax.f32 %v435, 0.0
        %v468 = vld [vmem:[%s1] sm:$0xff]
        %v469 = vld [vmem:[%s1 + $0x8] sm:$0xff]
        %v470 = vld [vmem:[%s2] sm:$0x1]
        %v472 = vlaneseq
        %v473 = vshrl.u32 %v472, 7
        %v474 = vsub.s32 0, %v473
        %v475 = vrot.slane %v470, %v474
        %vm477 = vcmask 130048
        %v479 = vsel %vm477, %v436, 0
        %v482 = vsel %vm477, %v437, 0
        %v485 = vsel %vm477, %v438, 0
        %v488 = vsel %vm477, %v439, 0
        %v491 = vsel %vm477, %v440, 0
        %v494 = vsel %vm477, %v441, 0
        %v497 = vsel %vm477, %v442, 0
        %v500 = vsel %vm477, %v443, 0
        %v503 = vsel %vm477, %v444, 0
        %v506 = vsel %vm477, %v445, 0
        %v509 = vsel %vm477, %v446, 0
        %v512 = vsel %vm477, %v447, 0
        %v515 = vsel %vm477, %v448, 0
        %v518 = vsel %vm477, %v449, 0
        %v521 = vsel %vm477, %v450, 0
        %v524 = vsel %vm477, %v451, 0
        %v527 = vsel %vm477, %v452, 0
        %v530 = vsel %vm477, %v453, 0
        %v533 = vsel %vm477, %v454, 0
        %v536 = vsel %vm477, %v455, 0
        %v539 = vsel %vm477, %v456, 0
        %v542 = vsel %vm477, %v457, 0
        %v545 = vsel %vm477, %v458, 0
        %v548 = vsel %vm477, %v459, 0
        %v551 = vsel %vm477, %v460, 0
        %v554 = vsel %vm477, %v461, 0
        %v557 = vsel %vm477, %v462, 0
        %v560 = vsel %vm477, %v463, 0
        %v563 = vsel %vm477, %v464, 0
        %v566 = vsel %vm477, %v465, 0
        %v569 = vsel %vm477, %v466, 0
        %v572 = vsel %vm477, %v467, 0
        %574 = vmatprep.subr.mxu0 0.0
        %575 = vmatpush1.msra.mxu0 %v468
        %576 = vmatprep.subr.mxu0 0.0
        %577 = vmatpush1.msra.mxu0 %v469
        %578 = vmatprep.subr.mxu0 0.0
        %579 = vmatpush1.msra.mxu0 0.0
        %580 = vmatprep.subr.mxu0 0.0
        %581 = vmatpush1.msra.mxu0 0.0
        %582 = vmatprep.subr.mxu0 0.0
        %583 = vmatpush1.msra.mxu0 0.0
        %584 = vmatprep.subr.mxu0 0.0
        %585 = vmatpush1.msra.mxu0 0.0
        %586 = vmatprep.subr.mxu0 0.0
        %587 = vmatpush1.msra.mxu0 0.0
        %588 = vmatprep.subr.mxu0 0.0
        %589 = vmatpush1.msra.mxu0 0.0
        %590 = vmatprep.subr.mxu0 0.0
        %591 = vmatpush1.msra.mxu0 0.0
        %592 = vmatprep.subr.mxu0 0.0
        %593 = vmatpush1.msra.mxu0 0.0
        %594 = vmatprep.subr.mxu0 0.0
        %595 = vmatpush1.msra.mxu0 0.0
        %596 = vmatprep.subr.mxu0 0.0
        %597 = vmatpush1.msra.mxu0 0.0
        %598 = vmatprep.subr.mxu0 0.0
        %599 = vmatpush1.msra.mxu0 0.0
        %600 = vmatprep.subr.mxu0 0.0
        %601 = vmatpush1.msra.mxu0 0.0
        %602 = vmatprep.subr.mxu0 0.0
        %603 = vmatpush1.msra.mxu0 0.0
        %604 = vmatprep.subr.mxu0 0.0
        %605 = vmatpush1.msra.mxu0 0.0
        %606 = vmatprep.subr.mxu0 0.0
        %607 = vmatpush1.msra.mxu0 0.0
        %608 = vmatprep.subr.mxu0 0.0
        %609 = vmatpush1.msra.mxu0 0.0
        %610 = vmatprep.subr.mxu0 0.0
        %611 = vmatpush1.msra.mxu0 0.0
        %612 = vmatprep.subr.mxu0 0.0
        %613 = vmatpush1.msra.mxu0 0.0
        %614 = vmatprep.subr.mxu0 0.0
        %615 = vmatpush1.msra.mxu0 0.0
        %616 = vmatprep.subr.mxu0 0.0
        %617 = vmatpush1.msra.mxu0 0.0
        %618 = vmatprep.subr.mxu0 0.0
        %619 = vmatpush1.msra.mxu0 0.0
        %620 = vmatprep.subr.mxu0 0.0
        %621 = vmatpush1.msra.mxu0 0.0
        %622 = vmatprep.subr.mxu0 0.0
        %623 = vmatpush1.msra.mxu0 0.0
        %624 = vmatprep.subr.mxu0 0.0
        %625 = vmatpush1.msra.mxu0 0.0
        %626 = vmatprep.subr.mxu0 0.0
        %627 = vmatpush1.msra.mxu0 0.0
        %628 = vmatprep.subr.mxu0 0.0
        %629 = vmatpush1.msra.mxu0 0.0
        %630 = vmatprep.subr.mxu0 0.0
        %631 = vmatpush1.msra.mxu0 0.0
        %632 = vmatprep.subr.mxu0 0.0
        %633 = vmatpush1.msra.mxu0 0.0
        %634 = vmatprep.subr.mxu0 0.0
        %635 = vmatpush1.msra.mxu0 0.0
        %636 = vmatprep.subr.mxu0 0.0
        %637 = vmatpush1.msra.mxu0 0.0
        %638 = vmatprep.mubr.f32.mxu0 0.0
        %639 = vmatmul.mubr.f32.gmra.mrb[0].mxu0 %v479
        %v640 = vpop.f32.mrb[0].mxu0
        %v641 = vadd.f32 %v475, %v640
        %v642 = vpop.f32.mrb[0].mxu0
        %643 = vmatprep.mubr.f32.mxu0 0.0
        %644 = vmatmul.mubr.f32.gmra.mrb[0].mxu0 %v482
        %v645 = vpop.f32.mrb[0].mxu0
        %v646 = vadd.f32 %v475, %v645
        %v647 = vpop.f32.mrb[0].mxu0
        %648 = vmatprep.mubr.f32.mxu0 0.0
        %649 = vmatmul.mubr.f32.gmra.mrb[0].mxu0 %v485
        %v650 = vpop.f32.mrb[0].mxu0
        %v651 = vadd.f32 %v475, %v650
        %v652 = vpop.f32.mrb[0].mxu0
        %653 = vmatprep.mubr.f32.mxu0 0.0
        %654 = vmatmul.mubr.f32.gmra.mrb[0].mxu0 %v488
        %v655 = vpop.f32.mrb[0].mxu0
        %v656 = vadd.f32 %v475, %v655
        %v657 = vpop.f32.mrb[0].mxu0
        %658 = vmatprep.mubr.f32.mxu0 0.0
        %659 = vmatmul.mubr.f32.gmra.mrb[0].mxu0 %v491
        %v660 = vpop.f32.mrb[0].mxu0
        %v661 = vadd.f32 %v475, %v660
        %v662 = vpop.f32.mrb[0].mxu0
        %663 = vmatprep.mubr.f32.mxu0 0.0
        %664 = vmatmul.mubr.f32.gmra.mrb[0].mxu0 %v494
        %v665 = vpop.f32.mrb[0].mxu0
        %v666 = vadd.f32 %v475, %v665
        %v667 = vpop.f32.mrb[0].mxu0
        %668 = vmatprep.mubr.f32.mxu0 0.0
        %669 = vmatmul.mubr.f32.gmra.mrb[0].mxu0 %v497
        %v670 = vpop.f32.mrb[0].mxu0
        %v671 = vadd.f32 %v475, %v670
        %v672 = vpop.f32.mrb[0].mxu0
        %673 = vmatprep.mubr.f32.mxu0 0.0
        %674 = vmatmul.mubr.f32.gmra.mrb[0].mxu0 %v500
        %v675 = vpop.f32.mrb[0].mxu0
        %v676 = vadd.f32 %v475, %v675
        %v677 = vpop.f32.mrb[0].mxu0
        %678 = vmatprep.mubr.f32.mxu0 0.0
        %679 = vmatmul.mubr.f32.gmra.mrb[0].mxu0 %v503
        %v680 = vpop.f32.mrb[0].mxu0
        %v681 = vadd.f32 %v475, %v680
        %v682 = vpop.f32.mrb[0].mxu0
        %683 = vmatprep.mubr.f32.mxu0 0.0
        %684 = vmatmul.mubr.f32.gmra.mrb[0].mxu0 %v506
        %v685 = vpop.f32.mrb[0].mxu0
        %v686 = vadd.f32 %v475, %v685
        %v687 = vpop.f32.mrb[0].mxu0
        %688 = vmatprep.mubr.f32.mxu0 0.0
        %689 = vmatmul.mubr.f32.gmra.mrb[0].mxu0 %v509
        %v690 = vpop.f32.mrb[0].mxu0
        %v691 = vadd.f32 %v475, %v690
        %v692 = vpop.f32.mrb[0].mxu0
        %693 = vmatprep.mubr.f32.mxu0 0.0
        %694 = vmatmul.mubr.f32.gmra.mrb[0].mxu0 %v512
        %v695 = vpop.f32.mrb[0].mxu0
        %v696 = vadd.f32 %v475, %v695
        %v697 = vpop.f32.mrb[0].mxu0
        %698 = vmatprep.mubr.f32.mxu0 0.0
        %699 = vmatmul.mubr.f32.gmra.mrb[0].mxu0 %v515
        %v700 = vpop.f32.mrb[0].mxu0
        %v701 = vadd.f32 %v475, %v700
        %v702 = vpop.f32.mrb[0].mxu0
        %703 = vmatprep.mubr.f32.mxu0 0.0
        %704 = vmatmul.mubr.f32.gmra.mrb[0].mxu0 %v518
        %v705 = vpop.f32.mrb[0].mxu0
        %v706 = vadd.f32 %v475, %v705
        %v707 = vpop.f32.mrb[0].mxu0
        %708 = vmatprep.mubr.f32.mxu0 0.0
        %709 = vmatmul.mubr.f32.gmra.mrb[0].mxu0 %v521
        %v710 = vpop.f32.mrb[0].mxu0
        %v711 = vadd.f32 %v475, %v710
        %v712 = vpop.f32.mrb[0].mxu0
        %713 = vmatprep.mubr.f32.mxu0 0.0
        %714 = vmatmul.mubr.f32.gmra.mrb[0].mxu0 %v524
        %v715 = vpop.f32.mrb[0].mxu0
        %v716 = vadd.f32 %v475, %v715
        %v717 = vpop.f32.mrb[0].mxu0
        %718 = vmatprep.mubr.f32.mxu0 0.0
        %719 = vmatmul.mubr.f32.gmra.mrb[0].mxu0 %v527
        %v720 = vpop.f32.mrb[0].mxu0
        %v721 = vadd.f32 %v475, %v720
        %v722 = vpop.f32.mrb[0].mxu0
        %723 = vmatprep.mubr.f32.mxu0 0.0
        %724 = vmatmul.mubr.f32.gmra.mrb[0].mxu0 %v530
        %v725 = vpop.f32.mrb[0].mxu0
        %v726 = vadd.f32 %v475, %v725
        %v727 = vpop.f32.mrb[0].mxu0
        %728 = vmatprep.mubr.f32.mxu0 0.0
        %729 = vmatmul.mubr.f32.gmra.mrb[0].mxu0 %v533
        %v730 = vpop.f32.mrb[0].mxu0
        %v731 = vadd.f32 %v475, %v730
        %v732 = vpop.f32.mrb[0].mxu0
        %733 = vmatprep.mubr.f32.mxu0 0.0
        %734 = vmatmul.mubr.f32.gmra.mrb[0].mxu0 %v536
        %v735 = vpop.f32.mrb[0].mxu0
        %v736 = vadd.f32 %v475, %v735
        %v737 = vpop.f32.mrb[0].mxu0
        %738 = vmatprep.mubr.f32.mxu0 0.0
        %739 = vmatmul.mubr.f32.gmra.mrb[0].mxu0 %v539
        %v740 = vpop.f32.mrb[0].mxu0
        %v741 = vadd.f32 %v475, %v740
        %v742 = vpop.f32.mrb[0].mxu0
        %743 = vmatprep.mubr.f32.mxu0 0.0
        %744 = vmatmul.mubr.f32.gmra.mrb[0].mxu0 %v542
        %v745 = vpop.f32.mrb[0].mxu0
        %v746 = vadd.f32 %v475, %v745
        %v747 = vpop.f32.mrb[0].mxu0
        %748 = vmatprep.mubr.f32.mxu0 0.0
        %749 = vmatmul.mubr.f32.gmra.mrb[0].mxu0 %v545
        %v750 = vpop.f32.mrb[0].mxu0
        %v751 = vadd.f32 %v475, %v750
        %v752 = vpop.f32.mrb[0].mxu0
        %753 = vmatprep.mubr.f32.mxu0 0.0
        %754 = vmatmul.mubr.f32.gmra.mrb[0].mxu0 %v548
        %v755 = vpop.f32.mrb[0].mxu0
        %v756 = vadd.f32 %v475, %v755
        %v757 = vpop.f32.mrb[0].mxu0
        %758 = vmatprep.mubr.f32.mxu0 0.0
        %759 = vmatmul.mubr.f32.gmra.mrb[0].mxu0 %v551
        %v760 = vpop.f32.mrb[0].mxu0
        %v761 = vadd.f32 %v475, %v760
        %v762 = vpop.f32.mrb[0].mxu0
        %763 = vmatprep.mubr.f32.mxu0 0.0
        %764 = vmatmul.mubr.f32.gmra.mrb[0].mxu0 %v554
        %v765 = vpop.f32.mrb[0].mxu0
        %v766 = vadd.f32 %v475, %v765
        %v767 = vpop.f32.mrb[0].mxu0
        %768 = vmatprep.mubr.f32.mxu0 0.0
        %769 = vmatmul.mubr.f32.gmra.mrb[0].mxu0 %v557
        %v770 = vpop.f32.mrb[0].mxu0
        %v771 = vadd.f32 %v475, %v770
        %v772 = vpop.f32.mrb[0].mxu0
        %773 = vmatprep.mubr.f32.mxu0 0.0
        %774 = vmatmul.mubr.f32.gmra.mrb[0].mxu0 %v560
        %v775 = vpop.f32.mrb[0].mxu0
        %v776 = vadd.f32 %v475, %v775
        %v777 = vpop.f32.mrb[0].mxu0
        %778 = vmatprep.mubr.f32.mxu0 0.0
        %779 = vmatmul.mubr.f32.gmra.mrb[0].mxu0 %v563
        %v780 = vpop.f32.mrb[0].mxu0
        %v781 = vadd.f32 %v475, %v780
        %v782 = vpop.f32.mrb[0].mxu0
        %783 = vmatprep.mubr.f32.mxu0 0.0
        %784 = vmatmul.mubr.f32.gmra.mrb[0].mxu0 %v566
        %v785 = vpop.f32.mrb[0].mxu0
        %v786 = vadd.f32 %v475, %v785
        %v787 = vpop.f32.mrb[0].mxu0
        %788 = vmatprep.mubr.f32.mxu0 0.0
        %789 = vmatmul.mubr.f32.gmra.mrb[0].mxu0 %v569
        %v790 = vpop.f32.mrb[0].mxu0
        %v791 = vadd.f32 %v475, %v790
        %v792 = vpop.f32.mrb[0].mxu0
        %793 = vmatprep.mubr.f32.mxu0 0.0
        %794 = vmatmul.mubr.f32.gmra.mrb[0].mxu0 %v572
        %v795 = vpop.f32.mrb[0].mxu0
        %v796 = vadd.f32 %v475, %v795
        %v797 = vpop.f32.mrb[0].mxu0
        %798 = vdwg.mxu0
        %v799 = vmax.f32 %v641, 0.0
        %v800 = vmax.f32 %v646, 0.0
        %v801 = vmax.f32 %v651, 0.0
        %v802 = vmax.f32 %v656, 0.0
        %v803 = vmax.f32 %v661, 0.0
        %v804 = vmax.f32 %v666, 0.0
        %v805 = vmax.f32 %v671, 0.0
        %v806 = vmax.f32 %v676, 0.0
        %v807 = vmax.f32 %v681, 0.0
        %v808 = vmax.f32 %v686, 0.0
        %v809 = vmax.f32 %v691, 0.0
        %v810 = vmax.f32 %v696, 0.0
        %v811 = vmax.f32 %v701, 0.0
        %v812 = vmax.f32 %v706, 0.0
        %v813 = vmax.f32 %v711, 0.0
        %v814 = vmax.f32 %v716, 0.0
        %v815 = vmax.f32 %v721, 0.0
        %v816 = vmax.f32 %v726, 0.0
        %v817 = vmax.f32 %v731, 0.0
        %v818 = vmax.f32 %v736, 0.0
        %v819 = vmax.f32 %v741, 0.0
        %v820 = vmax.f32 %v746, 0.0
        %v821 = vmax.f32 %v751, 0.0
        %v822 = vmax.f32 %v756, 0.0
        %v823 = vmax.f32 %v761, 0.0
        %v824 = vmax.f32 %v766, 0.0
        %v825 = vmax.f32 %v771, 0.0
        %v826 = vmax.f32 %v776, 0.0
        %v827 = vmax.f32 %v781, 0.0
        %v828 = vmax.f32 %v786, 0.0
        %v829 = vmax.f32 %v791, 0.0
        %v830 = vmax.f32 %v796, 0.0
        %s831 = scalar_lea.vmem [#allocation2], 24
        %832 = vst [vmem:[%s831 + $0x1] sm:$0xff] %v799
        %833 = vst [vmem:[%s831 + $0x9] sm:$0xff] %v800
        %834 = vst [vmem:[%s831 + $0x19] sm:$0xff] %v801
        %835 = vst [vmem:[%s831 + $0x21] sm:$0xff] %v802
        %836 = vst [vmem:[%s831 + $0x31] sm:$0xff] %v803
        %837 = vst [vmem:[%s831 + $0x39] sm:$0xff] %v804
        %838 = vst [vmem:[%s831 + $0x49] sm:$0xff] %v805
        %839 = vst [vmem:[%s831 + $0x51] sm:$0xff] %v806
        %840 = vst [vmem:[%s831 + $0x61] sm:$0xff] %v807
        %841 = vst [vmem:[%s831 + $0x69] sm:$0xff] %v808
        %842 = vst [vmem:[%s831 + $0x79] sm:$0xff] %v809
        %843 = vst [vmem:[%s831 + $0x81] sm:$0xff] %v810
        %844 = vst [vmem:[%s831 + $0x91] sm:$0xff] %v811
        %845 = vst [vmem:[%s831 + $0x99] sm:$0xff] %v812
        %846 = vst [vmem:[%s831 + $0xa9] sm:$0xff] %v813
        %847 = vst [vmem:[%s831 + $0xb1] sm:$0xff] %v814
        %848 = vst [vmem:[%s831 + $0xc1] sm:$0xff] %v815
        %849 = vst [vmem:[%s831 + $0xc9] sm:$0xff] %v816
        %850 = vst [vmem:[%s831 + $0xd9] sm:$0xff] %v817
        %851 = vst [vmem:[%s831 + $0xe1] sm:$0xff] %v818
        %852 = vst [vmem:[%s831 + $0xf1] sm:$0xff] %v819
        %853 = vst [vmem:[%s831 + $0xf9] sm:$0xff] %v820
        %854 = vst [vmem:[%s831 + $0x109] sm:$0xff] %v821
        %855 = vst [vmem:[%s831 + $0x111] sm:$0xff] %v822
        %856 = vst [vmem:[%s831 + $0x121] sm:$0xff] %v823
        %857 = vst [vmem:[%s831 + $0x129] sm:$0xff] %v824
        %858 = vst [vmem:[%s831 + $0x139] sm:$0xff] %v825
        %859 = vst [vmem:[%s831 + $0x141] sm:$0xff] %v826
        %860 = vst [vmem:[%s831 + $0x151] sm:$0xff] %v827
        %861 = vst [vmem:[%s831 + $0x159] sm:$0xff] %v828
        %862 = vst [vmem:[%s831 + $0x169] sm:$0xff] %v829
        %863 = vst [vmem:[%s831 + $0x171] sm:$0xff] %v830
        %v864 = vld [vmem:[#allocation2] sm:$0xff]
        %v865 = vld [vmem:[#allocation2 + $0x8] sm:$0xff]
        %v866 = vld [vmem:[#allocation2 + $0x18] sm:$0xff]
        %v867 = vld [vmem:[#allocation2 + $0x20] sm:$0xff]
        %v868 = vld [vmem:[#allocation2 + $0x30] sm:$0xff]
        %v869 = vld [vmem:[#allocation2 + $0x38] sm:$0xff]
        %v870 = vld [vmem:[#allocation2 + $0x48] sm:$0xff]
        %v871 = vld [vmem:[#allocation2 + $0x50] sm:$0xff]
        %v872 = vld [vmem:[#allocation2 + $0x60] sm:$0xff]
        %v873 = vld [vmem:[#allocation2 + $0x68] sm:$0xff]
        %v874 = vld [vmem:[#allocation2 + $0x78] sm:$0xff]
        %v875 = vld [vmem:[#allocation2 + $0x80] sm:$0xff]
        %v876 = vld [vmem:[#allocation2 + $0x90] sm:$0xff]
        %v877 = vld [vmem:[#allocation2 + $0x98] sm:$0xff]
        %v878 = vld [vmem:[#allocation2 + $0xa8] sm:$0xff]
        %v879 = vld [vmem:[#allocation2 + $0xb0] sm:$0xff]
        %v880 = vld [vmem:[#allocation2 + $0xc0] sm:$0xff]
        %v881 = vld [vmem:[#allocation2 + $0xc8] sm:$0xff]
        %v882 = vld [vmem:[#allocation2 + $0xd8] sm:$0xff]
        %v883 = vld [vmem:[#allocation2 + $0xe0] sm:$0xff]
        %v884 = vld [vmem:[#allocation2 + $0xf0] sm:$0xff]
        %v885 = vld [vmem:[#allocation2 + $0xf8] sm:$0xff]
        %v886 = vld [vmem:[#allocation2 + $0x108] sm:$0xff]
        %v887 = vld [vmem:[#allocation2 + $0x110] sm:$0xff]
        %v888 = vld [vmem:[#allocation2 + $0x120] sm:$0xff]
        %v889 = vld [vmem:[#allocation2 + $0x128] sm:$0xff]
        %v890 = vld [vmem:[#allocation2 + $0x138] sm:$0xff]
        %v891 = vld [vmem:[#allocation2 + $0x140] sm:$0xff]
        %v892 = vld [vmem:[#allocation2 + $0x150] sm:$0xff]
        %v893 = vld [vmem:[#allocation2 + $0x158] sm:$0xff]
        %v894 = vld [vmem:[#allocation2 + $0x168] sm:$0xff]
        %v895 = vld [vmem:[#allocation2 + $0x170] sm:$0xff]
        %896 = vst [vmem:[#allocation3] sm:$0xff] %v864
        %897 = vst [vmem:[#allocation3 + $0x48] sm:$0xff] %v865
        %898 = vst [vmem:[#allocation3 + $0x90] sm:$0xff] %v866
        %899 = vst [vmem:[#allocation3 + $0xd8] sm:$0xff] %v867
        %900 = vst [vmem:[#allocation3 + $0x120] sm:$0xff] %v868
        %901 = vst [vmem:[#allocation3 + $0x168] sm:$0xff] %v869
        %902 = vst [vmem:[#allocation3 + $0x1b0] sm:$0xff] %v870
        %903 = vst [vmem:[#allocation3 + $0x1f8] sm:$0xff] %v871
        %904 = vst [vmem:[#allocation3 + $0x240] sm:$0xff] %v872
        %905 = vst [vmem:[#allocation3 + $0x288] sm:$0xff] %v873
        %906 = vst [vmem:[#allocation3 + $0x2d0] sm:$0xff] %v874
        %907 = vst [vmem:[#allocation3 + $0x318] sm:$0xff] %v875
        %908 = vst [vmem:[#allocation3 + $0x360] sm:$0xff] %v876
        %909 = vst [vmem:[#allocation3 + $0x3a8] sm:$0xff] %v877
        %910 = vst [vmem:[#allocation3 + $0x3f0] sm:$0xff] %v878
        %911 = vst [vmem:[#allocation3 + $0x438] sm:$0xff] %v879
        %912 = vst [vmem:[#allocation3 + $0x480] sm:$0xff] %v880
        %913 = vst [vmem:[#allocation3 + $0x4c8] sm:$0xff] %v881
        %914 = vst [vmem:[#allocation3 + $0x510] sm:$0xff] %v882
        %915 = vst [vmem:[#allocation3 + $0x558] sm:$0xff] %v883
        %916 = vst [vmem:[#allocation3 + $0x5a0] sm:$0xff] %v884
        %917 = vst [vmem:[#allocation3 + $0x5e8] sm:$0xff] %v885
        %918 = vst [vmem:[#allocation3 + $0x630] sm:$0xff] %v886
        %919 = vst [vmem:[#allocation3 + $0x678] sm:$0xff] %v887
        %920 = vst [vmem:[#allocation3 + $0x6c0] sm:$0xff] %v888
        %921 = vst [vmem:[#allocation3 + $0x708] sm:$0xff] %v889
        %922 = vst [vmem:[#allocation3 + $0x750] sm:$0xff] %v890
        %923 = vst [vmem:[#allocation3 + $0x798] sm:$0xff] %v891
        %924 = vst [vmem:[#allocation3 + $0x7e0] sm:$0xff] %v892
        %925 = vst [vmem:[#allocation3 + $0x828] sm:$0xff] %v893
        %926 = vst [vmem:[#allocation3 + $0x870] sm:$0xff] %v894
        %927 = vst [vmem:[#allocation3 + $0x8b8] sm:$0xff] %v895
        %v928 = vld [vmem:[#allocation2 + $0x1] sm:$0xff]
        %v929 = vld [vmem:[#allocation2 + $0x9] sm:$0xff]
        %v930 = vld [vmem:[#allocation2 + $0x19] sm:$0xff]
        %v931 = vld [vmem:[#allocation2 + $0x21] sm:$0xff]
        %v932 = vld [vmem:[#allocation2 + $0x31] sm:$0xff]
        %v933 = vld [vmem:[#allocation2 + $0x39] sm:$0xff]
        %v934 = vld [vmem:[#allocation2 + $0x49] sm:$0xff]
        %v935 = vld [vmem:[#allocation2 + $0x51] sm:$0xff]
        %v936 = vld [vmem:[#allocation2 + $0x61] sm:$0xff]
        %v937 = vld [vmem:[#allocation2 + $0x69] sm:$0xff]
        %v938 = vld [vmem:[#allocation2 + $0x79] sm:$0xff]
        %v939 = vld [vmem:[#allocation2 + $0x81] sm:$0xff]
        %v940 = vld [vmem:[#allocation2 + $0x91] sm:$0xff]
        %v941 = vld [vmem:[#allocation2 + $0x99] sm:$0xff]
        %v942 = vld [vmem:[#allocation2 + $0xa9] sm:$0xff]
        %v943 = vld [vmem:[#allocation2 + $0xb1] sm:$0xff]
        %v944 = vld [vmem:[#allocation2 + $0xc1] sm:$0xff]
        %v945 = vld [vmem:[#allocation2 + $0xc9] sm:$0xff]
        %v946 = vld [vmem:[#allocation2 + $0xd9] sm:$0xff]
        %v947 = vld [vmem:[#allocation2 + $0xe1] sm:$0xff]
        %v948 = vld [vmem:[#allocation2 + $0xf1] sm:$0xff]
        %v949 = vld [vmem:[#allocation2 + $0xf9] sm:$0xff]
        %v950 = vld [vmem:[#allocation2 + $0x109] sm:$0xff]
        %v951 = vld [vmem:[#allocation2 + $0x111] sm:$0xff]
        %v952 = vld [vmem:[#allocation2 + $0x121] sm:$0xff]
        %v953 = vld [vmem:[#allocation2 + $0x129] sm:$0xff]
        %v954 = vld [vmem:[#allocation2 + $0x139] sm:$0xff]
        %v955 = vld [vmem:[#allocation2 + $0x141] sm:$0xff]
        %v956 = vld [vmem:[#allocation2 + $0x151] sm:$0xff]
        %v957 = vld [vmem:[#allocation2 + $0x159] sm:$0xff]
        %v958 = vld [vmem:[#allocation2 + $0x169] sm:$0xff]
        %v959 = vld [vmem:[#allocation2 + $0x171] sm:$0xff]
        %960 = vst [vmem:[#allocation3 + $0x8] sm:$0xff] %v928
        %961 = vst [vmem:[#allocation3 + $0x50] sm:$0xff] %v929
        %962 = vst [vmem:[#allocation3 + $0x98] sm:$0xff] %v930
        %963 = vst [vmem:[#allocation3 + $0xe0] sm:$0xff] %v931
        %964 = vst [vmem:[#allocation3 + $0x128] sm:$0xff] %v932
        %965 = vst [vmem:[#allocation3 + $0x170] sm:$0xff] %v933
        %966 = vst [vmem:[#allocation3 + $0x1b8] sm:$0xff] %v934
        %967 = vst [vmem:[#allocation3 + $0x200] sm:$0xff] %v935
        %968 = vst [vmem:[#allocation3 + $0x248] sm:$0xff] %v936
        %969 = vst [vmem:[#allocation3 + $0x290] sm:$0xff] %v937
        %970 = vst [vmem:[#allocation3 + $0x2d8] sm:$0xff] %v938
        %971 = vst [vmem:[#allocation3 + $0x320] sm:$0xff] %v939
        %972 = vst [vmem:[#allocation3 + $0x368] sm:$0xff] %v940
        %973 = vst [vmem:[#allocation3 + $0x3b0] sm:$0xff] %v941
        %974 = vst [vmem:[#allocation3 + $0x3f8] sm:$0xff] %v942
        %975 = vst [vmem:[#allocation3 + $0x440] sm:$0xff] %v943
        %976 = vst [vmem:[#allocation3 + $0x488] sm:$0xff] %v944
        %977 = vst [vmem:[#allocation3 + $0x4d0] sm:$0xff] %v945
        %978 = vst [vmem:[#allocation3 + $0x518] sm:$0xff] %v946
        %979 = vst [vmem:[#allocation3 + $0x560] sm:$0xff] %v947
        %980 = vst [vmem:[#allocation3 + $0x5a8] sm:$0xff] %v948
        %981 = vst [vmem:[#allocation3 + $0x5f0] sm:$0xff] %v949
        %982 = vst [vmem:[#allocation3 + $0x638] sm:$0xff] %v950
        %983 = vst [vmem:[#allocation3 + $0x680] sm:$0xff] %v951
        %984 = vst [vmem:[#allocation3 + $0x6c8] sm:$0xff] %v952
        %985 = vst [vmem:[#allocation3 + $0x710] sm:$0xff] %v953
        %986 = vst [vmem:[#allocation3 + $0x758] sm:$0xff] %v954
        %987 = vst [vmem:[#allocation3 + $0x7a0] sm:$0xff] %v955
        %988 = vst [vmem:[#allocation3 + $0x7e8] sm:$0xff] %v956
        %989 = vst [vmem:[#allocation3 + $0x830] sm:$0xff] %v957
        %990 = vst [vmem:[#allocation3 + $0x878] sm:$0xff] %v958
        %991 = vst [vmem:[#allocation3 + $0x8c0] sm:$0xff] %v959
        %v992 = vld [vmem:[#allocation2 + $0x2] sm:$0xff]
        %v993 = vld [vmem:[#allocation2 + $0xa] sm:$0xff]
        %v994 = vld [vmem:[#allocation2 + $0x1a] sm:$0xff]
        %v995 = vld [vmem:[#allocation2 + $0x22] sm:$0xff]
        %v996 = vld [vmem:[#allocation2 + $0x32] sm:$0xff]
        %v997 = vld [vmem:[#allocation2 + $0x3a] sm:$0xff]
        %v998 = vld [vmem:[#allocation2 + $0x4a] sm:$0xff]
        %v999 = vld [vmem:[#allocation2 + $0x52] sm:$0xff]
        %v1000 = vld [vmem:[#allocation2 + $0x62] sm:$0xff]
        %v1001 = vld [vmem:[#allocation2 + $0x6a] sm:$0xff]
        %v1002 = vld [vmem:[#allocation2 + $0x7a] sm:$0xff]
        %v1003 = vld [vmem:[#allocation2 + $0x82] sm:$0xff]
        %v1004 = vld [vmem:[#allocation2 + $0x92] sm:$0xff]
        %v1005 = vld [vmem:[#allocation2 + $0x9a] sm:$0xff]
        %v1006 = vld [vmem:[#allocation2 + $0xaa] sm:$0xff]
        %v1007 = vld [vmem:[#allocation2 + $0xb2] sm:$0xff]
        %v1008 = vld [vmem:[#allocation2 + $0xc2] sm:$0xff]
        %v1009 = vld [vmem:[#allocation2 + $0xca] sm:$0xff]
        %v1010 = vld [vmem:[#allocation2 + $0xda] sm:$0xff]
        %v1011 = vld [vmem:[#allocation2 + $0xe2] sm:$0xff]
        %v1012 = vld [vmem:[#allocation2 + $0xf2] sm:$0xff]
        %v1013 = vld [vmem:[#allocation2 + $0xfa] sm:$0xff]
        %v1014 = vld [vmem:[#allocation2 + $0x10a] sm:$0xff]
        %v1015 = vld [vmem:[#allocation2 + $0x112] sm:$0xff]
        %v1016 = vld [vmem:[#allocation2 + $0x122] sm:$0xff]
        %v1017 = vld [vmem:[#allocation2 + $0x12a] sm:$0xff]
        %v1018 = vld [vmem:[#allocation2 + $0x13a] sm:$0xff]
        %v1019 = vld [vmem:[#allocation2 + $0x142] sm:$0xff]
        %v1020 = vld [vmem:[#allocation2 + $0x152] sm:$0xff]
        %v1021 = vld [vmem:[#allocation2 + $0x15a] sm:$0xff]
        %v1022 = vld [vmem:[#allocation2 + $0x16a] sm:$0xff]
        %v1023 = vld [vmem:[#allocation2 + $0x172] sm:$0xff]
        %1024 = vst [vmem:[#allocation3 + $0x10] sm:$0xff] %v992
        %1025 = vst [vmem:[#allocation3 + $0x58] sm:$0xff] %v993
        %1026 = vst [vmem:[#allocation3 + $0xa0] sm:$0xff] %v994
        %1027 = vst [vmem:[#allocation3 + $0xe8] sm:$0xff] %v995
        %1028 = vst [vmem:[#allocation3 + $0x130] sm:$0xff] %v996
        %1029 = vst [vmem:[#allocation3 + $0x178] sm:$0xff] %v997
        %1030 = vst [vmem:[#allocation3 + $0x1c0] sm:$0xff] %v998
        %1031 = vst [vmem:[#allocation3 + $0x208] sm:$0xff] %v999
        %1032 = vst [vmem:[#allocation3 + $0x250] sm:$0xff] %v1000
        %1033 = vst [vmem:[#allocation3 + $0x298] sm:$0xff] %v1001
        %1034 = vst [vmem:[#allocation3 + $0x2e0] sm:$0xff] %v1002
        %1035 = vst [vmem:[#allocation3 + $0x328] sm:$0xff] %v1003
        %1036 = vst [vmem:[#allocation3 + $0x370] sm:$0xff] %v1004
        %1037 = vst [vmem:[#allocation3 + $0x3b8] sm:$0xff] %v1005
        %1038 = vst [vmem:[#allocation3 + $0x400] sm:$0xff] %v1006
        %1039 = vst [vmem:[#allocation3 + $0x448] sm:$0xff] %v1007
        %1040 = vst [vmem:[#allocation3 + $0x490] sm:$0xff] %v1008
        %1041 = vst [vmem:[#allocation3 + $0x4d8] sm:$0xff] %v1009
        %1042 = vst [vmem:[#allocation3 + $0x520] sm:$0xff] %v1010
        %1043 = vst [vmem:[#allocation3 + $0x568] sm:$0xff] %v1011
        %1044 = vst [vmem:[#allocation3 + $0x5b0] sm:$0xff] %v1012
        %1045 = vst [vmem:[#allocation3 + $0x5f8] sm:$0xff] %v1013
        %1046 = vst [vmem:[#allocation3 + $0x640] sm:$0xff] %v1014
        %1047 = vst [vmem:[#allocation3 + $0x688] sm:$0xff] %v1015
        %1048 = vst [vmem:[#allocation3 + $0x6d0] sm:$0xff] %v1016
        %1049 = vst [vmem:[#allocation3 + $0x718] sm:$0xff] %v1017
        %1050 = vst [vmem:[#allocation3 + $0x760] sm:$0xff] %v1018
        %1051 = vst [vmem:[#allocation3 + $0x7a8] sm:$0xff] %v1019
        %1052 = vst [vmem:[#allocation3 + $0x7f0] sm:$0xff] %v1020
        %1053 = vst [vmem:[#allocation3 + $0x838] sm:$0xff] %v1021
        %1054 = vst [vmem:[#allocation3 + $0x880] sm:$0xff] %v1022
        %1055 = vst [vmem:[#allocation3 + $0x8c8] sm:$0xff] %v1023
        %v1056 = vld [vmem:[%s831] sm:$0xff]
        %v1057 = vld [vmem:[%s831 + $0x8] sm:$0xff]
        %v1058 = vld [vmem:[%s831 + $0x18] sm:$0xff]
        %v1059 = vld [vmem:[%s831 + $0x20] sm:$0xff]
        %v1060 = vld [vmem:[%s831 + $0x30] sm:$0xff]
        %v1061 = vld [vmem:[%s831 + $0x38] sm:$0xff]
        %v1062 = vld [vmem:[%s831 + $0x48] sm:$0xff]
        %v1063 = vld [vmem:[%s831 + $0x50] sm:$0xff]
        %v1064 = vld [vmem:[%s831 + $0x60] sm:$0xff]
        %v1065 = vld [vmem:[%s831 + $0x68] sm:$0xff]
        %v1066 = vld [vmem:[%s831 + $0x78] sm:$0xff]
        %v1067 = vld [vmem:[%s831 + $0x80] sm:$0xff]
        %v1068 = vld [vmem:[%s831 + $0x90] sm:$0xff]
        %v1069 = vld [vmem:[%s831 + $0x98] sm:$0xff]
        %v1070 = vld [vmem:[%s831 + $0xa8] sm:$0xff]
        %v1071 = vld [vmem:[%s831 + $0xb0] sm:$0xff]
        %v1072 = vld [vmem:[%s831 + $0xc0] sm:$0xff]
        %v1073 = vld [vmem:[%s831 + $0xc8] sm:$0xff]
        %v1074 = vld [vmem:[%s831 + $0xd8] sm:$0xff]
        %v1075 = vld [vmem:[%s831 + $0xe0] sm:$0xff]
        %v1076 = vld [vmem:[%s831 + $0xf0] sm:$0xff]
        %v1077 = vld [vmem:[%s831 + $0xf8] sm:$0xff]
        %v1078 = vld [vmem:[%s831 + $0x108] sm:$0xff]
        %v1079 = vld [vmem:[%s831 + $0x110] sm:$0xff]
        %v1080 = vld [vmem:[%s831 + $0x120] sm:$0xff]
        %v1081 = vld [vmem:[%s831 + $0x128] sm:$0xff]
        %v1082 = vld [vmem:[%s831 + $0x138] sm:$0xff]
        %v1083 = vld [vmem:[%s831 + $0x140] sm:$0xff]
        %v1084 = vld [vmem:[%s831 + $0x150] sm:$0xff]
        %v1085 = vld [vmem:[%s831 + $0x158] sm:$0xff]
        %v1086 = vld [vmem:[%s831 + $0x168] sm:$0xff]
        %v1087 = vld [vmem:[%s831 + $0x170] sm:$0xff]
        %1088 = vst [vmem:[#allocation3 + $0x18] sm:$0xff] %v1056
        %1089 = vst [vmem:[#allocation3 + $0x60] sm:$0xff] %v1057
        %1090 = vst [vmem:[#allocation3 + $0xa8] sm:$0xff] %v1058
        %1091 = vst [vmem:[#allocation3 + $0xf0] sm:$0xff] %v1059
        %1092 = vst [vmem:[#allocation3 + $0x138] sm:$0xff] %v1060
        %1093 = vst [vmem:[#allocation3 + $0x180] sm:$0xff] %v1061
        %1094 = vst [vmem:[#allocation3 + $0x1c8] sm:$0xff] %v1062
        %1095 = vst [vmem:[#allocation3 + $0x210] sm:$0xff] %v1063
        %1096 = vst [vmem:[#allocation3 + $0x258] sm:$0xff] %v1064
        %1097 = vst [vmem:[#allocation3 + $0x2a0] sm:$0xff] %v1065
        %1098 = vst [vmem:[#allocation3 + $0x2e8] sm:$0xff] %v1066
        %1099 = vst [vmem:[#allocation3 + $0x330] sm:$0xff] %v1067
        %1100 = vst [vmem:[#allocation3 + $0x378] sm:$0xff] %v1068
        %1101 = vst [vmem:[#allocation3 + $0x3c0] sm:$0xff] %v1069
        %1102 = vst [vmem:[#allocation3 + $0x408] sm:$0xff] %v1070
        %1103 = vst [vmem:[#allocation3 + $0x450] sm:$0xff] %v1071
        %1104 = vst [vmem:[#allocation3 + $0x498] sm:$0xff] %v1072
        %1105 = vst [vmem:[#allocation3 + $0x4e0] sm:$0xff] %v1073
        %1106 = vst [vmem:[#allocation3 + $0x528] sm:$0xff] %v1074
        %1107 = vst [vmem:[#allocation3 + $0x570] sm:$0xff] %v1075
        %1108 = vst [vmem:[#allocation3 + $0x5b8] sm:$0xff] %v1076
        %1109 = vst [vmem:[#allocation3 + $0x600] sm:$0xff] %v1077
        %1110 = vst [vmem:[#allocation3 + $0x648] sm:$0xff] %v1078
        %1111 = vst [vmem:[#allocation3 + $0x690] sm:$0xff] %v1079
        %1112 = vst [vmem:[#allocation3 + $0x6d8] sm:$0xff] %v1080
        %1113 = vst [vmem:[#allocation3 + $0x720] sm:$0xff] %v1081
        %1114 = vst [vmem:[#allocation3 + $0x768] sm:$0xff] %v1082
        %1115 = vst [vmem:[#allocation3 + $0x7b0] sm:$0xff] %v1083
        %1116 = vst [vmem:[#allocation3 + $0x7f8] sm:$0xff] %v1084
        %1117 = vst [vmem:[#allocation3 + $0x840] sm:$0xff] %v1085
        %1118 = vst [vmem:[#allocation3 + $0x888] sm:$0xff] %v1086
        %1119 = vst [vmem:[#allocation3 + $0x8d0] sm:$0xff] %v1087
        %v1120 = vld [vmem:[%s831 + $0x1] sm:$0xff]
        %v1121 = vld [vmem:[%s831 + $0x9] sm:$0xff]
        %v1122 = vld [vmem:[%s831 + $0x19] sm:$0xff]
        %v1123 = vld [vmem:[%s831 + $0x21] sm:$0xff]
        %v1124 = vld [vmem:[%s831 + $0x31] sm:$0xff]
        %v1125 = vld [vmem:[%s831 + $0x39] sm:$0xff]
        %v1126 = vld [vmem:[%s831 + $0x49] sm:$0xff]
        %v1127 = vld [vmem:[%s831 + $0x51] sm:$0xff]
        %v1128 = vld [vmem:[%s831 + $0x61] sm:$0xff]
        %v1129 = vld [vmem:[%s831 + $0x69] sm:$0xff]
        %v1130 = vld [vmem:[%s831 + $0x79] sm:$0xff]
        %v1131 = vld [vmem:[%s831 + $0x81] sm:$0xff]
        %v1132 = vld [vmem:[%s831 + $0x91] sm:$0xff]
        %v1133 = vld [vmem:[%s831 + $0x99] sm:$0xff]
        %v1134 = vld [vmem:[%s831 + $0xa9] sm:$0xff]
        %v1135 = vld [vmem:[%s831 + $0xb1] sm:$0xff]
        %v1136 = vld [vmem:[%s831 + $0xc1] sm:$0xff]
        %v1137 = vld [vmem:[%s831 + $0xc9] sm:$0xff]
        %v1138 = vld [vmem:[%s831 + $0xd9] sm:$0xff]
        %v1139 = vld [vmem:[%s831 + $0xe1] sm:$0xff]
        %v1140 = vld [vmem:[%s831 + $0xf1] sm:$0xff]
        %v1141 = vld [vmem:[%s831 + $0xf9] sm:$0xff]
        %v1142 = vld [vmem:[%s831 + $0x109] sm:$0xff]
        %v1143 = vld [vmem:[%s831 + $0x111] sm:$0xff]
        %v1144 = vld [vmem:[%s831 + $0x121] sm:$0xff]
        %v1145 = vld [vmem:[%s831 + $0x129] sm:$0xff]
        %v1146 = vld [vmem:[%s831 + $0x139] sm:$0xff]
        %v1147 = vld [vmem:[%s831 + $0x141] sm:$0xff]
        %v1148 = vld [vmem:[%s831 + $0x151] sm:$0xff]
        %v1149 = vld [vmem:[%s831 + $0x159] sm:$0xff]
        %v1150 = vld [vmem:[%s831 + $0x169] sm:$0xff]
        %v1151 = vld [vmem:[%s831 + $0x171] sm:$0xff]
        %1152 = vst [vmem:[#allocation3 + $0x20] sm:$0xff] %v1120
        %1153 = vst [vmem:[#allocation3 + $0x68] sm:$0xff] %v1121
        %1154 = vst [vmem:[#allocation3 + $0xb0] sm:$0xff] %v1122
        %1155 = vst [vmem:[#allocation3 + $0xf8] sm:$0xff] %v1123
        %1156 = vst [vmem:[#allocation3 + $0x140] sm:$0xff] %v1124
        %1157 = vst [vmem:[#allocation3 + $0x188] sm:$0xff] %v1125
        %1158 = vst [vmem:[#allocation3 + $0x1d0] sm:$0xff] %v1126
        %1159 = vst [vmem:[#allocation3 + $0x218] sm:$0xff] %v1127
        %1160 = vst [vmem:[#allocation3 + $0x260] sm:$0xff] %v1128
        %1161 = vst [vmem:[#allocation3 + $0x2a8] sm:$0xff] %v1129
        %1162 = vst [vmem:[#allocation3 + $0x2f0] sm:$0xff] %v1130
        %1163 = vst [vmem:[#allocation3 + $0x338] sm:$0xff] %v1131
        %1164 = vst [vmem:[#allocation3 + $0x380] sm:$0xff] %v1132
        %1165 = vst [vmem:[#allocation3 + $0x3c8] sm:$0xff] %v1133
        %1166 = vst [vmem:[#allocation3 + $0x410] sm:$0xff] %v1134
        %1167 = vst [vmem:[#allocation3 + $0x458] sm:$0xff] %v1135
        %1168 = vst [vmem:[#allocation3 + $0x4a0] sm:$0xff] %v1136
        %1169 = vst [vmem:[#allocation3 + $0x4e8] sm:$0xff] %v1137
        %1170 = vst [vmem:[#allocation3 + $0x530] sm:$0xff] %v1138
        %1171 = vst [vmem:[#allocation3 + $0x578] sm:$0xff] %v1139
        %1172 = vst [vmem:[#allocation3 + $0x5c0] sm:$0xff] %v1140
        %1173 = vst [vmem:[#allocation3 + $0x608] sm:$0xff] %v1141
        %1174 = vst [vmem:[#allocation3 + $0x650] sm:$0xff] %v1142
        %1175 = vst [vmem:[#allocation3 + $0x698] sm:$0xff] %v1143
        %1176 = vst [vmem:[#allocation3 + $0x6e0] sm:$0xff] %v1144
        %1177 = vst [vmem:[#allocation3 + $0x728] sm:$0xff] %v1145
        %1178 = vst [vmem:[#allocation3 + $0x770] sm:$0xff] %v1146
        %1179 = vst [vmem:[#allocation3 + $0x7b8] sm:$0xff] %v1147
        %1180 = vst [vmem:[#allocation3 + $0x800] sm:$0xff] %v1148
        %1181 = vst [vmem:[#allocation3 + $0x848] sm:$0xff] %v1149
        %1182 = vst [vmem:[#allocation3 + $0x890] sm:$0xff] %v1150
        %1183 = vst [vmem:[#allocation3 + $0x8d8] sm:$0xff] %v1151
        %v1184 = vld [vmem:[%s831 + $0x2] sm:$0xff]
        %v1185 = vld [vmem:[%s831 + $0xa] sm:$0xff]
        %v1186 = vld [vmem:[%s831 + $0x1a] sm:$0xff]
        %v1187 = vld [vmem:[%s831 + $0x22] sm:$0xff]
        %v1188 = vld [vmem:[%s831 + $0x32] sm:$0xff]
        %v1189 = vld [vmem:[%s831 + $0x3a] sm:$0xff]
        %v1190 = vld [vmem:[%s831 + $0x4a] sm:$0xff]
        %v1191 = vld [vmem:[%s831 + $0x52] sm:$0xff]
        %v1192 = vld [vmem:[%s831 + $0x62] sm:$0xff]
        %v1193 = vld [vmem:[%s831 + $0x6a] sm:$0xff]
        %v1194 = vld [vmem:[%s831 + $0x7a] sm:$0xff]
        %v1195 = vld [vmem:[%s831 + $0x82] sm:$0xff]
        %v1196 = vld [vmem:[%s831 + $0x92] sm:$0xff]
        %v1197 = vld [vmem:[%s831 + $0x9a] sm:$0xff]
        %v1198 = vld [vmem:[%s831 + $0xaa] sm:$0xff]
        %v1199 = vld [vmem:[%s831 + $0xb2] sm:$0xff]
        %v1200 = vld [vmem:[%s831 + $0xc2] sm:$0xff]
        %v1201 = vld [vmem:[%s831 + $0xca] sm:$0xff]
        %v1202 = vld [vmem:[%s831 + $0xda] sm:$0xff]
        %v1203 = vld [vmem:[%s831 + $0xe2] sm:$0xff]
        %v1204 = vld [vmem:[%s831 + $0xf2] sm:$0xff]
        %v1205 = vld [vmem:[%s831 + $0xfa] sm:$0xff]
        %v1206 = vld [vmem:[%s831 + $0x10a] sm:$0xff]
        %v1207 = vld [vmem:[%s831 + $0x112] sm:$0xff]
        %v1208 = vld [vmem:[%s831 + $0x122] sm:$0xff]
        %v1209 = vld [vmem:[%s831 + $0x12a] sm:$0xff]
        %v1210 = vld [vmem:[%s831 + $0x13a] sm:$0xff]
        %v1211 = vld [vmem:[%s831 + $0x142] sm:$0xff]
        %v1212 = vld [vmem:[%s831 + $0x152] sm:$0xff]
        %v1213 = vld [vmem:[%s831 + $0x15a] sm:$0xff]
        %v1214 = vld [vmem:[%s831 + $0x16a] sm:$0xff]
        %v1215 = vld [vmem:[%s831 + $0x172] sm:$0xff]
        %1216 = vst [vmem:[#allocation3 + $0x28] sm:$0xff] %v1184
        %1217 = vst [vmem:[#allocation3 + $0x70] sm:$0xff] %v1185
        %1218 = vst [vmem:[#allocation3 + $0xb8] sm:$0xff] %v1186
        %1219 = vst [vmem:[#allocation3 + $0x100] sm:$0xff] %v1187
        %1220 = vst [vmem:[#allocation3 + $0x148] sm:$0xff] %v1188
        %1221 = vst [vmem:[#allocation3 + $0x190] sm:$0xff] %v1189
        %1222 = vst [vmem:[#allocation3 + $0x1d8] sm:$0xff] %v1190
        %1223 = vst [vmem:[#allocation3 + $0x220] sm:$0xff] %v1191
        %1224 = vst [vmem:[#allocation3 + $0x268] sm:$0xff] %v1192
        %1225 = vst [vmem:[#allocation3 + $0x2b0] sm:$0xff] %v1193
        %1226 = vst [vmem:[#allocation3 + $0x2f8] sm:$0xff] %v1194
        %1227 = vst [vmem:[#allocation3 + $0x340] sm:$0xff] %v1195
        %1228 = vst [vmem:[#allocation3 + $0x388] sm:$0xff] %v1196
        %1229 = vst [vmem:[#allocation3 + $0x3d0] sm:$0xff] %v1197
        %1230 = vst [vmem:[#allocation3 + $0x418] sm:$0xff] %v1198
        %1231 = vst [vmem:[#allocation3 + $0x460] sm:$0xff] %v1199
        %1232 = vst [vmem:[#allocation3 + $0x4a8] sm:$0xff] %v1200
        %1233 = vst [vmem:[#allocation3 + $0x4f0] sm:$0xff] %v1201
        %1234 = vst [vmem:[#allocation3 + $0x538] sm:$0xff] %v1202
        %1235 = vst [vmem:[#allocation3 + $0x580] sm:$0xff] %v1203
        %1236 = vst [vmem:[#allocation3 + $0x5c8] sm:$0xff] %v1204
        %1237 = vst [vmem:[#allocation3 + $0x610] sm:$0xff] %v1205
        %1238 = vst [vmem:[#allocation3 + $0x658] sm:$0xff] %v1206
        %1239 = vst [vmem:[#allocation3 + $0x6a0] sm:$0xff] %v1207
        %1240 = vst [vmem:[#allocation3 + $0x6e8] sm:$0xff] %v1208
        %1241 = vst [vmem:[#allocation3 + $0x730] sm:$0xff] %v1209
        %1242 = vst [vmem:[#allocation3 + $0x778] sm:$0xff] %v1210
        %1243 = vst [vmem:[#allocation3 + $0x7c0] sm:$0xff] %v1211
        %1244 = vst [vmem:[#allocation3 + $0x808] sm:$0xff] %v1212
        %1245 = vst [vmem:[#allocation3 + $0x850] sm:$0xff] %v1213
        %1246 = vst [vmem:[#allocation3 + $0x898] sm:$0xff] %v1214
        %1247 = vst [vmem:[#allocation3 + $0x8e0] sm:$0xff] %v1215
        %s1248 = scalar_lea.vmem [#allocation2], 48
        %v1249 = vld [vmem:[%s1248] sm:$0xff]
        %v1250 = vld [vmem:[%s1248 + $0x8] sm:$0xff]
        %v1251 = vld [vmem:[%s1248 + $0x18] sm:$0xff]
        %v1252 = vld [vmem:[%s1248 + $0x20] sm:$0xff]
        %v1253 = vld [vmem:[%s1248 + $0x30] sm:$0xff]
        %v1254 = vld [vmem:[%s1248 + $0x38] sm:$0xff]
        %v1255 = vld [vmem:[%s1248 + $0x48] sm:$0xff]
        %v1256 = vld [vmem:[%s1248 + $0x50] sm:$0xff]
        %v1257 = vld [vmem:[%s1248 + $0x60] sm:$0xff]
        %v1258 = vld [vmem:[%s1248 + $0x68] sm:$0xff]
        %v1259 = vld [vmem:[%s1248 + $0x78] sm:$0xff]
        %v1260 = vld [vmem:[%s1248 + $0x80] sm:$0xff]
        %v1261 = vld [vmem:[%s1248 + $0x90] sm:$0xff]
        %v1262 = vld [vmem:[%s1248 + $0x98] sm:$0xff]
        %v1263 = vld [vmem:[%s1248 + $0xa8] sm:$0xff]
        %v1264 = vld [vmem:[%s1248 + $0xb0] sm:$0xff]
        %v1265 = vld [vmem:[%s1248 + $0xc0] sm:$0xff]
        %v1266 = vld [vmem:[%s1248 + $0xc8] sm:$0xff]
        %v1267 = vld [vmem:[%s1248 + $0xd8] sm:$0xff]
        %v1268 = vld [vmem:[%s1248 + $0xe0] sm:$0xff]
        %v1269 = vld [vmem:[%s1248 + $0xf0] sm:$0xff]
        %v1270 = vld [vmem:[%s1248 + $0xf8] sm:$0xff]
        %v1271 = vld [vmem:[%s1248 + $0x108] sm:$0xff]
        %v1272 = vld [vmem:[%s1248 + $0x110] sm:$0xff]
        %v1273 = vld [vmem:[%s1248 + $0x120] sm:$0xff]
        %v1274 = vld [vmem:[%s1248 + $0x128] sm:$0xff]
        %v1275 = vld [vmem:[%s1248 + $0x138] sm:$0xff]
        %v1276 = vld [vmem:[%s1248 + $0x140] sm:$0xff]
        %v1277 = vld [vmem:[%s1248 + $0x150] sm:$0xff]
        %v1278 = vld [vmem:[%s1248 + $0x158] sm:$0xff]
        %v1279 = vld [vmem:[%s1248 + $0x168] sm:$0xff]
        %v1280 = vld [vmem:[%s1248 + $0x170] sm:$0xff]
        %1281 = vst [vmem:[#allocation3 + $0x30] sm:$0xff] %v1249
        %1282 = vst [vmem:[#allocation3 + $0x78] sm:$0xff] %v1250
        %1283 = vst [vmem:[#allocation3 + $0xc0] sm:$0xff] %v1251
        %1284 = vst [vmem:[#allocation3 + $0x108] sm:$0xff] %v1252
        %1285 = vst [vmem:[#allocation3 + $0x150] sm:$0xff] %v1253
        %1286 = vst [vmem:[#allocation3 + $0x198] sm:$0xff] %v1254
        %1287 = vst [vmem:[#allocation3 + $0x1e0] sm:$0xff] %v1255
        %1288 = vst [vmem:[#allocation3 + $0x228] sm:$0xff] %v1256
        %1289 = vst [vmem:[#allocation3 + $0x270] sm:$0xff] %v1257
        %1290 = vst [vmem:[#allocation3 + $0x2b8] sm:$0xff] %v1258
        %1291 = vst [vmem:[#allocation3 + $0x300] sm:$0xff] %v1259
        %1292 = vst [vmem:[#allocation3 + $0x348] sm:$0xff] %v1260
        %1293 = vst [vmem:[#allocation3 + $0x390] sm:$0xff] %v1261
        %1294 = vst [vmem:[#allocation3 + $0x3d8] sm:$0xff] %v1262
        %1295 = vst [vmem:[#allocation3 + $0x420] sm:$0xff] %v1263
        %1296 = vst [vmem:[#allocation3 + $0x468] sm:$0xff] %v1264
        %1297 = vst [vmem:[#allocation3 + $0x4b0] sm:$0xff] %v1265
        %1298 = vst [vmem:[#allocation3 + $0x4f8] sm:$0xff] %v1266
        %1299 = vst [vmem:[#allocation3 + $0x540] sm:$0xff] %v1267
        %1300 = vst [vmem:[#allocation3 + $0x588] sm:$0xff] %v1268
        %1301 = vst [vmem:[#allocation3 + $0x5d0] sm:$0xff] %v1269
        %1302 = vst [vmem:[#allocation3 + $0x618] sm:$0xff] %v1270
        %1303 = vst [vmem:[#allocation3 + $0x660] sm:$0xff] %v1271
        %1304 = vst [vmem:[#allocation3 + $0x6a8] sm:$0xff] %v1272
        %1305 = vst [vmem:[#allocation3 + $0x6f0] sm:$0xff] %v1273
        %1306 = vst [vmem:[#allocation3 + $0x738] sm:$0xff] %v1274
        %1307 = vst [vmem:[#allocation3 + $0x780] sm:$0xff] %v1275
        %1308 = vst [vmem:[#allocation3 + $0x7c8] sm:$0xff] %v1276
        %1309 = vst [vmem:[#allocation3 + $0x810] sm:$0xff] %v1277
        %1310 = vst [vmem:[#allocation3 + $0x858] sm:$0xff] %v1278
        %1311 = vst [vmem:[#allocation3 + $0x8a0] sm:$0xff] %v1279
        %1312 = vst [vmem:[#allocation3 + $0x8e8] sm:$0xff] %v1280
        %v1313 = vld [vmem:[%s1248 + $0x1] sm:$0xff]
        %v1314 = vld [vmem:[%s1248 + $0x9] sm:$0xff]
        %v1315 = vld [vmem:[%s1248 + $0x19] sm:$0xff]
        %v1316 = vld [vmem:[%s1248 + $0x21] sm:$0xff]
        %v1317 = vld [vmem:[%s1248 + $0x31] sm:$0xff]
        %v1318 = vld [vmem:[%s1248 + $0x39] sm:$0xff]
        %v1319 = vld [vmem:[%s1248 + $0x49] sm:$0xff]
        %v1320 = vld [vmem:[%s1248 + $0x51] sm:$0xff]
        %v1321 = vld [vmem:[%s1248 + $0x61] sm:$0xff]
        %v1322 = vld [vmem:[%s1248 + $0x69] sm:$0xff]
        %v1323 = vld [vmem:[%s1248 + $0x79] sm:$0xff]
        %v1324 = vld [vmem:[%s1248 + $0x81] sm:$0xff]
        %v1325 = vld [vmem:[%s1248 + $0x91] sm:$0xff]
        %v1326 = vld [vmem:[%s1248 + $0x99] sm:$0xff]
        %v1327 = vld [vmem:[%s1248 + $0xa9] sm:$0xff]
        %v1328 = vld [vmem:[%s1248 + $0xb1] sm:$0xff]
        %v1329 = vld [vmem:[%s1248 + $0xc1] sm:$0xff]
        %v1330 = vld [vmem:[%s1248 + $0xc9] sm:$0xff]
        %v1331 = vld [vmem:[%s1248 + $0xd9] sm:$0xff]
        %v1332 = vld [vmem:[%s1248 + $0xe1] sm:$0xff]
        %v1333 = vld [vmem:[%s1248 + $0xf1] sm:$0xff]
        %v1334 = vld [vmem:[%s1248 + $0xf9] sm:$0xff]
        %v1335 = vld [vmem:[%s1248 + $0x109] sm:$0xff]
        %v1336 = vld [vmem:[%s1248 + $0x111] sm:$0xff]
        %v1337 = vld [vmem:[%s1248 + $0x121] sm:$0xff]
        %v1338 = vld [vmem:[%s1248 + $0x129] sm:$0xff]
        %v1339 = vld [vmem:[%s1248 + $0x139] sm:$0xff]
        %v1340 = vld [vmem:[%s1248 + $0x141] sm:$0xff]
        %v1341 = vld [vmem:[%s1248 + $0x151] sm:$0xff]
        %v1342 = vld [vmem:[%s1248 + $0x159] sm:$0xff]
        %v1343 = vld [vmem:[%s1248 + $0x169] sm:$0xff]
        %v1344 = vld [vmem:[%s1248 + $0x171] sm:$0xff]
        %1345 = vst [vmem:[#allocation3 + $0x38] sm:$0xff] %v1313
        %1346 = vst [vmem:[#allocation3 + $0x80] sm:$0xff] %v1314
        %1347 = vst [vmem:[#allocation3 + $0xc8] sm:$0xff] %v1315
        %1348 = vst [vmem:[#allocation3 + $0x110] sm:$0xff] %v1316
        %1349 = vst [vmem:[#allocation3 + $0x158] sm:$0xff] %v1317
        %1350 = vst [vmem:[#allocation3 + $0x1a0] sm:$0xff] %v1318
        %1351 = vst [vmem:[#allocation3 + $0x1e8] sm:$0xff] %v1319
        %1352 = vst [vmem:[#allocation3 + $0x230] sm:$0xff] %v1320
        %1353 = vst [vmem:[#allocation3 + $0x278] sm:$0xff] %v1321
        %1354 = vst [vmem:[#allocation3 + $0x2c0] sm:$0xff] %v1322
        %1355 = vst [vmem:[#allocation3 + $0x308] sm:$0xff] %v1323
        %1356 = vst [vmem:[#allocation3 + $0x350] sm:$0xff] %v1324
        %1357 = vst [vmem:[#allocation3 + $0x398] sm:$0xff] %v1325
        %1358 = vst [vmem:[#allocation3 + $0x3e0] sm:$0xff] %v1326
        %1359 = vst [vmem:[#allocation3 + $0x428] sm:$0xff] %v1327
        %1360 = vst [vmem:[#allocation3 + $0x470] sm:$0xff] %v1328
        %1361 = vst [vmem:[#allocation3 + $0x4b8] sm:$0xff] %v1329
        %1362 = vst [vmem:[#allocation3 + $0x500] sm:$0xff] %v1330
        %1363 = vst [vmem:[#allocation3 + $0x548] sm:$0xff] %v1331
        %1364 = vst [vmem:[#allocation3 + $0x590] sm:$0xff] %v1332
        %1365 = vst [vmem:[#allocation3 + $0x5d8] sm:$0xff] %v1333
        %1366 = vst [vmem:[#allocation3 + $0x620] sm:$0xff] %v1334
        %1367 = vst [vmem:[#allocation3 + $0x668] sm:$0xff] %v1335
        %1368 = vst [vmem:[#allocation3 + $0x6b0] sm:$0xff] %v1336
        %1369 = vst [vmem:[#allocation3 + $0x6f8] sm:$0xff] %v1337
        %1370 = vst [vmem:[#allocation3 + $0x740] sm:$0xff] %v1338
        %1371 = vst [vmem:[#allocation3 + $0x788] sm:$0xff] %v1339
        %1372 = vst [vmem:[#allocation3 + $0x7d0] sm:$0xff] %v1340
        %1373 = vst [vmem:[#allocation3 + $0x818] sm:$0xff] %v1341
        %1374 = vst [vmem:[#allocation3 + $0x860] sm:$0xff] %v1342
        %1375 = vst [vmem:[#allocation3 + $0x8a8] sm:$0xff] %v1343
        %1376 = vst [vmem:[#allocation3 + $0x8f0] sm:$0xff] %v1344
        %v1377 = vld [vmem:[%s1248 + $0x2] sm:$0xff]
        %v1378 = vld [vmem:[%s1248 + $0xa] sm:$0xff]
        %v1379 = vld [vmem:[%s1248 + $0x1a] sm:$0xff]
        %v1380 = vld [vmem:[%s1248 + $0x22] sm:$0xff]
        %v1381 = vld [vmem:[%s1248 + $0x32] sm:$0xff]
        %v1382 = vld [vmem:[%s1248 + $0x3a] sm:$0xff]
        %v1383 = vld [vmem:[%s1248 + $0x4a] sm:$0xff]
        %v1384 = vld [vmem:[%s1248 + $0x52] sm:$0xff]
        %v1385 = vld [vmem:[%s1248 + $0x62] sm:$0xff]
        %v1386 = vld [vmem:[%s1248 + $0x6a] sm:$0xff]
        %v1387 = vld [vmem:[%s1248 + $0x7a] sm:$0xff]
        %v1388 = vld [vmem:[%s1248 + $0x82] sm:$0xff]
        %v1389 = vld [vmem:[%s1248 + $0x92] sm:$0xff]
        %v1390 = vld [vmem:[%s1248 + $0x9a] sm:$0xff]
        %v1391 = vld [vmem:[%s1248 + $0xaa] sm:$0xff]
        %v1392 = vld [vmem:[%s1248 + $0xb2] sm:$0xff]
        %v1393 = vld [vmem:[%s1248 + $0xc2] sm:$0xff]
        %v1394 = vld [vmem:[%s1248 + $0xca] sm:$0xff]
        %v1395 = vld [vmem:[%s1248 + $0xda] sm:$0xff]
        %v1396 = vld [vmem:[%s1248 + $0xe2] sm:$0xff]
        %v1397 = vld [vmem:[%s1248 + $0xf2] sm:$0xff]
        %v1398 = vld [vmem:[%s1248 + $0xfa] sm:$0xff]
        %v1399 = vld [vmem:[%s1248 + $0x10a] sm:$0xff]
        %v1400 = vld [vmem:[%s1248 + $0x112] sm:$0xff]
        %v1401 = vld [vmem:[%s1248 + $0x122] sm:$0xff]
        %v1402 = vld [vmem:[%s1248 + $0x12a] sm:$0xff]
        %v1403 = vld [vmem:[%s1248 + $0x13a] sm:$0xff]
        %v1404 = vld [vmem:[%s1248 + $0x142] sm:$0xff]
        %v1405 = vld [vmem:[%s1248 + $0x152] sm:$0xff]
        %v1406 = vld [vmem:[%s1248 + $0x15a] sm:$0xff]
        %v1407 = vld [vmem:[%s1248 + $0x16a] sm:$0xff]
        %v1408 = vld [vmem:[%s1248 + $0x172] sm:$0xff]
        %1409 = vst [vmem:[#allocation3 + $0x40] sm:$0xff] %v1377
        %1410 = vst [vmem:[#allocation3 + $0x88] sm:$0xff] %v1378
        %1411 = vst [vmem:[#allocation3 + $0xd0] sm:$0xff] %v1379
        %1412 = vst [vmem:[#allocation3 + $0x118] sm:$0xff] %v1380
        %1413 = vst [vmem:[#allocation3 + $0x160] sm:$0xff] %v1381
        %1414 = vst [vmem:[#allocation3 + $0x1a8] sm:$0xff] %v1382
        %1415 = vst [vmem:[#allocation3 + $0x1f0] sm:$0xff] %v1383
        %1416 = vst [vmem:[#allocation3 + $0x238] sm:$0xff] %v1384
        %1417 = vst [vmem:[#allocation3 + $0x280] sm:$0xff] %v1385
        %1418 = vst [vmem:[#allocation3 + $0x2c8] sm:$0xff] %v1386
        %1419 = vst [vmem:[#allocation3 + $0x310] sm:$0xff] %v1387
        %1420 = vst [vmem:[#allocation3 + $0x358] sm:$0xff] %v1388
        %1421 = vst [vmem:[#allocation3 + $0x3a0] sm:$0xff] %v1389
        %1422 = vst [vmem:[#allocation3 + $0x3e8] sm:$0xff] %v1390
        %1423 = vst [vmem:[#allocation3 + $0x430] sm:$0xff] %v1391
        %1424 = vst [vmem:[#allocation3 + $0x478] sm:$0xff] %v1392
        %1425 = vst [vmem:[#allocation3 + $0x4c0] sm:$0xff] %v1393
        %1426 = vst [vmem:[#allocation3 + $0x508] sm:$0xff] %v1394
        %1427 = vst [vmem:[#allocation3 + $0x550] sm:$0xff] %v1395
        %1428 = vst [vmem:[#allocation3 + $0x598] sm:$0xff] %v1396
        %1429 = vst [vmem:[#allocation3 + $0x5e0] sm:$0xff] %v1397
        %1430 = vst [vmem:[#allocation3 + $0x628] sm:$0xff] %v1398
        %1431 = vst [vmem:[#allocation3 + $0x670] sm:$0xff] %v1399
        %1432 = vst [vmem:[#allocation3 + $0x6b8] sm:$0xff] %v1400
        %1433 = vst [vmem:[#allocation3 + $0x700] sm:$0xff] %v1401
        %1434 = vst [vmem:[#allocation3 + $0x748] sm:$0xff] %v1402
        %1435 = vst [vmem:[#allocation3 + $0x790] sm:$0xff] %v1403
        %1436 = vst [vmem:[#allocation3 + $0x7d8] sm:$0xff] %v1404
        %1437 = vst [vmem:[#allocation3 + $0x820] sm:$0xff] %v1405
        %1438 = vst [vmem:[#allocation3 + $0x868] sm:$0xff] %v1406
        %1439 = vst [vmem:[#allocation3 + $0x8b0] sm:$0xff] %v1407
        %1440 = vst [vmem:[#allocation3 + $0x8f8] sm:$0xff] %v1408
        %v1441 = vld [vmem:[#allocation3] sm:$0xff]
        %v1442 = vld [vmem:[#allocation3 + $0x8] sm:$0xff]
        %v1443 = vld [vmem:[#allocation3 + $0x10] sm:$0xff]
        %v1444 = vld [vmem:[#allocation3 + $0x18] sm:$0xff]
        %v1445 = vld [vmem:[#allocation3 + $0x20] sm:$0xff]
        %v1446 = vld [vmem:[#allocation3 + $0x28] sm:$0xff]
        %v1447 = vld [vmem:[#allocation3 + $0x30] sm:$0xff]
        %v1448 = vld [vmem:[#allocation3 + $0x38] sm:$0xff]
        %v1449 = vld [vmem:[#allocation3 + $0x40] sm:$0xff]
        %v1450 = vld [vmem:[#allocation3 + $0x48] sm:$0xff]
        %v1451 = vld [vmem:[#allocation3 + $0x50] sm:$0xff]
        %v1452 = vld [vmem:[#allocation3 + $0x58] sm:$0xff]
        %v1453 = vld [vmem:[#allocation3 + $0x60] sm:$0xff]
        %v1454 = vld [vmem:[#allocation3 + $0x68] sm:$0xff]
        %v1455 = vld [vmem:[#allocation3 + $0x70] sm:$0xff]
        %v1456 = vld [vmem:[#allocation3 + $0x78] sm:$0xff]
        %v1457 = vld [vmem:[#allocation3 + $0x80] sm:$0xff]
        %v1458 = vld [vmem:[#allocation3 + $0x88] sm:$0xff]
        %v1459 = vld [vmem:[#allocation3 + $0x90] sm:$0xff]
        %v1460 = vld [vmem:[#allocation3 + $0x98] sm:$0xff]
        %v1461 = vld [vmem:[#allocation3 + $0xa0] sm:$0xff]
        %v1462 = vld [vmem:[#allocation3 + $0xa8] sm:$0xff]
        %v1463 = vld [vmem:[#allocation3 + $0xb0] sm:$0xff]
        %v1464 = vld [vmem:[#allocation3 + $0xb8] sm:$0xff]
        %v1465 = vld [vmem:[#allocation3 + $0xc0] sm:$0xff]
        %v1466 = vld [vmem:[#allocation3 + $0xc8] sm:$0xff]
        %v1467 = vld [vmem:[#allocation3 + $0xd0] sm:$0xff]
        %v1468 = vld [vmem:[#allocation3 + $0xd8] sm:$0xff]
        %v1469 = vld [vmem:[#allocation3 + $0xe0] sm:$0xff]
        %v1470 = vld [vmem:[#allocation3 + $0xe8] sm:$0xff]
        %v1471 = vld [vmem:[#allocation3 + $0xf0] sm:$0xff]
        %v1472 = vld [vmem:[#allocation3 + $0xf8] sm:$0xff]
        %v1473 = vld [vmem:[#allocation3 + $0x100] sm:$0xff]
        %v1474 = vld [vmem:[#allocation3 + $0x108] sm:$0xff]
        %v1475 = vld [vmem:[#allocation3 + $0x110] sm:$0xff]
        %v1476 = vld [vmem:[#allocation3 + $0x118] sm:$0xff]
        %v1477 = vld [vmem:[#allocation3 + $0x120] sm:$0xff]
        %v1478 = vld [vmem:[#allocation3 + $0x128] sm:$0xff]
        %v1479 = vld [vmem:[#allocation3 + $0x130] sm:$0xff]
        %v1480 = vld [vmem:[#allocation3 + $0x138] sm:$0xff]
        %v1481 = vld [vmem:[#allocation3 + $0x140] sm:$0xff]
        %v1482 = vld [vmem:[#allocation3 + $0x148] sm:$0xff]
        %v1483 = vld [vmem:[#allocation3 + $0x150] sm:$0xff]
        %v1484 = vld [vmem:[#allocation3 + $0x158] sm:$0xff]
        %v1485 = vld [vmem:[#allocation3 + $0x160] sm:$0xff]
        %v1486 = vld [vmem:[#allocation3 + $0x168] sm:$0xff]
        %v1487 = vld [vmem:[#allocation3 + $0x170] sm:$0xff]
        %v1488 = vld [vmem:[#allocation3 + $0x178] sm:$0xff]
        %v1489 = vld [vmem:[#allocation3 + $0x180] sm:$0xff]
        %v1490 = vld [vmem:[#allocation3 + $0x188] sm:$0xff]
        %v1491 = vld [vmem:[#allocation3 + $0x190] sm:$0xff]
        %v1492 = vld [vmem:[#allocation3 + $0x198] sm:$0xff]
        %v1493 = vld [vmem:[#allocation3 + $0x1a0] sm:$0xff]
        %v1494 = vld [vmem:[#allocation3 + $0x1a8] sm:$0xff]
        %v1495 = vld [vmem:[#allocation3 + $0x1b0] sm:$0xff]
        %v1496 = vld [vmem:[#allocation3 + $0x1b8] sm:$0xff]
        %v1497 = vld [vmem:[#allocation3 + $0x1c0] sm:$0xff]
        %v1498 = vld [vmem:[#allocation3 + $0x1c8] sm:$0xff]
        %v1499 = vld [vmem:[#allocation3 + $0x1d0] sm:$0xff]
        %v1500 = vld [vmem:[#allocation3 + $0x1d8] sm:$0xff]
        %v1501 = vld [vmem:[#allocation3 + $0x1e0] sm:$0xff]
        %v1502 = vld [vmem:[#allocation3 + $0x1e8] sm:$0xff]
        %v1503 = vld [vmem:[#allocation3 + $0x1f0] sm:$0xff]
        %v1504 = vld [vmem:[#allocation3 + $0x1f8] sm:$0xff]
        %v1505 = vld [vmem:[#allocation3 + $0x200] sm:$0xff]
        %v1506 = vld [vmem:[#allocation3 + $0x208] sm:$0xff]
        %v1507 = vld [vmem:[#allocation3 + $0x210] sm:$0xff]
        %v1508 = vld [vmem:[#allocation3 + $0x218] sm:$0xff]
        %v1509 = vld [vmem:[#allocation3 + $0x220] sm:$0xff]
        %v1510 = vld [vmem:[#allocation3 + $0x228] sm:$0xff]
        %v1511 = vld [vmem:[#allocation3 + $0x230] sm:$0xff]
        %v1512 = vld [vmem:[#allocation3 + $0x238] sm:$0xff]
        %v1513 = vld [vmem:[#allocation3 + $0x240] sm:$0xff]
        %v1514 = vld [vmem:[#allocation3 + $0x248] sm:$0xff]
        %v1515 = vld [vmem:[#allocation3 + $0x250] sm:$0xff]
        %v1516 = vld [vmem:[#allocation3 + $0x258] sm:$0xff]
        %v1517 = vld [vmem:[#allocation3 + $0x260] sm:$0xff]
        %v1518 = vld [vmem:[#allocation3 + $0x268] sm:$0xff]
        %v1519 = vld [vmem:[#allocation3 + $0x270] sm:$0xff]
        %v1520 = vld [vmem:[#allocation3 + $0x278] sm:$0xff]
        %v1521 = vld [vmem:[#allocation3 + $0x280] sm:$0xff]
        %v1522 = vld [vmem:[#allocation3 + $0x288] sm:$0xff]
        %v1523 = vld [vmem:[#allocation3 + $0x290] sm:$0xff]
        %v1524 = vld [vmem:[#allocation3 + $0x298] sm:$0xff]
        %v1525 = vld [vmem:[#allocation3 + $0x2a0] sm:$0xff]
        %v1526 = vld [vmem:[#allocation3 + $0x2a8] sm:$0xff]
        %v1527 = vld [vmem:[#allocation3 + $0x2b0] sm:$0xff]
        %v1528 = vld [vmem:[#allocation3 + $0x2b8] sm:$0xff]
        %v1529 = vld [vmem:[#allocation3 + $0x2c0] sm:$0xff]
        %v1530 = vld [vmem:[#allocation3 + $0x2c8] sm:$0xff]
        %v1531 = vld [vmem:[#allocation3 + $0x2d0] sm:$0xff]
        %v1532 = vld [vmem:[#allocation3 + $0x2d8] sm:$0xff]
        %v1533 = vld [vmem:[#allocation3 + $0x2e0] sm:$0xff]
        %v1534 = vld [vmem:[#allocation3 + $0x2e8] sm:$0xff]
        %v1535 = vld [vmem:[#allocation3 + $0x2f0] sm:$0xff]
        %v1536 = vld [vmem:[#allocation3 + $0x2f8] sm:$0xff]
        %v1537 = vld [vmem:[#allocation3 + $0x300] sm:$0xff]
        %v1538 = vld [vmem:[#allocation3 + $0x308] sm:$0xff]
        %v1539 = vld [vmem:[#allocation3 + $0x310] sm:$0xff]
        %v1540 = vld [vmem:[#allocation3 + $0x318] sm:$0xff]
        %v1541 = vld [vmem:[#allocation3 + $0x320] sm:$0xff]
        %v1542 = vld [vmem:[#allocation3 + $0x328] sm:$0xff]
        %v1543 = vld [vmem:[#allocation3 + $0x330] sm:$0xff]
        %v1544 = vld [vmem:[#allocation3 + $0x338] sm:$0xff]
        %v1545 = vld [vmem:[#allocation3 + $0x340] sm:$0xff]
        %v1546 = vld [vmem:[#allocation3 + $0x348] sm:$0xff]
        %v1547 = vld [vmem:[#allocation3 + $0x350] sm:$0xff]
        %v1548 = vld [vmem:[#allocation3 + $0x358] sm:$0xff]
        %v1549 = vld [vmem:[#allocation3 + $0x360] sm:$0xff]
        %v1550 = vld [vmem:[#allocation3 + $0x368] sm:$0xff]
        %v1551 = vld [vmem:[#allocation3 + $0x370] sm:$0xff]
        %v1552 = vld [vmem:[#allocation3 + $0x378] sm:$0xff]
        %v1553 = vld [vmem:[#allocation3 + $0x380] sm:$0xff]
        %v1554 = vld [vmem:[#allocation3 + $0x388] sm:$0xff]
        %v1555 = vld [vmem:[#allocation3 + $0x390] sm:$0xff]
        %v1556 = vld [vmem:[#allocation3 + $0x398] sm:$0xff]
        %v1557 = vld [vmem:[#allocation3 + $0x3a0] sm:$0xff]
        %v1558 = vld [vmem:[#allocation3 + $0x3a8] sm:$0xff]
        %v1559 = vld [vmem:[#allocation3 + $0x3b0] sm:$0xff]
        %v1560 = vld [vmem:[#allocation3 + $0x3b8] sm:$0xff]
        %v1561 = vld [vmem:[#allocation3 + $0x3c0] sm:$0xff]
        %v1562 = vld [vmem:[#allocation3 + $0x3c8] sm:$0xff]
        %v1563 = vld [vmem:[#allocation3 + $0x3d0] sm:$0xff]
        %v1564 = vld [vmem:[#allocation3 + $0x3d8] sm:$0xff]
        %v1565 = vld [vmem:[#allocation3 + $0x3e0] sm:$0xff]
        %v1566 = vld [vmem:[#allocation3 + $0x3e8] sm:$0xff]
        %v1567 = vld [vmem:[#allocation3 + $0x3f0] sm:$0xff]
        %v1568 = vld [vmem:[#allocation3 + $0x3f8] sm:$0xff]
        %v1569 = vld [vmem:[#allocation3 + $0x400] sm:$0xff]
        %v1570 = vld [vmem:[#allocation3 + $0x408] sm:$0xff]
        %v1571 = vld [vmem:[#allocation3 + $0x410] sm:$0xff]
        %v1572 = vld [vmem:[#allocation3 + $0x418] sm:$0xff]
        %v1573 = vld [vmem:[#allocation3 + $0x420] sm:$0xff]
        %v1574 = vld [vmem:[#allocation3 + $0x428] sm:$0xff]
        %v1575 = vld [vmem:[#allocation3 + $0x430] sm:$0xff]
        %v1576 = vld [vmem:[#allocation3 + $0x438] sm:$0xff]
        %v1577 = vld [vmem:[#allocation3 + $0x440] sm:$0xff]
        %v1578 = vld [vmem:[#allocation3 + $0x448] sm:$0xff]
        %v1579 = vld [vmem:[#allocation3 + $0x450] sm:$0xff]
        %v1580 = vld [vmem:[#allocation3 + $0x458] sm:$0xff]
        %v1581 = vld [vmem:[#allocation3 + $0x460] sm:$0xff]
        %v1582 = vld [vmem:[#allocation3 + $0x468] sm:$0xff]
        %v1583 = vld [vmem:[#allocation3 + $0x470] sm:$0xff]
        %v1584 = vld [vmem:[#allocation3 + $0x478] sm:$0xff]
        %v1585 = vld [vmem:[#allocation3 + $0x480] sm:$0xff]
        %v1586 = vld [vmem:[#allocation3 + $0x488] sm:$0xff]
        %v1587 = vld [vmem:[#allocation3 + $0x490] sm:$0xff]
        %v1588 = vld [vmem:[#allocation3 + $0x498] sm:$0xff]
        %v1589 = vld [vmem:[#allocation3 + $0x4a0] sm:$0xff]
        %v1590 = vld [vmem:[#allocation3 + $0x4a8] sm:$0xff]
        %v1591 = vld [vmem:[#allocation3 + $0x4b0] sm:$0xff]
        %v1592 = vld [vmem:[#allocation3 + $0x4b8] sm:$0xff]
        %v1593 = vld [vmem:[#allocation3 + $0x4c0] sm:$0xff]
        %v1594 = vld [vmem:[#allocation3 + $0x4c8] sm:$0xff]
        %v1595 = vld [vmem:[#allocation3 + $0x4d0] sm:$0xff]
        %v1596 = vld [vmem:[#allocation3 + $0x4d8] sm:$0xff]
        %v1597 = vld [vmem:[#allocation3 + $0x4e0] sm:$0xff]
        %v1598 = vld [vmem:[#allocation3 + $0x4e8] sm:$0xff]
        %v1599 = vld [vmem:[#allocation3 + $0x4f0] sm:$0xff]
        %v1600 = vld [vmem:[#allocation3 + $0x4f8] sm:$0xff]
        %v1601 = vld [vmem:[#allocation3 + $0x500] sm:$0xff]
        %v1602 = vld [vmem:[#allocation3 + $0x508] sm:$0xff]
        %v1603 = vld [vmem:[#allocation3 + $0x510] sm:$0xff]
        %v1604 = vld [vmem:[#allocation3 + $0x518] sm:$0xff]
        %v1605 = vld [vmem:[#allocation3 + $0x520] sm:$0xff]
        %v1606 = vld [vmem:[#allocation3 + $0x528] sm:$0xff]
        %v1607 = vld [vmem:[#allocation3 + $0x530] sm:$0xff]
        %v1608 = vld [vmem:[#allocation3 + $0x538] sm:$0xff]
        %v1609 = vld [vmem:[#allocation3 + $0x540] sm:$0xff]
        %v1610 = vld [vmem:[#allocation3 + $0x548] sm:$0xff]
        %v1611 = vld [vmem:[#allocation3 + $0x550] sm:$0xff]
        %v1612 = vld [vmem:[#allocation3 + $0x558] sm:$0xff]
        %v1613 = vld [vmem:[#allocation3 + $0x560] sm:$0xff]
        %v1614 = vld [vmem:[#allocation3 + $0x568] sm:$0xff]
        %v1615 = vld [vmem:[#allocation3 + $0x570] sm:$0xff]
        %v1616 = vld [vmem:[#allocation3 + $0x578] sm:$0xff]
        %v1617 = vld [vmem:[#allocation3 + $0x580] sm:$0xff]
        %v1618 = vld [vmem:[#allocation3 + $0x588] sm:$0xff]
        %v1619 = vld [vmem:[#allocation3 + $0x590] sm:$0xff]
        %v1620 = vld [vmem:[#allocation3 + $0x598] sm:$0xff]
        %v1621 = vld [vmem:[#allocation3 + $0x5a0] sm:$0xff]
        %v1622 = vld [vmem:[#allocation3 + $0x5a8] sm:$0xff]
        %v1623 = vld [vmem:[#allocation3 + $0x5b0] sm:$0xff]
        %v1624 = vld [vmem:[#allocation3 + $0x5b8] sm:$0xff]
        %v1625 = vld [vmem:[#allocation3 + $0x5c0] sm:$0xff]
        %v1626 = vld [vmem:[#allocation3 + $0x5c8] sm:$0xff]
        %v1627 = vld [vmem:[#allocation3 + $0x5d0] sm:$0xff]
        %v1628 = vld [vmem:[#allocation3 + $0x5d8] sm:$0xff]
        %v1629 = vld [vmem:[#allocation3 + $0x5e0] sm:$0xff]
        %v1630 = vld [vmem:[#allocation3 + $0x5e8] sm:$0xff]
        %v1631 = vld [vmem:[#allocation3 + $0x5f0] sm:$0xff]
        %v1632 = vld [vmem:[#allocation3 + $0x5f8] sm:$0xff]
        %v1633 = vld [vmem:[#allocation3 + $0x600] sm:$0xff]
        %v1634 = vld [vmem:[#allocation3 + $0x608] sm:$0xff]
        %v1635 = vld [vmem:[#allocation3 + $0x610] sm:$0xff]
        %v1636 = vld [vmem:[#allocation3 + $0x618] sm:$0xff]
        %v1637 = vld [vmem:[#allocation3 + $0x620] sm:$0xff]
        %v1638 = vld [vmem:[#allocation3 + $0x628] sm:$0xff]
        %v1639 = vld [vmem:[#allocation3 + $0x630] sm:$0xff]
        %v1640 = vld [vmem:[#allocation3 + $0x638] sm:$0xff]
        %v1641 = vld [vmem:[#allocation3 + $0x640] sm:$0xff]
        %v1642 = vld [vmem:[#allocation3 + $0x648] sm:$0xff]
        %v1643 = vld [vmem:[#allocation3 + $0x650] sm:$0xff]
        %v1644 = vld [vmem:[#allocation3 + $0x658] sm:$0xff]
        %v1645 = vld [vmem:[#allocation3 + $0x660] sm:$0xff]
        %v1646 = vld [vmem:[#allocation3 + $0x668] sm:$0xff]
        %v1647 = vld [vmem:[#allocation3 + $0x670] sm:$0xff]
        %v1648 = vld [vmem:[#allocation3 + $0x678] sm:$0xff]
        %v1649 = vld [vmem:[#allocation3 + $0x680] sm:$0xff]
        %v1650 = vld [vmem:[#allocation3 + $0x688] sm:$0xff]
        %v1651 = vld [vmem:[#allocation3 + $0x690] sm:$0xff]
        %v1652 = vld [vmem:[#allocation3 + $0x698] sm:$0xff]
        %v1653 = vld [vmem:[#allocation3 + $0x6a0] sm:$0xff]
        %v1654 = vld [vmem:[#allocation3 + $0x6a8] sm:$0xff]
        %v1655 = vld [vmem:[#allocation3 + $0x6b0] sm:$0xff]
        %v1656 = vld [vmem:[#allocation3 + $0x6b8] sm:$0xff]
        %v1657 = vld [vmem:[#allocation3 + $0x6c0] sm:$0xff]
        %v1658 = vld [vmem:[#allocation3 + $0x6c8] sm:$0xff]
        %v1659 = vld [vmem:[#allocation3 + $0x6d0] sm:$0xff]
        %v1660 = vld [vmem:[#allocation3 + $0x6d8] sm:$0xff]
        %v1661 = vld [vmem:[#allocation3 + $0x6e0] sm:$0xff]
        %v1662 = vld [vmem:[#allocation3 + $0x6e8] sm:$0xff]
        %v1663 = vld [vmem:[#allocation3 + $0x6f0] sm:$0xff]
        %v1664 = vld [vmem:[#allocation3 + $0x6f8] sm:$0xff]
        %v1665 = vld [vmem:[#allocation3 + $0x700] sm:$0xff]
        %v1666 = vld [vmem:[#allocation3 + $0x708] sm:$0xff]
        %v1667 = vld [vmem:[#allocation3 + $0x710] sm:$0xff]
        %v1668 = vld [vmem:[#allocation3 + $0x718] sm:$0xff]
        %v1669 = vld [vmem:[#allocation3 + $0x720] sm:$0xff]
        %v1670 = vld [vmem:[#allocation3 + $0x728] sm:$0xff]
        %v1671 = vld [vmem:[#allocation3 + $0x730] sm:$0xff]
        %v1672 = vld [vmem:[#allocation3 + $0x738] sm:$0xff]
        %v1673 = vld [vmem:[#allocation3 + $0x740] sm:$0xff]
        %v1674 = vld [vmem:[#allocation3 + $0x748] sm:$0xff]
        %v1675 = vld [vmem:[#allocation3 + $0x750] sm:$0xff]
        %v1676 = vld [vmem:[#allocation3 + $0x758] sm:$0xff]
        %v1677 = vld [vmem:[#allocation3 + $0x760] sm:$0xff]
        %v1678 = vld [vmem:[#allocation3 + $0x768] sm:$0xff]
        %v1679 = vld [vmem:[#allocation3 + $0x770] sm:$0xff]
        %v1680 = vld [vmem:[#allocation3 + $0x778] sm:$0xff]
        %v1681 = vld [vmem:[#allocation3 + $0x780] sm:$0xff]
        %v1682 = vld [vmem:[#allocation3 + $0x788] sm:$0xff]
        %v1683 = vld [vmem:[#allocation3 + $0x790] sm:$0xff]
        %v1684 = vld [vmem:[#allocation3 + $0x798] sm:$0xff]
        %v1685 = vld [vmem:[#allocation3 + $0x7a0] sm:$0xff]
        %v1686 = vld [vmem:[#allocation3 + $0x7a8] sm:$0xff]
        %v1687 = vld [vmem:[#allocation3 + $0x7b0] sm:$0xff]
        %v1688 = vld [vmem:[#allocation3 + $0x7b8] sm:$0xff]
        %v1689 = vld [vmem:[#allocation3 + $0x7c0] sm:$0xff]
        %v1690 = vld [vmem:[#allocation3 + $0x7c8] sm:$0xff]
        %v1691 = vld [vmem:[#allocation3 + $0x7d0] sm:$0xff]
        %v1692 = vld [vmem:[#allocation3 + $0x7d8] sm:$0xff]
        %v1693 = vld [vmem:[#allocation3 + $0x7e0] sm:$0xff]
        %v1694 = vld [vmem:[#allocation3 + $0x7e8] sm:$0xff]
        %v1695 = vld [vmem:[#allocation3 + $0x7f0] sm:$0xff]
        %v1696 = vld [vmem:[#allocation3 + $0x7f8] sm:$0xff]
        %v1697 = vld [vmem:[#allocation3 + $0x800] sm:$0xff]
        %v1698 = vld [vmem:[#allocation3 + $0x808] sm:$0xff]
        %v1699 = vld [vmem:[#allocation3 + $0x810] sm:$0xff]
        %v1700 = vld [vmem:[#allocation3 + $0x818] sm:$0xff]
        %v1701 = vld [vmem:[#allocation3 + $0x820] sm:$0xff]
        %v1702 = vld [vmem:[#allocation3 + $0x828] sm:$0xff]
        %v1703 = vld [vmem:[#allocation3 + $0x830] sm:$0xff]
        %v1704 = vld [vmem:[#allocation3 + $0x838] sm:$0xff]
        %v1705 = vld [vmem:[#allocation3 + $0x840] sm:$0xff]
        %v1706 = vld [vmem:[#allocation3 + $0x848] sm:$0xff]
        %v1707 = vld [vmem:[#allocation3 + $0x850] sm:$0xff]
        %v1708 = vld [vmem:[#allocation3 + $0x858] sm:$0xff]
        %v1709 = vld [vmem:[#allocation3 + $0x860] sm:$0xff]
        %v1710 = vld [vmem:[#allocation3 + $0x868] sm:$0xff]
        %v1711 = vld [vmem:[#allocation3 + $0x870] sm:$0xff]
        %v1712 = vld [vmem:[#allocation3 + $0x878] sm:$0xff]
        %v1713 = vld [vmem:[#allocation3 + $0x880] sm:$0xff]
        %v1714 = vld [vmem:[#allocation3 + $0x888] sm:$0xff]
        %v1715 = vld [vmem:[#allocation3 + $0x890] sm:$0xff]
        %v1716 = vld [vmem:[#allocation3 + $0x898] sm:$0xff]
        %v1717 = vld [vmem:[#allocation3 + $0x8a0] sm:$0xff]
        %v1718 = vld [vmem:[#allocation3 + $0x8a8] sm:$0xff]
        %v1719 = vld [vmem:[#allocation3 + $0x8b0] sm:$0xff]
        %v1720 = vld [vmem:[#allocation3 + $0x8b8] sm:$0xff]
        %v1721 = vld [vmem:[#allocation3 + $0x8c0] sm:$0xff]
        %v1722 = vld [vmem:[#allocation3 + $0x8c8] sm:$0xff]
        %v1723 = vld [vmem:[#allocation3 + $0x8d0] sm:$0xff]
        %v1724 = vld [vmem:[#allocation3 + $0x8d8] sm:$0xff]
        %v1725 = vld [vmem:[#allocation3 + $0x8e0] sm:$0xff]
        %v1726 = vld [vmem:[#allocation3 + $0x8e8] sm:$0xff]
        %v1727 = vld [vmem:[#allocation3 + $0x8f0] sm:$0xff]
        %v1728 = vld [vmem:[#allocation3 + $0x8f8] sm:$0xff]
        %v1729 = vld [vmem:[#allocation4] sm:$0xff]
        %v1730 = vld [vmem:[#allocation4 + $0x8] sm:$0xff]
        %v1731 = vld [vmem:[#allocation4 + $0x10] sm:$0xff]
        %v1732 = vld [vmem:[#allocation4 + $0x18] sm:$0xff]
        %v1733 = vld [vmem:[#allocation4 + $0x20] sm:$0xff]
        %v1734 = vld [vmem:[#allocation4 + $0x28] sm:$0xff]
        %v1735 = vld [vmem:[#allocation4 + $0x30] sm:$0xff]
        %v1736 = vld [vmem:[#allocation4 + $0x38] sm:$0xff]
        %v1737 = vld [vmem:[#allocation4 + $0x40] sm:$0xff]
        %v1738 = vld [vmem:[#allocation4 + $0x48] sm:$0xff]
        %v1739 = vld [vmem:[#allocation4 + $0x50] sm:$0xff]
        %v1740 = vld [vmem:[#allocation4 + $0x58] sm:$0xff]
        %v1741 = vld [vmem:[#allocation4 + $0x60] sm:$0xff]
        %v1742 = vld [vmem:[#allocation4 + $0x68] sm:$0xff]
        %v1743 = vld [vmem:[#allocation4 + $0x70] sm:$0xff]
        %v1744 = vld [vmem:[#allocation4 + $0x78] sm:$0xff]
        %v1745 = vld [vmem:[#allocation4 + $0x80] sm:$0xff]
        %v1746 = vld [vmem:[#allocation4 + $0x88] sm:$0xff]
        %v1747 = vld [vmem:[#allocation4 + $0x90] sm:$0xff]
        %v1748 = vld [vmem:[#allocation4 + $0x98] sm:$0xff]
        %v1749 = vld [vmem:[#allocation4 + $0xa0] sm:$0xff]
        %v1750 = vld [vmem:[#allocation4 + $0xa8] sm:$0xff]
        %v1751 = vld [vmem:[#allocation4 + $0xb0] sm:$0xff]
        %v1752 = vld [vmem:[#allocation4 + $0xb8] sm:$0xff]
        %v1753 = vld [vmem:[#allocation4 + $0xc0] sm:$0xff]
        %v1754 = vld [vmem:[#allocation4 + $0xc8] sm:$0xff]
        %v1755 = vld [vmem:[#allocation4 + $0xd0] sm:$0xff]
        %v1756 = vld [vmem:[#allocation4 + $0xd8] sm:$0xff]
        %v1757 = vld [vmem:[#allocation4 + $0xe0] sm:$0xff]
        %v1758 = vld [vmem:[#allocation4 + $0xe8] sm:$0xff]
        %v1759 = vld [vmem:[#allocation4 + $0xf0] sm:$0xff]
        %v1760 = vld [vmem:[#allocation4 + $0xf8] sm:$0xff]
        %v1761 = vld [vmem:[#allocation4 + $0x100] sm:$0xff]
        %v1762 = vld [vmem:[#allocation4 + $0x108] sm:$0xff]
        %v1763 = vld [vmem:[#allocation4 + $0x110] sm:$0xff]
        %v1764 = vld [vmem:[#allocation4 + $0x118] sm:$0xff]
        %v1765 = vld [vmem:[#allocation4 + $0x120] sm:$0xff]
        %v1766 = vld [vmem:[#allocation4 + $0x128] sm:$0xff]
        %v1767 = vld [vmem:[#allocation4 + $0x130] sm:$0xff]
        %v1768 = vld [vmem:[#allocation4 + $0x138] sm:$0xff]
        %v1769 = vld [vmem:[#allocation4 + $0x140] sm:$0xff]
        %v1770 = vld [vmem:[#allocation4 + $0x148] sm:$0xff]
        %v1771 = vld [vmem:[#allocation4 + $0x150] sm:$0xff]
        %v1772 = vld [vmem:[#allocation4 + $0x158] sm:$0xff]
        %v1773 = vld [vmem:[#allocation4 + $0x160] sm:$0xff]
        %v1774 = vld [vmem:[#allocation4 + $0x168] sm:$0xff]
        %v1775 = vld [vmem:[#allocation4 + $0x170] sm:$0xff]
        %v1776 = vld [vmem:[#allocation4 + $0x178] sm:$0xff]
        %v1777 = vld [vmem:[#allocation4 + $0x180] sm:$0xff]
        %v1778 = vld [vmem:[#allocation4 + $0x188] sm:$0xff]
        %v1779 = vld [vmem:[#allocation4 + $0x190] sm:$0xff]
        %v1780 = vld [vmem:[#allocation4 + $0x198] sm:$0xff]
        %v1781 = vld [vmem:[#allocation4 + $0x1a0] sm:$0xff]
        %v1782 = vld [vmem:[#allocation4 + $0x1a8] sm:$0xff]
        %v1783 = vld [vmem:[#allocation4 + $0x1b0] sm:$0xff]
        %v1784 = vld [vmem:[#allocation4 + $0x1b8] sm:$0xff]
        %v1785 = vld [vmem:[#allocation4 + $0x1c0] sm:$0xff]
        %v1786 = vld [vmem:[#allocation4 + $0x1c8] sm:$0xff]
        %v1787 = vld [vmem:[#allocation4 + $0x1d0] sm:$0xff]
        %v1788 = vld [vmem:[#allocation4 + $0x1d8] sm:$0xff]
        %v1789 = vld [vmem:[#allocation4 + $0x1e0] sm:$0xff]
        %v1790 = vld [vmem:[#allocation4 + $0x1e8] sm:$0xff]
        %v1791 = vld [vmem:[#allocation4 + $0x1f0] sm:$0xff]
        %v1792 = vld [vmem:[#allocation4 + $0x1f8] sm:$0xff]
        %v1793 = vld [vmem:[#allocation4 + $0x200] sm:$0xff]
        %v1794 = vld [vmem:[#allocation4 + $0x208] sm:$0xff]
        %v1795 = vld [vmem:[#allocation4 + $0x210] sm:$0xff]
        %v1796 = vld [vmem:[#allocation4 + $0x218] sm:$0xff]
        %v1797 = vld [vmem:[#allocation4 + $0x220] sm:$0xff]
        %v1798 = vld [vmem:[#allocation4 + $0x228] sm:$0xff]
        %v1799 = vld [vmem:[#allocation4 + $0x230] sm:$0xff]
        %v1800 = vld [vmem:[#allocation4 + $0x238] sm:$0xff]
        %v1801 = vld [vmem:[#allocation4 + $0x240] sm:$0xff]
        %v1802 = vld [vmem:[#allocation4 + $0x248] sm:$0xff]
        %v1803 = vld [vmem:[#allocation4 + $0x250] sm:$0xff]
        %v1804 = vld [vmem:[#allocation4 + $0x258] sm:$0xff]
        %v1805 = vld [vmem:[#allocation4 + $0x260] sm:$0xff]
        %v1806 = vld [vmem:[#allocation4 + $0x268] sm:$0xff]
        %v1807 = vld [vmem:[#allocation4 + $0x270] sm:$0xff]
        %v1808 = vld [vmem:[#allocation4 + $0x278] sm:$0xff]
        %v1809 = vld [vmem:[#allocation4 + $0x280] sm:$0xff]
        %v1810 = vld [vmem:[#allocation4 + $0x288] sm:$0xff]
        %v1811 = vld [vmem:[#allocation4 + $0x290] sm:$0xff]
        %v1812 = vld [vmem:[#allocation4 + $0x298] sm:$0xff]
        %v1813 = vld [vmem:[#allocation4 + $0x2a0] sm:$0xff]
        %v1814 = vld [vmem:[#allocation4 + $0x2a8] sm:$0xff]
        %v1815 = vld [vmem:[#allocation4 + $0x2b0] sm:$0xff]
        %v1816 = vld [vmem:[#allocation4 + $0x2b8] sm:$0xff]
        %v1817 = vld [vmem:[#allocation4 + $0x2c0] sm:$0xff]
        %v1818 = vld [vmem:[#allocation4 + $0x2c8] sm:$0xff]
        %v1819 = vld [vmem:[#allocation4 + $0x2d0] sm:$0xff]
        %v1820 = vld [vmem:[#allocation4 + $0x2d8] sm:$0xff]
        %v1821 = vld [vmem:[#allocation4 + $0x2e0] sm:$0xff]
        %v1822 = vld [vmem:[#allocation4 + $0x2e8] sm:$0xff]
        %v1823 = vld [vmem:[#allocation4 + $0x2f0] sm:$0xff]
        %v1824 = vld [vmem:[#allocation4 + $0x2f8] sm:$0xff]
        %v1825 = vld [vmem:[#allocation4 + $0x300] sm:$0xff]
        %v1826 = vld [vmem:[#allocation4 + $0x308] sm:$0xff]
        %v1827 = vld [vmem:[#allocation4 + $0x310] sm:$0xff]
        %v1828 = vld [vmem:[#allocation4 + $0x318] sm:$0xff]
        %v1829 = vld [vmem:[#allocation4 + $0x320] sm:$0xff]
        %v1830 = vld [vmem:[#allocation4 + $0x328] sm:$0xff]
        %v1831 = vld [vmem:[#allocation4 + $0x330] sm:$0xff]
        %v1832 = vld [vmem:[#allocation4 + $0x338] sm:$0xff]
        %v1833 = vld [vmem:[#allocation4 + $0x340] sm:$0xff]
        %v1834 = vld [vmem:[#allocation4 + $0x348] sm:$0xff]
        %v1835 = vld [vmem:[#allocation4 + $0x350] sm:$0xff]
        %v1836 = vld [vmem:[#allocation4 + $0x358] sm:$0xff]
        %v1837 = vld [vmem:[#allocation4 + $0x360] sm:$0xff]
        %v1838 = vld [vmem:[#allocation4 + $0x368] sm:$0xff]
        %v1839 = vld [vmem:[#allocation4 + $0x370] sm:$0xff]
        %v1840 = vld [vmem:[#allocation4 + $0x378] sm:$0xff]
        %v1841 = vld [vmem:[#allocation4 + $0x380] sm:$0xff]
        %v1842 = vld [vmem:[#allocation4 + $0x388] sm:$0xff]
        %v1843 = vld [vmem:[#allocation4 + $0x390] sm:$0xff]
        %v1844 = vld [vmem:[#allocation4 + $0x398] sm:$0xff]
        %v1845 = vld [vmem:[#allocation4 + $0x3a0] sm:$0xff]
        %v1846 = vld [vmem:[#allocation4 + $0x3a8] sm:$0xff]
        %v1847 = vld [vmem:[#allocation4 + $0x3b0] sm:$0xff]
        %v1848 = vld [vmem:[#allocation4 + $0x3b8] sm:$0xff]
        %v1849 = vld [vmem:[#allocation4 + $0x3c0] sm:$0xff]
        %v1850 = vld [vmem:[#allocation4 + $0x3c8] sm:$0xff]
        %v1851 = vld [vmem:[#allocation4 + $0x3d0] sm:$0xff]
        %v1852 = vld [vmem:[#allocation4 + $0x3d8] sm:$0xff]
        %v1853 = vld [vmem:[#allocation4 + $0x3e0] sm:$0xff]
        %v1854 = vld [vmem:[#allocation4 + $0x3e8] sm:$0xff]
        %v1855 = vld [vmem:[#allocation4 + $0x3f0] sm:$0xff]
        %v1856 = vld [vmem:[#allocation4 + $0x3f8] sm:$0xff]
        %v1857 = vld [vmem:[#allocation4 + $0x400] sm:$0xff]
        %v1858 = vld [vmem:[#allocation4 + $0x408] sm:$0xff]
        %v1859 = vld [vmem:[#allocation4 + $0x410] sm:$0xff]
        %v1860 = vld [vmem:[#allocation4 + $0x418] sm:$0xff]
        %v1861 = vld [vmem:[#allocation4 + $0x420] sm:$0xff]
        %v1862 = vld [vmem:[#allocation4 + $0x428] sm:$0xff]
        %v1863 = vld [vmem:[#allocation4 + $0x430] sm:$0xff]
        %v1864 = vld [vmem:[#allocation4 + $0x438] sm:$0xff]
        %v1865 = vld [vmem:[#allocation4 + $0x440] sm:$0xff]
        %v1866 = vld [vmem:[#allocation4 + $0x448] sm:$0xff]
        %v1867 = vld [vmem:[#allocation4 + $0x450] sm:$0xff]
        %v1868 = vld [vmem:[#allocation4 + $0x458] sm:$0xff]
        %v1869 = vld [vmem:[#allocation4 + $0x460] sm:$0xff]
        %v1870 = vld [vmem:[#allocation4 + $0x468] sm:$0xff]
        %v1871 = vld [vmem:[#allocation4 + $0x470] sm:$0xff]
        %v1872 = vld [vmem:[#allocation4 + $0x478] sm:$0xff]
        %v1873 = vld [vmem:[%s4] sm:$0x1]
        %v1875 = vlaneseq
        %v1876 = vshrl.u32 %v1875, 7
        %v1877 = vsub.s32 0, %v1876
        %v1878 = vrot.slane %v1873, %v1877
        %1880 = vmatprep.subr.mxu0 0.0
        %1881 = vmatpush1.msra.mxu0 %v1729
        %1882 = vmatprep.subr.mxu0 0.0
        %1883 = vmatpush1.msra.mxu0 %v1730
        %1884 = vmatprep.subr.mxu0 0.0
        %1885 = vmatpush1.msra.mxu0 %v1731
        %1886 = vmatprep.subr.mxu0 0.0
        %1887 = vmatpush1.msra.mxu0 %v1732
        %1888 = vmatprep.subr.mxu0 0.0
        %1889 = vmatpush1.msra.mxu0 %v1733
        %1890 = vmatprep.subr.mxu0 0.0
        %1891 = vmatpush1.msra.mxu0 %v1734
        %1892 = vmatprep.subr.mxu0 0.0
        %1893 = vmatpush1.msra.mxu0 %v1735
        %1894 = vmatprep.subr.mxu0 0.0
        %1895 = vmatpush1.msra.mxu0 %v1736
        %1896 = vmatprep.subr.mxu0 0.0
        %1897 = vmatpush1.msra.mxu0 %v1737
        %1898 = vmatprep.subr.mxu0 0.0
        %1899 = vmatpush1.msra.mxu0 %v1738
        %1900 = vmatprep.subr.mxu0 0.0
        %1901 = vmatpush1.msra.mxu0 %v1739
        %1902 = vmatprep.subr.mxu0 0.0
        %1903 = vmatpush1.msra.mxu0 %v1740
        %1904 = vmatprep.subr.mxu0 0.0
        %1905 = vmatpush1.msra.mxu0 %v1741
        %1906 = vmatprep.subr.mxu0 0.0
        %1907 = vmatpush1.msra.mxu0 %v1742
        %1908 = vmatprep.subr.mxu0 0.0
        %1909 = vmatpush1.msra.mxu0 %v1743
        %1910 = vmatprep.subr.mxu0 0.0
        %1911 = vmatpush1.msra.mxu0 %v1744
        %1912 = vmatprep.subr.mxu0 0.0
        %1913 = vmatpush1.msra.mxu0 %v1745
        %1914 = vmatprep.subr.mxu0 0.0
        %1915 = vmatpush1.msra.mxu0 %v1746
        %1916 = vmatprep.subr.mxu0 0.0
        %1917 = vmatpush1.msra.mxu0 %v1747
        %1918 = vmatprep.subr.mxu0 0.0
        %1919 = vmatpush1.msra.mxu0 %v1748
        %1920 = vmatprep.subr.mxu0 0.0
        %1921 = vmatpush1.msra.mxu0 %v1749
        %1922 = vmatprep.subr.mxu0 0.0
        %1923 = vmatpush1.msra.mxu0 %v1750
        %1924 = vmatprep.subr.mxu0 0.0
        %1925 = vmatpush1.msra.mxu0 %v1751
        %1926 = vmatprep.subr.mxu0 0.0
        %1927 = vmatpush1.msra.mxu0 %v1752
        %1928 = vmatprep.subr.mxu0 0.0
        %1929 = vmatpush1.msra.mxu0 %v1753
        %1930 = vmatprep.subr.mxu0 0.0
        %1931 = vmatpush1.msra.mxu0 %v1754
        %1932 = vmatprep.subr.mxu0 0.0
        %1933 = vmatpush1.msra.mxu0 %v1755
        %1934 = vmatprep.subr.mxu0 0.0
        %1935 = vmatpush1.msra.mxu0 %v1756
        %1936 = vmatprep.subr.mxu0 0.0
        %1937 = vmatpush1.msra.mxu0 %v1757
        %1938 = vmatprep.subr.mxu0 0.0
        %1939 = vmatpush1.msra.mxu0 %v1758
        %1940 = vmatprep.subr.mxu0 0.0
        %1941 = vmatpush1.msra.mxu0 %v1759
        %1942 = vmatprep.subr.mxu0 0.0
        %1943 = vmatpush1.msra.mxu0 %v1760
        %1944 = vmatprep.mubr.f32.mxu0 %v1442
        %1945 = vmatmul.mubr.f32.gmra.mrb[0].mxu0 %v1441
        %v1946 = vpop.f32.mrb[0].mxu0
        %v1947 = vadd.f32 %v1878, %v1946
        %v1948 = vpop.f32.mrb[0].mxu0
        %1949 = vmatprep.mubr.f32.mxu0 %v1451
        %1950 = vmatmul.mubr.f32.gmra.mrb[0].mxu0 %v1450
        %v1951 = vpop.f32.mrb[0].mxu0
        %v1952 = vadd.f32 %v1878, %v1951
        %v1953 = vpop.f32.mrb[0].mxu0
        %1954 = vmatprep.mubr.f32.mxu0 %v1460
        %1955 = vmatmul.mubr.f32.gmra.mrb[0].mxu0 %v1459
        %v1956 = vpop.f32.mrb[0].mxu0
        %v1957 = vadd.f32 %v1878, %v1956
        %v1958 = vpop.f32.mrb[0].mxu0
        %1959 = vmatprep.mubr.f32.mxu0 %v1469
        %1960 = vmatmul.mubr.f32.gmra.mrb[0].mxu0 %v1468
        %v1961 = vpop.f32.mrb[0].mxu0
        %v1962 = vadd.f32 %v1878, %v1961
        %v1963 = vpop.f32.mrb[0].mxu0
        %1964 = vmatprep.mubr.f32.mxu0 %v1478
        %1965 = vmatmul.mubr.f32.gmra.mrb[0].mxu0 %v1477
        %v1966 = vpop.f32.mrb[0].mxu0
        %v1967 = vadd.f32 %v1878, %v1966
        %v1968 = vpop.f32.mrb[0].mxu0
        %1969 = vmatprep.mubr.f32.mxu0 %v1487
        %1970 = vmatmul.mubr.f32.gmra.mrb[0].mxu0 %v1486
        %v1971 = vpop.f32.mrb[0].mxu0
        %v1972 = vadd.f32 %v1878, %v1971
        %v1973 = vpop.f32.mrb[0].mxu0
        %1974 = vmatprep.mubr.f32.mxu0 %v1496
        %1975 = vmatmul.mubr.f32.gmra.mrb[0].mxu0 %v1495
        %v1976 = vpop.f32.mrb[0].mxu0
        %v1977 = vadd.f32 %v1878, %v1976
        %v1978 = vpop.f32.mrb[0].mxu0
        %1979 = vmatprep.mubr.f32.mxu0 %v1505
        %1980 = vmatmul.mubr.f32.gmra.mrb[0].mxu0 %v1504
        %v1981 = vpop.f32.mrb[0].mxu0
        %v1982 = vadd.f32 %v1878, %v1981
        %v1983 = vpop.f32.mrb[0].mxu0
        %1984 = vmatprep.mubr.f32.mxu0 %v1514
        %1985 = vmatmul.mubr.f32.gmra.mrb[0].mxu0 %v1513
        %v1986 = vpop.f32.mrb[0].mxu0
        %v1987 = vadd.f32 %v1878, %v1986
        %v1988 = vpop.f32.mrb[0].mxu0
        %1989 = vmatprep.mubr.f32.mxu0 %v1523
        %1990 = vmatmul.mubr.f32.gmra.mrb[0].mxu0 %v1522
        %v1991 = vpop.f32.mrb[0].mxu0
        %v1992 = vadd.f32 %v1878, %v1991
        %v1993 = vpop.f32.mrb[0].mxu0
        %1994 = vmatprep.mubr.f32.mxu0 %v1532
        %1995 = vmatmul.mubr.f32.gmra.mrb[0].mxu0 %v1531
        %v1996 = vpop.f32.mrb[0].mxu0
        %v1997 = vadd.f32 %v1878, %v1996
        %v1998 = vpop.f32.mrb[0].mxu0
        %1999 = vmatprep.mubr.f32.mxu0 %v1541
        %2000 = vmatmul.mubr.f32.gmra.mrb[0].mxu0 %v1540
        %v2001 = vpop.f32.mrb[0].mxu0
        %v2002 = vadd.f32 %v1878, %v2001
        %v2003 = vpop.f32.mrb[0].mxu0
        %2004 = vmatprep.mubr.f32.mxu0 %v1550
        %2005 = vmatmul.mubr.f32.gmra.mrb[0].mxu0 %v1549
        %v2006 = vpop.f32.mrb[0].mxu0
        %v2007 = vadd.f32 %v1878, %v2006
        %v2008 = vpop.f32.mrb[0].mxu0
        %2009 = vmatprep.mubr.f32.mxu0 %v1559
        %2010 = vmatmul.mubr.f32.gmra.mrb[0].mxu0 %v1558
        %v2011 = vpop.f32.mrb[0].mxu0
        %v2012 = vadd.f32 %v1878, %v2011
        %v2013 = vpop.f32.mrb[0].mxu0
        %2014 = vmatprep.mubr.f32.mxu0 %v1568
        %2015 = vmatmul.mubr.f32.gmra.mrb[0].mxu0 %v1567
        %v2016 = vpop.f32.mrb[0].mxu0
        %v2017 = vadd.f32 %v1878, %v2016
        %v2018 = vpop.f32.mrb[0].mxu0
        %2019 = vmatprep.mubr.f32.mxu0 %v1577
        %2020 = vmatmul.mubr.f32.gmra.mrb[0].mxu0 %v1576
        %v2021 = vpop.f32.mrb[0].mxu0
        %v2022 = vadd.f32 %v1878, %v2021
        %v2023 = vpop.f32.mrb[0].mxu0
        %2024 = vmatprep.mubr.f32.mxu0 %v1586
        %2025 = vmatmul.mubr.f32.gmra.mrb[0].mxu0 %v1585
        %v2026 = vpop.f32.mrb[0].mxu0
        %v2027 = vadd.f32 %v1878, %v2026
        %v2028 = vpop.f32.mrb[0].mxu0
        %2029 = vmatprep.mubr.f32.mxu0 %v1595
        %2030 = vmatmul.mubr.f32.gmra.mrb[0].mxu0 %v1594
        %v2031 = vpop.f32.mrb[0].mxu0
        %v2032 = vadd.f32 %v1878, %v2031
        %v2033 = vpop.f32.mrb[0].mxu0
        %2034 = vmatprep.mubr.f32.mxu0 %v1604
        %2035 = vmatmul.mubr.f32.gmra.mrb[0].mxu0 %v1603
        %v2036 = vpop.f32.mrb[0].mxu0
        %v2037 = vadd.f32 %v1878, %v2036
        %v2038 = vpop.f32.mrb[0].mxu0
        %2039 = vmatprep.mubr.f32.mxu0 %v1613
        %2040 = vmatmul.mubr.f32.gmra.mrb[0].mxu0 %v1612
        %v2041 = vpop.f32.mrb[0].mxu0
        %v2042 = vadd.f32 %v1878, %v2041
        %v2043 = vpop.f32.mrb[0].mxu0
        %2044 = vmatprep.mubr.f32.mxu0 %v1622
        %2045 = vmatmul.mubr.f32.gmra.mrb[0].mxu0 %v1621
        %v2046 = vpop.f32.mrb[0].mxu0
        %v2047 = vadd.f32 %v1878, %v2046
        %v2048 = vpop.f32.mrb[0].mxu0
        %2049 = vmatprep.mubr.f32.mxu0 %v1631
        %2050 = vmatmul.mubr.f32.gmra.mrb[0].mxu0 %v1630
        %v2051 = vpop.f32.mrb[0].mxu0
        %v2052 = vadd.f32 %v1878, %v2051
        %v2053 = vpop.f32.mrb[0].mxu0
        %2054 = vmatprep.mubr.f32.mxu0 %v1640
        %2055 = vmatmul.mubr.f32.gmra.mrb[0].mxu0 %v1639
        %v2056 = vpop.f32.mrb[0].mxu0
        %v2057 = vadd.f32 %v1878, %v2056
        %v2058 = vpop.f32.mrb[0].mxu0
        %2059 = vmatprep.mubr.f32.mxu0 %v1649
        %2060 = vmatmul.mubr.f32.gmra.mrb[0].mxu0 %v1648
        %v2061 = vpop.f32.mrb[0].mxu0
        %v2062 = vadd.f32 %v1878, %v2061
        %v2063 = vpop.f32.mrb[0].mxu0
        %2064 = vmatprep.mubr.f32.mxu0 %v1658
        %2065 = vmatmul.mubr.f32.gmra.mrb[0].mxu0 %v1657
        %v2066 = vpop.f32.mrb[0].mxu0
        %v2067 = vadd.f32 %v1878, %v2066
        %v2068 = vpop.f32.mrb[0].mxu0
        %2069 = vmatprep.mubr.f32.mxu0 %v1667
        %2070 = vmatmul.mubr.f32.gmra.mrb[0].mxu0 %v1666
        %v2071 = vpop.f32.mrb[0].mxu0
        %v2072 = vadd.f32 %v1878, %v2071
        %v2073 = vpop.f32.mrb[0].mxu0
        %2074 = vmatprep.mubr.f32.mxu0 %v1676
        %2075 = vmatmul.mubr.f32.gmra.mrb[0].mxu0 %v1675
        %v2076 = vpop.f32.mrb[0].mxu0
        %v2077 = vadd.f32 %v1878, %v2076
        %v2078 = vpop.f32.mrb[0].mxu0
        %2079 = vmatprep.mubr.f32.mxu0 %v1685
        %2080 = vmatmul.mubr.f32.gmra.mrb[0].mxu0 %v1684
        %v2081 = vpop.f32.mrb[0].mxu0
        %v2082 = vadd.f32 %v1878, %v2081
        %v2083 = vpop.f32.mrb[0].mxu0
        %2084 = vmatprep.mubr.f32.mxu0 %v1694
        %2085 = vmatmul.mubr.f32.gmra.mrb[0].mxu0 %v1693
        %v2086 = vpop.f32.mrb[0].mxu0
        %v2087 = vadd.f32 %v1878, %v2086
        %v2088 = vpop.f32.mrb[0].mxu0
        %2089 = vmatprep.mubr.f32.mxu0 %v1703
        %2090 = vmatmul.mubr.f32.gmra.mrb[0].mxu0 %v1702
        %v2091 = vpop.f32.mrb[0].mxu0
        %v2092 = vadd.f32 %v1878, %v2091
        %v2093 = vpop.f32.mrb[0].mxu0
        %2094 = vmatprep.mubr.f32.mxu0 %v1712
        %2095 = vmatmul.mubr.f32.gmra.mrb[0].mxu0 %v1711
        %v2096 = vpop.f32.mrb[0].mxu0
        %v2097 = vadd.f32 %v1878, %v2096
        %v2098 = vpop.f32.mrb[0].mxu0
        %2099 = vmatprep.mubr.f32.mxu0 %v1721
        %2100 = vmatmul.mubr.f32.gmra.mrb[0].mxu0 %v1720
        %v2101 = vpop.f32.mrb[0].mxu0
        %v2102 = vadd.f32 %v1878, %v2101
        %v2103 = vpop.f32.mrb[0].mxu0
        %2104 = vdwg.mxu0
        %2105 = vmatprep.subr.mxu0 0.0
        %2106 = vmatpush1.msra.mxu0 %v1761
        %2107 = vmatprep.subr.mxu0 0.0
        %2108 = vmatpush1.msra.mxu0 %v1762
        %2109 = vmatprep.subr.mxu0 0.0
        %2110 = vmatpush1.msra.mxu0 %v1763
        %2111 = vmatprep.subr.mxu0 0.0
        %2112 = vmatpush1.msra.mxu0 %v1764
        %2113 = vmatprep.subr.mxu0 0.0
        %2114 = vmatpush1.msra.mxu0 %v1765
        %2115 = vmatprep.subr.mxu0 0.0
        %2116 = vmatpush1.msra.mxu0 %v1766
        %2117 = vmatprep.subr.mxu0 0.0
        %2118 = vmatpush1.msra.mxu0 %v1767
        %2119 = vmatprep.subr.mxu0 0.0
        %2120 = vmatpush1.msra.mxu0 %v1768
        %2121 = vmatprep.subr.mxu0 0.0
        %2122 = vmatpush1.msra.mxu0 %v1769
        %2123 = vmatprep.subr.mxu0 0.0
        %2124 = vmatpush1.msra.mxu0 %v1770
        %2125 = vmatprep.subr.mxu0 0.0
        %2126 = vmatpush1.msra.mxu0 %v1771
        %2127 = vmatprep.subr.mxu0 0.0
        %2128 = vmatpush1.msra.mxu0 %v1772
        %2129 = vmatprep.subr.mxu0 0.0
        %2130 = vmatpush1.msra.mxu0 %v1773
        %2131 = vmatprep.subr.mxu0 0.0
        %2132 = vmatpush1.msra.mxu0 %v1774
        %2133 = vmatprep.subr.mxu0 0.0
        %2134 = vmatpush1.msra.mxu0 %v1775
        %2135 = vmatprep.subr.mxu0 0.0
        %2136 = vmatpush1.msra.mxu0 %v1776
        %2137 = vmatprep.subr.mxu0 0.0
        %2138 = vmatpush1.msra.mxu0 %v1777
        %2139 = vmatprep.subr.mxu0 0.0
        %2140 = vmatpush1.msra.mxu0 %v1778
        %2141 = vmatprep.subr.mxu0 0.0
        %2142 = vmatpush1.msra.mxu0 %v1779
        %2143 = vmatprep.subr.mxu0 0.0
        %2144 = vmatpush1.msra.mxu0 %v1780
        %2145 = vmatprep.subr.mxu0 0.0
        %2146 = vmatpush1.msra.mxu0 %v1781
        %2147 = vmatprep.subr.mxu0 0.0
        %2148 = vmatpush1.msra.mxu0 %v1782
        %2149 = vmatprep.subr.mxu0 0.0
        %2150 = vmatpush1.msra.mxu0 %v1783
        %2151 = vmatprep.subr.mxu0 0.0
        %2152 = vmatpush1.msra.mxu0 %v1784
        %2153 = vmatprep.subr.mxu0 0.0
        %2154 = vmatpush1.msra.mxu0 %v1785
        %2155 = vmatprep.subr.mxu0 0.0
        %2156 = vmatpush1.msra.mxu0 %v1786
        %2157 = vmatprep.subr.mxu0 0.0
        %2158 = vmatpush1.msra.mxu0 %v1787
        %2159 = vmatprep.subr.mxu0 0.0
        %2160 = vmatpush1.msra.mxu0 %v1788
        %2161 = vmatprep.subr.mxu0 0.0
        %2162 = vmatpush1.msra.mxu0 %v1789
        %2163 = vmatprep.subr.mxu0 0.0
        %2164 = vmatpush1.msra.mxu0 %v1790
        %2165 = vmatprep.subr.mxu0 0.0
        %2166 = vmatpush1.msra.mxu0 %v1791
        %2167 = vmatprep.subr.mxu0 0.0
        %2168 = vmatpush1.msra.mxu0 %v1792
        %2169 = vmatprep.mubr.f32.mxu0 %v1444
        %2170 = vmatmul.mubr.f32.gmra.mrb[0].mxu0 %v1443
        %v2171 = vpop.f32.mrb[0].mxu0
        %v2172 = vadd.f32 %v1947, %v2171
        %v2173 = vpop.f32.mrb[0].mxu0
        %2174 = vmatprep.mubr.f32.mxu0 %v1453
        %2175 = vmatmul.mubr.f32.gmra.mrb[0].mxu0 %v1452
        %v2176 = vpop.f32.mrb[0].mxu0
        %v2177 = vadd.f32 %v1952, %v2176
        %v2178 = vpop.f32.mrb[0].mxu0
        %2179 = vmatprep.mubr.f32.mxu0 %v1462
        %2180 = vmatmul.mubr.f32.gmra.mrb[0].mxu0 %v1461
        %v2181 = vpop.f32.mrb[0].mxu0
        %v2182 = vadd.f32 %v1957, %v2181
        %v2183 = vpop.f32.mrb[0].mxu0
        %2184 = vmatprep.mubr.f32.mxu0 %v1471
        %2185 = vmatmul.mubr.f32.gmra.mrb[0].mxu0 %v1470
        %v2186 = vpop.f32.mrb[0].mxu0
        %v2187 = vadd.f32 %v1962, %v2186
        %v2188 = vpop.f32.mrb[0].mxu0
        %2189 = vmatprep.mubr.f32.mxu0 %v1480
        %2190 = vmatmul.mubr.f32.gmra.mrb[0].mxu0 %v1479
        %v2191 = vpop.f32.mrb[0].mxu0
        %v2192 = vadd.f32 %v1967, %v2191
        %v2193 = vpop.f32.mrb[0].mxu0
        %2194 = vmatprep.mubr.f32.mxu0 %v1489
        %2195 = vmatmul.mubr.f32.gmra.mrb[0].mxu0 %v1488
        %v2196 = vpop.f32.mrb[0].mxu0
        %v2197 = vadd.f32 %v1972, %v2196
        %v2198 = vpop.f32.mrb[0].mxu0
        %2199 = vmatprep.mubr.f32.mxu0 %v1498
        %2200 = vmatmul.mubr.f32.gmra.mrb[0].mxu0 %v1497
        %v2201 = vpop.f32.mrb[0].mxu0
        %v2202 = vadd.f32 %v1977, %v2201
        %v2203 = vpop.f32.mrb[0].mxu0
        %2204 = vmatprep.mubr.f32.mxu0 %v1507
        %2205 = vmatmul.mubr.f32.gmra.mrb[0].mxu0 %v1506
        %v2206 = vpop.f32.mrb[0].mxu0
        %v2207 = vadd.f32 %v1982, %v2206
        %v2208 = vpop.f32.mrb[0].mxu0
        %2209 = vmatprep.mubr.f32.mxu0 %v1516
        %2210 = vmatmul.mubr.f32.gmra.mrb[0].mxu0 %v1515
        %v2211 = vpop.f32.mrb[0].mxu0
        %v2212 = vadd.f32 %v1987, %v2211
        %v2213 = vpop.f32.mrb[0].mxu0
        %2214 = vmatprep.mubr.f32.mxu0 %v1525
        %2215 = vmatmul.mubr.f32.gmra.mrb[0].mxu0 %v1524
        %v2216 = vpop.f32.mrb[0].mxu0
        %v2217 = vadd.f32 %v1992, %v2216
        %v2218 = vpop.f32.mrb[0].mxu0
        %2219 = vmatprep.mubr.f32.mxu0 %v1534
        %2220 = vmatmul.mubr.f32.gmra.mrb[0].mxu0 %v1533
        %v2221 = vpop.f32.mrb[0].mxu0
        %v2222 = vadd.f32 %v1997, %v2221
        %v2223 = vpop.f32.mrb[0].mxu0
        %2224 = vmatprep.mubr.f32.mxu0 %v1543
        %2225 = vmatmul.mubr.f32.gmra.mrb[0].mxu0 %v1542
        %v2226 = vpop.f32.mrb[0].mxu0
        %v2227 = vadd.f32 %v2002, %v2226
        %v2228 = vpop.f32.mrb[0].mxu0
        %2229 = vmatprep.mubr.f32.mxu0 %v1552
        %2230 = vmatmul.mubr.f32.gmra.mrb[0].mxu0 %v1551
        %v2231 = vpop.f32.mrb[0].mxu0
        %v2232 = vadd.f32 %v2007, %v2231
        %v2233 = vpop.f32.mrb[0].mxu0
        %2234 = vmatprep.mubr.f32.mxu0 %v1561
        %2235 = vmatmul.mubr.f32.gmra.mrb[0].mxu0 %v1560
        %v2236 = vpop.f32.mrb[0].mxu0
        %v2237 = vadd.f32 %v2012, %v2236
        %v2238 = vpop.f32.mrb[0].mxu0
        %2239 = vmatprep.mubr.f32.mxu0 %v1570
        %2240 = vmatmul.mubr.f32.gmra.mrb[0].mxu0 %v1569
        %v2241 = vpop.f32.mrb[0].mxu0
        %v2242 = vadd.f32 %v2017, %v2241
        %v2243 = vpop.f32.mrb[0].mxu0
        %2244 = vmatprep.mubr.f32.mxu0 %v1579
        %2245 = vmatmul.mubr.f32.gmra.mrb[0].mxu0 %v1578
        %v2246 = vpop.f32.mrb[0].mxu0
        %v2247 = vadd.f32 %v2022, %v2246
        %v2248 = vpop.f32.mrb[0].mxu0
        %2249 = vmatprep.mubr.f32.mxu0 %v1588
        %2250 = vmatmul.mubr.f32.gmra.mrb[0].mxu0 %v1587
        %v2251 = vpop.f32.mrb[0].mxu0
        %v2252 = vadd.f32 %v2027, %v2251
        %v2253 = vpop.f32.mrb[0].mxu0
        %2254 = vmatprep.mubr.f32.mxu0 %v1597
        %2255 = vmatmul.mubr.f32.gmra.mrb[0].mxu0 %v1596
        %v2256 = vpop.f32.mrb[0].mxu0
        %v2257 = vadd.f32 %v2032, %v2256
        %v2258 = vpop.f32.mrb[0].mxu0
        %2259 = vmatprep.mubr.f32.mxu0 %v1606
        %2260 = vmatmul.mubr.f32.gmra.mrb[0].mxu0 %v1605
        %v2261 = vpop.f32.mrb[0].mxu0
        %v2262 = vadd.f32 %v2037, %v2261
        %v2263 = vpop.f32.mrb[0].mxu0
        %2264 = vmatprep.mubr.f32.mxu0 %v1615
        %2265 = vmatmul.mubr.f32.gmra.mrb[0].mxu0 %v1614
        %v2266 = vpop.f32.mrb[0].mxu0
        %v2267 = vadd.f32 %v2042, %v2266
        %v2268 = vpop.f32.mrb[0].mxu0
        %2269 = vmatprep.mubr.f32.mxu0 %v1624
        %2270 = vmatmul.mubr.f32.gmra.mrb[0].mxu0 %v1623
        %v2271 = vpop.f32.mrb[0].mxu0
        %v2272 = vadd.f32 %v2047, %v2271
        %v2273 = vpop.f32.mrb[0].mxu0
        %2274 = vmatprep.mubr.f32.mxu0 %v1633
        %2275 = vmatmul.mubr.f32.gmra.mrb[0].mxu0 %v1632
        %v2276 = vpop.f32.mrb[0].mxu0
        %v2277 = vadd.f32 %v2052, %v2276
        %v2278 = vpop.f32.mrb[0].mxu0
        %2279 = vmatprep.mubr.f32.mxu0 %v1642
        %2280 = vmatmul.mubr.f32.gmra.mrb[0].mxu0 %v1641
        %v2281 = vpop.f32.mrb[0].mxu0
        %v2282 = vadd.f32 %v2057, %v2281
        %v2283 = vpop.f32.mrb[0].mxu0
        %2284 = vmatprep.mubr.f32.mxu0 %v1651
        %2285 = vmatmul.mubr.f32.gmra.mrb[0].mxu0 %v1650
        %v2286 = vpop.f32.mrb[0].mxu0
        %v2287 = vadd.f32 %v2062, %v2286
        %v2288 = vpop.f32.mrb[0].mxu0
        %2289 = vmatprep.mubr.f32.mxu0 %v1660
        %2290 = vmatmul.mubr.f32.gmra.mrb[0].mxu0 %v1659
        %v2291 = vpop.f32.mrb[0].mxu0
        %v2292 = vadd.f32 %v2067, %v2291
        %v2293 = vpop.f32.mrb[0].mxu0
        %2294 = vmatprep.mubr.f32.mxu0 %v1669
        %2295 = vmatmul.mubr.f32.gmra.mrb[0].mxu0 %v1668
        %v2296 = vpop.f32.mrb[0].mxu0
        %v2297 = vadd.f32 %v2072, %v2296
        %v2298 = vpop.f32.mrb[0].mxu0
        %2299 = vmatprep.mubr.f32.mxu0 %v1678
        %2300 = vmatmul.mubr.f32.gmra.mrb[0].mxu0 %v1677
        %v2301 = vpop.f32.mrb[0].mxu0
        %v2302 = vadd.f32 %v2077, %v2301
        %v2303 = vpop.f32.mrb[0].mxu0
        %2304 = vmatprep.mubr.f32.mxu0 %v1687
        %2305 = vmatmul.mubr.f32.gmra.mrb[0].mxu0 %v1686
        %v2306 = vpop.f32.mrb[0].mxu0
        %v2307 = vadd.f32 %v2082, %v2306
        %v2308 = vpop.f32.mrb[0].mxu0
        %2309 = vmatprep.mubr.f32.mxu0 %v1696
        %2310 = vmatmul.mubr.f32.gmra.mrb[0].mxu0 %v1695
        %v2311 = vpop.f32.mrb[0].mxu0
        %v2312 = vadd.f32 %v2087, %v2311
        %v2313 = vpop.f32.mrb[0].mxu0
        %2314 = vmatprep.mubr.f32.mxu0 %v1705
        %2315 = vmatmul.mubr.f32.gmra.mrb[0].mxu0 %v1704
        %v2316 = vpop.f32.mrb[0].mxu0
        %v2317 = vadd.f32 %v2092, %v2316
        %v2318 = vpop.f32.mrb[0].mxu0
        %2319 = vmatprep.mubr.f32.mxu0 %v1714
        %2320 = vmatmul.mubr.f32.gmra.mrb[0].mxu0 %v1713
        %v2321 = vpop.f32.mrb[0].mxu0
        %v2322 = vadd.f32 %v2097, %v2321
        %v2323 = vpop.f32.mrb[0].mxu0
        %2324 = vmatprep.mubr.f32.mxu0 %v1723
        %2325 = vmatmul.mubr.f32.gmra.mrb[0].mxu0 %v1722
        %v2326 = vpop.f32.mrb[0].mxu0
        %v2327 = vadd.f32 %v2102, %v2326
        %v2328 = vpop.f32.mrb[0].mxu0
        %2329 = vdwg.mxu0
        %2330 = vmatprep.subr.mxu0 0.0
        %2331 = vmatpush1.msra.mxu0 %v1793
        %2332 = vmatprep.subr.mxu0 0.0
        %2333 = vmatpush1.msra.mxu0 %v1794
        %2334 = vmatprep.subr.mxu0 0.0
        %2335 = vmatpush1.msra.mxu0 %v1795
        %2336 = vmatprep.subr.mxu0 0.0
        %2337 = vmatpush1.msra.mxu0 %v1796
        %2338 = vmatprep.subr.mxu0 0.0
        %2339 = vmatpush1.msra.mxu0 %v1797
        %2340 = vmatprep.subr.mxu0 0.0
        %2341 = vmatpush1.msra.mxu0 %v1798
        %2342 = vmatprep.subr.mxu0 0.0
        %2343 = vmatpush1.msra.mxu0 %v1799
        %2344 = vmatprep.subr.mxu0 0.0
        %2345 = vmatpush1.msra.mxu0 %v1800
        %2346 = vmatprep.subr.mxu0 0.0
        %2347 = vmatpush1.msra.mxu0 %v1801
        %2348 = vmatprep.subr.mxu0 0.0
        %2349 = vmatpush1.msra.mxu0 %v1802
        %2350 = vmatprep.subr.mxu0 0.0
        %2351 = vmatpush1.msra.mxu0 %v1803
        %2352 = vmatprep.subr.mxu0 0.0
        %2353 = vmatpush1.msra.mxu0 %v1804
        %2354 = vmatprep.subr.mxu0 0.0
        %2355 = vmatpush1.msra.mxu0 %v1805
        %2356 = vmatprep.subr.mxu0 0.0
        %2357 = vmatpush1.msra.mxu0 %v1806
        %2358 = vmatprep.subr.mxu0 0.0
        %2359 = vmatpush1.msra.mxu0 %v1807
        %2360 = vmatprep.subr.mxu0 0.0
        %2361 = vmatpush1.msra.mxu0 %v1808
        %2362 = vmatprep.subr.mxu0 0.0
        %2363 = vmatpush1.msra.mxu0 %v1809
        %2364 = vmatprep.subr.mxu0 0.0
        %2365 = vmatpush1.msra.mxu0 %v1810
        %2366 = vmatprep.subr.mxu0 0.0
        %2367 = vmatpush1.msra.mxu0 %v1811
        %2368 = vmatprep.subr.mxu0 0.0
        %2369 = vmatpush1.msra.mxu0 %v1812
        %2370 = vmatprep.subr.mxu0 0.0
        %2371 = vmatpush1.msra.mxu0 %v1813
        %2372 = vmatprep.subr.mxu0 0.0
        %2373 = vmatpush1.msra.mxu0 %v1814
        %2374 = vmatprep.subr.mxu0 0.0
        %2375 = vmatpush1.msra.mxu0 %v1815
        %2376 = vmatprep.subr.mxu0 0.0
        %2377 = vmatpush1.msra.mxu0 %v1816
        %2378 = vmatprep.subr.mxu0 0.0
        %2379 = vmatpush1.msra.mxu0 %v1817
        %2380 = vmatprep.subr.mxu0 0.0
        %2381 = vmatpush1.msra.mxu0 %v1818
        %2382 = vmatprep.subr.mxu0 0.0
        %2383 = vmatpush1.msra.mxu0 %v1819
        %2384 = vmatprep.subr.mxu0 0.0
        %2385 = vmatpush1.msra.mxu0 %v1820
        %2386 = vmatprep.subr.mxu0 0.0
        %2387 = vmatpush1.msra.mxu0 %v1821
        %2388 = vmatprep.subr.mxu0 0.0
        %2389 = vmatpush1.msra.mxu0 %v1822
        %2390 = vmatprep.subr.mxu0 0.0
        %2391 = vmatpush1.msra.mxu0 %v1823
        %2392 = vmatprep.subr.mxu0 0.0
        %2393 = vmatpush1.msra.mxu0 %v1824
        %2394 = vmatprep.mubr.f32.mxu0 %v1446
        %2395 = vmatmul.mubr.f32.gmra.mrb[0].mxu0 %v1445
        %v2396 = vpop.f32.mrb[0].mxu0
        %v2397 = vadd.f32 %v2172, %v2396
        %v2398 = vpop.f32.mrb[0].mxu0
        %2399 = vmatprep.mubr.f32.mxu0 %v1455
        %2400 = vmatmul.mubr.f32.gmra.mrb[0].mxu0 %v1454
        %v2401 = vpop.f32.mrb[0].mxu0
        %v2402 = vadd.f32 %v2177, %v2401
        %v2403 = vpop.f32.mrb[0].mxu0
        %2404 = vmatprep.mubr.f32.mxu0 %v1464
        %2405 = vmatmul.mubr.f32.gmra.mrb[0].mxu0 %v1463
        %v2406 = vpop.f32.mrb[0].mxu0
        %v2407 = vadd.f32 %v2182, %v2406
        %v2408 = vpop.f32.mrb[0].mxu0
        %2409 = vmatprep.mubr.f32.mxu0 %v1473
        %2410 = vmatmul.mubr.f32.gmra.mrb[0].mxu0 %v1472
        %v2411 = vpop.f32.mrb[0].mxu0
        %v2412 = vadd.f32 %v2187, %v2411
        %v2413 = vpop.f32.mrb[0].mxu0
        %2414 = vmatprep.mubr.f32.mxu0 %v1482
        %2415 = vmatmul.mubr.f32.gmra.mrb[0].mxu0 %v1481
        %v2416 = vpop.f32.mrb[0].mxu0
        %v2417 = vadd.f32 %v2192, %v2416
        %v2418 = vpop.f32.mrb[0].mxu0
        %2419 = vmatprep.mubr.f32.mxu0 %v1491
        %2420 = vmatmul.mubr.f32.gmra.mrb[0].mxu0 %v1490
        %v2421 = vpop.f32.mrb[0].mxu0
        %v2422 = vadd.f32 %v2197, %v2421
        %v2423 = vpop.f32.mrb[0].mxu0
        %2424 = vmatprep.mubr.f32.mxu0 %v1500
        %2425 = vmatmul.mubr.f32.gmra.mrb[0].mxu0 %v1499
        %v2426 = vpop.f32.mrb[0].mxu0
        %v2427 = vadd.f32 %v2202, %v2426
        %v2428 = vpop.f32.mrb[0].mxu0
        %2429 = vmatprep.mubr.f32.mxu0 %v1509
        %2430 = vmatmul.mubr.f32.gmra.mrb[0].mxu0 %v1508
        %v2431 = vpop.f32.mrb[0].mxu0
        %v2432 = vadd.f32 %v2207, %v2431
        %v2433 = vpop.f32.mrb[0].mxu0
        %2434 = vmatprep.mubr.f32.mxu0 %v1518
        %2435 = vmatmul.mubr.f32.gmra.mrb[0].mxu0 %v1517
        %v2436 = vpop.f32.mrb[0].mxu0
        %v2437 = vadd.f32 %v2212, %v2436
        %v2438 = vpop.f32.mrb[0].mxu0
        %2439 = vmatprep.mubr.f32.mxu0 %v1527
        %2440 = vmatmul.mubr.f32.gmra.mrb[0].mxu0 %v1526
        %v2441 = vpop.f32.mrb[0].mxu0
        %v2442 = vadd.f32 %v2217, %v2441
        %v2443 = vpop.f32.mrb[0].mxu0
        %2444 = vmatprep.mubr.f32.mxu0 %v1536
        %2445 = vmatmul.mubr.f32.gmra.mrb[0].mxu0 %v1535
        %v2446 = vpop.f32.mrb[0].mxu0
        %v2447 = vadd.f32 %v2222, %v2446
        %v2448 = vpop.f32.mrb[0].mxu0
        %2449 = vmatprep.mubr.f32.mxu0 %v1545
        %2450 = vmatmul.mubr.f32.gmra.mrb[0].mxu0 %v1544
        %v2451 = vpop.f32.mrb[0].mxu0
        %v2452 = vadd.f32 %v2227, %v2451
        %v2453 = vpop.f32.mrb[0].mxu0
        %2454 = vmatprep.mubr.f32.mxu0 %v1554
        %2455 = vmatmul.mubr.f32.gmra.mrb[0].mxu0 %v1553
        %v2456 = vpop.f32.mrb[0].mxu0
        %v2457 = vadd.f32 %v2232, %v2456
        %v2458 = vpop.f32.mrb[0].mxu0
        %2459 = vmatprep.mubr.f32.mxu0 %v1563
        %2460 = vmatmul.mubr.f32.gmra.mrb[0].mxu0 %v1562
        %v2461 = vpop.f32.mrb[0].mxu0
        %v2462 = vadd.f32 %v2237, %v2461
        %v2463 = vpop.f32.mrb[0].mxu0
        %2464 = vmatprep.mubr.f32.mxu0 %v1572
        %2465 = vmatmul.mubr.f32.gmra.mrb[0].mxu0 %v1571
        %v2466 = vpop.f32.mrb[0].mxu0
        %v2467 = vadd.f32 %v2242, %v2466
        %v2468 = vpop.f32.mrb[0].mxu0
        %2469 = vmatprep.mubr.f32.mxu0 %v1581
        %2470 = vmatmul.mubr.f32.gmra.mrb[0].mxu0 %v1580
        %v2471 = vpop.f32.mrb[0].mxu0
        %v2472 = vadd.f32 %v2247, %v2471
        %v2473 = vpop.f32.mrb[0].mxu0
        %2474 = vmatprep.mubr.f32.mxu0 %v1590
        %2475 = vmatmul.mubr.f32.gmra.mrb[0].mxu0 %v1589
        %v2476 = vpop.f32.mrb[0].mxu0
        %v2477 = vadd.f32 %v2252, %v2476
        %v2478 = vpop.f32.mrb[0].mxu0
        %2479 = vmatprep.mubr.f32.mxu0 %v1599
        %2480 = vmatmul.mubr.f32.gmra.mrb[0].mxu0 %v1598
        %v2481 = vpop.f32.mrb[0].mxu0
        %v2482 = vadd.f32 %v2257, %v2481
        %v2483 = vpop.f32.mrb[0].mxu0
        %2484 = vmatprep.mubr.f32.mxu0 %v1608
        %2485 = vmatmul.mubr.f32.gmra.mrb[0].mxu0 %v1607
        %v2486 = vpop.f32.mrb[0].mxu0
        %v2487 = vadd.f32 %v2262, %v2486
        %v2488 = vpop.f32.mrb[0].mxu0
        %2489 = vmatprep.mubr.f32.mxu0 %v1617
        %2490 = vmatmul.mubr.f32.gmra.mrb[0].mxu0 %v1616
        %v2491 = vpop.f32.mrb[0].mxu0
        %v2492 = vadd.f32 %v2267, %v2491
        %v2493 = vpop.f32.mrb[0].mxu0
        %2494 = vmatprep.mubr.f32.mxu0 %v1626
        %2495 = vmatmul.mubr.f32.gmra.mrb[0].mxu0 %v1625
        %v2496 = vpop.f32.mrb[0].mxu0
        %v2497 = vadd.f32 %v2272, %v2496
        %v2498 = vpop.f32.mrb[0].mxu0
        %2499 = vmatprep.mubr.f32.mxu0 %v1635
        %2500 = vmatmul.mubr.f32.gmra.mrb[0].mxu0 %v1634
        %v2501 = vpop.f32.mrb[0].mxu0
        %v2502 = vadd.f32 %v2277, %v2501
        %v2503 = vpop.f32.mrb[0].mxu0
        %2504 = vmatprep.mubr.f32.mxu0 %v1644
        %2505 = vmatmul.mubr.f32.gmra.mrb[0].mxu0 %v1643
        %v2506 = vpop.f32.mrb[0].mxu0
        %v2507 = vadd.f32 %v2282, %v2506
        %v2508 = vpop.f32.mrb[0].mxu0
        %2509 = vmatprep.mubr.f32.mxu0 %v1653
        %2510 = vmatmul.mubr.f32.gmra.mrb[0].mxu0 %v1652
        %v2511 = vpop.f32.mrb[0].mxu0
        %v2512 = vadd.f32 %v2287, %v2511
        %v2513 = vpop.f32.mrb[0].mxu0
        %2514 = vmatprep.mubr.f32.mxu0 %v1662
        %2515 = vmatmul.mubr.f32.gmra.mrb[0].mxu0 %v1661
        %v2516 = vpop.f32.mrb[0].mxu0
        %v2517 = vadd.f32 %v2292, %v2516
        %v2518 = vpop.f32.mrb[0].mxu0
        %2519 = vmatprep.mubr.f32.mxu0 %v1671
        %2520 = vmatmul.mubr.f32.gmra.mrb[0].mxu0 %v1670
        %v2521 = vpop.f32.mrb[0].mxu0
        %v2522 = vadd.f32 %v2297, %v2521
        %v2523 = vpop.f32.mrb[0].mxu0
        %2524 = vmatprep.mubr.f32.mxu0 %v1680
        %2525 = vmatmul.mubr.f32.gmra.mrb[0].mxu0 %v1679
        %v2526 = vpop.f32.mrb[0].mxu0
        %v2527 = vadd.f32 %v2302, %v2526
        %v2528 = vpop.f32.mrb[0].mxu0
        %2529 = vmatprep.mubr.f32.mxu0 %v1689
        %2530 = vmatmul.mubr.f32.gmra.mrb[0].mxu0 %v1688
        %v2531 = vpop.f32.mrb[0].mxu0
        %v2532 = vadd.f32 %v2307, %v2531
        %v2533 = vpop.f32.mrb[0].mxu0
        %2534 = vmatprep.mubr.f32.mxu0 %v1698
        %2535 = vmatmul.mubr.f32.gmra.mrb[0].mxu0 %v1697
        %v2536 = vpop.f32.mrb[0].mxu0
        %v2537 = vadd.f32 %v2312, %v2536
        %v2538 = vpop.f32.mrb[0].mxu0
        %2539 = vmatprep.mubr.f32.mxu0 %v1707
        %2540 = vmatmul.mubr.f32.gmra.mrb[0].mxu0 %v1706
        %v2541 = vpop.f32.mrb[0].mxu0
        %v2542 = vadd.f32 %v2317, %v2541
        %v2543 = vpop.f32.mrb[0].mxu0
        %2544 = vmatprep.mubr.f32.mxu0 %v1716
        %2545 = vmatmul.mubr.f32.gmra.mrb[0].mxu0 %v1715
        %v2546 = vpop.f32.mrb[0].mxu0
        %v2547 = vadd.f32 %v2322, %v2546
        %v2548 = vpop.f32.mrb[0].mxu0
        %2549 = vmatprep.mubr.f32.mxu0 %v1725
        %2550 = vmatmul.mubr.f32.gmra.mrb[0].mxu0 %v1724
        %v2551 = vpop.f32.mrb[0].mxu0
        %v2552 = vadd.f32 %v2327, %v2551
        %v2553 = vpop.f32.mrb[0].mxu0
        %2554 = vdwg.mxu0
        %2555 = vmatprep.subr.mxu0 0.0
        %2556 = vmatpush1.msra.mxu0 %v1825
        %2557 = vmatprep.subr.mxu0 0.0
        %2558 = vmatpush1.msra.mxu0 %v1826
        %2559 = vmatprep.subr.mxu0 0.0
        %2560 = vmatpush1.msra.mxu0 %v1827
        %2561 = vmatprep.subr.mxu0 0.0
        %2562 = vmatpush1.msra.mxu0 %v1828
        %2563 = vmatprep.subr.mxu0 0.0
        %2564 = vmatpush1.msra.mxu0 %v1829
        %2565 = vmatprep.subr.mxu0 0.0
        %2566 = vmatpush1.msra.mxu0 %v1830
        %2567 = vmatprep.subr.mxu0 0.0
        %2568 = vmatpush1.msra.mxu0 %v1831
        %2569 = vmatprep.subr.mxu0 0.0
        %2570 = vmatpush1.msra.mxu0 %v1832
        %2571 = vmatprep.subr.mxu0 0.0
        %2572 = vmatpush1.msra.mxu0 %v1833
        %2573 = vmatprep.subr.mxu0 0.0
        %2574 = vmatpush1.msra.mxu0 %v1834
        %2575 = vmatprep.subr.mxu0 0.0
        %2576 = vmatpush1.msra.mxu0 %v1835
        %2577 = vmatprep.subr.mxu0 0.0
        %2578 = vmatpush1.msra.mxu0 %v1836
        %2579 = vmatprep.subr.mxu0 0.0
        %2580 = vmatpush1.msra.mxu0 %v1837
        %2581 = vmatprep.subr.mxu0 0.0
        %2582 = vmatpush1.msra.mxu0 %v1838
        %2583 = vmatprep.subr.mxu0 0.0
        %2584 = vmatpush1.msra.mxu0 %v1839
        %2585 = vmatprep.subr.mxu0 0.0
        %2586 = vmatpush1.msra.mxu0 %v1840
        %2587 = vmatprep.subr.mxu0 0.0
        %2588 = vmatpush1.msra.mxu0 %v1841
        %2589 = vmatprep.subr.mxu0 0.0
        %2590 = vmatpush1.msra.mxu0 %v1842
        %2591 = vmatprep.subr.mxu0 0.0
        %2592 = vmatpush1.msra.mxu0 %v1843
        %2593 = vmatprep.subr.mxu0 0.0
        %2594 = vmatpush1.msra.mxu0 %v1844
        %2595 = vmatprep.subr.mxu0 0.0
        %2596 = vmatpush1.msra.mxu0 %v1845
        %2597 = vmatprep.subr.mxu0 0.0
        %2598 = vmatpush1.msra.mxu0 %v1846
        %2599 = vmatprep.subr.mxu0 0.0
        %2600 = vmatpush1.msra.mxu0 %v1847
        %2601 = vmatprep.subr.mxu0 0.0
        %2602 = vmatpush1.msra.mxu0 %v1848
        %2603 = vmatprep.subr.mxu0 0.0
        %2604 = vmatpush1.msra.mxu0 %v1849
        %2605 = vmatprep.subr.mxu0 0.0
        %2606 = vmatpush1.msra.mxu0 %v1850
        %2607 = vmatprep.subr.mxu0 0.0
        %2608 = vmatpush1.msra.mxu0 %v1851
        %2609 = vmatprep.subr.mxu0 0.0
        %2610 = vmatpush1.msra.mxu0 %v1852
        %2611 = vmatprep.subr.mxu0 0.0
        %2612 = vmatpush1.msra.mxu0 %v1853
        %2613 = vmatprep.subr.mxu0 0.0
        %2614 = vmatpush1.msra.mxu0 %v1854
        %2615 = vmatprep.subr.mxu0 0.0
        %2616 = vmatpush1.msra.mxu0 %v1855
        %2617 = vmatprep.subr.mxu0 0.0
        %2618 = vmatpush1.msra.mxu0 %v1856
        %2619 = vmatprep.mubr.f32.mxu0 %v1448
        %2620 = vmatmul.mubr.f32.gmra.mrb[0].mxu0 %v1447
        %v2621 = vpop.f32.mrb[0].mxu0
        %v2622 = vadd.f32 %v2397, %v2621
        %v2623 = vpop.f32.mrb[0].mxu0
        %2624 = vmatprep.mubr.f32.mxu0 %v1457
        %2625 = vmatmul.mubr.f32.gmra.mrb[0].mxu0 %v1456
        %v2626 = vpop.f32.mrb[0].mxu0
        %v2627 = vadd.f32 %v2402, %v2626
        %v2628 = vpop.f32.mrb[0].mxu0
        %2629 = vmatprep.mubr.f32.mxu0 %v1466
        %2630 = vmatmul.mubr.f32.gmra.mrb[0].mxu0 %v1465
        %v2631 = vpop.f32.mrb[0].mxu0
        %v2632 = vadd.f32 %v2407, %v2631
        %v2633 = vpop.f32.mrb[0].mxu0
        %2634 = vmatprep.mubr.f32.mxu0 %v1475
        %2635 = vmatmul.mubr.f32.gmra.mrb[0].mxu0 %v1474
        %v2636 = vpop.f32.mrb[0].mxu0
        %v2637 = vadd.f32 %v2412, %v2636
        %v2638 = vpop.f32.mrb[0].mxu0
        %2639 = vmatprep.mubr.f32.mxu0 %v1484
        %2640 = vmatmul.mubr.f32.gmra.mrb[0].mxu0 %v1483
        %v2641 = vpop.f32.mrb[0].mxu0
        %v2642 = vadd.f32 %v2417, %v2641
        %v2643 = vpop.f32.mrb[0].mxu0
        %2644 = vmatprep.mubr.f32.mxu0 %v1493
        %2645 = vmatmul.mubr.f32.gmra.mrb[0].mxu0 %v1492
        %v2646 = vpop.f32.mrb[0].mxu0
        %v2647 = vadd.f32 %v2422, %v2646
        %v2648 = vpop.f32.mrb[0].mxu0
        %2649 = vmatprep.mubr.f32.mxu0 %v1502
        %2650 = vmatmul.mubr.f32.gmra.mrb[0].mxu0 %v1501
        %v2651 = vpop.f32.mrb[0].mxu0
        %v2652 = vadd.f32 %v2427, %v2651
        %v2653 = vpop.f32.mrb[0].mxu0
        %2654 = vmatprep.mubr.f32.mxu0 %v1511
        %2655 = vmatmul.mubr.f32.gmra.mrb[0].mxu0 %v1510
        %v2656 = vpop.f32.mrb[0].mxu0
        %v2657 = vadd.f32 %v2432, %v2656
        %v2658 = vpop.f32.mrb[0].mxu0
        %2659 = vmatprep.mubr.f32.mxu0 %v1520
        %2660 = vmatmul.mubr.f32.gmra.mrb[0].mxu0 %v1519
        %v2661 = vpop.f32.mrb[0].mxu0
        %v2662 = vadd.f32 %v2437, %v2661
        %v2663 = vpop.f32.mrb[0].mxu0
        %2664 = vmatprep.mubr.f32.mxu0 %v1529
        %2665 = vmatmul.mubr.f32.gmra.mrb[0].mxu0 %v1528
        %v2666 = vpop.f32.mrb[0].mxu0
        %v2667 = vadd.f32 %v2442, %v2666
        %v2668 = vpop.f32.mrb[0].mxu0
        %2669 = vmatprep.mubr.f32.mxu0 %v1538
        %2670 = vmatmul.mubr.f32.gmra.mrb[0].mxu0 %v1537
        %v2671 = vpop.f32.mrb[0].mxu0
        %v2672 = vadd.f32 %v2447, %v2671
        %v2673 = vpop.f32.mrb[0].mxu0
        %2674 = vmatprep.mubr.f32.mxu0 %v1547
        %2675 = vmatmul.mubr.f32.gmra.mrb[0].mxu0 %v1546
        %v2676 = vpop.f32.mrb[0].mxu0
        %v2677 = vadd.f32 %v2452, %v2676
        %v2678 = vpop.f32.mrb[0].mxu0
        %2679 = vmatprep.mubr.f32.mxu0 %v1556
        %2680 = vmatmul.mubr.f32.gmra.mrb[0].mxu0 %v1555
        %v2681 = vpop.f32.mrb[0].mxu0
        %v2682 = vadd.f32 %v2457, %v2681
        %v2683 = vpop.f32.mrb[0].mxu0
        %2684 = vmatprep.mubr.f32.mxu0 %v1565
        %2685 = vmatmul.mubr.f32.gmra.mrb[0].mxu0 %v1564
        %v2686 = vpop.f32.mrb[0].mxu0
        %v2687 = vadd.f32 %v2462, %v2686
        %v2688 = vpop.f32.mrb[0].mxu0
        %2689 = vmatprep.mubr.f32.mxu0 %v1574
        %2690 = vmatmul.mubr.f32.gmra.mrb[0].mxu0 %v1573
        %v2691 = vpop.f32.mrb[0].mxu0
        %v2692 = vadd.f32 %v2467, %v2691
        %v2693 = vpop.f32.mrb[0].mxu0
        %2694 = vmatprep.mubr.f32.mxu0 %v1583
        %2695 = vmatmul.mubr.f32.gmra.mrb[0].mxu0 %v1582
        %v2696 = vpop.f32.mrb[0].mxu0
        %v2697 = vadd.f32 %v2472, %v2696
        %v2698 = vpop.f32.mrb[0].mxu0
        %2699 = vmatprep.mubr.f32.mxu0 %v1592
        %2700 = vmatmul.mubr.f32.gmra.mrb[0].mxu0 %v1591
        %v2701 = vpop.f32.mrb[0].mxu0
        %v2702 = vadd.f32 %v2477, %v2701
        %v2703 = vpop.f32.mrb[0].mxu0
        %2704 = vmatprep.mubr.f32.mxu0 %v1601
        %2705 = vmatmul.mubr.f32.gmra.mrb[0].mxu0 %v1600
        %v2706 = vpop.f32.mrb[0].mxu0
        %v2707 = vadd.f32 %v2482, %v2706
        %v2708 = vpop.f32.mrb[0].mxu0
        %2709 = vmatprep.mubr.f32.mxu0 %v1610
        %2710 = vmatmul.mubr.f32.gmra.mrb[0].mxu0 %v1609
        %v2711 = vpop.f32.mrb[0].mxu0
        %v2712 = vadd.f32 %v2487, %v2711
        %v2713 = vpop.f32.mrb[0].mxu0
        %2714 = vmatprep.mubr.f32.mxu0 %v1619
        %2715 = vmatmul.mubr.f32.gmra.mrb[0].mxu0 %v1618
        %v2716 = vpop.f32.mrb[0].mxu0
        %v2717 = vadd.f32 %v2492, %v2716
        %v2718 = vpop.f32.mrb[0].mxu0
        %2719 = vmatprep.mubr.f32.mxu0 %v1628
        %2720 = vmatmul.mubr.f32.gmra.mrb[0].mxu0 %v1627
        %v2721 = vpop.f32.mrb[0].mxu0
        %v2722 = vadd.f32 %v2497, %v2721
        %v2723 = vpop.f32.mrb[0].mxu0
        %2724 = vmatprep.mubr.f32.mxu0 %v1637
        %2725 = vmatmul.mubr.f32.gmra.mrb[0].mxu0 %v1636
        %v2726 = vpop.f32.mrb[0].mxu0
        %v2727 = vadd.f32 %v2502, %v2726
        %v2728 = vpop.f32.mrb[0].mxu0
        %2729 = vmatprep.mubr.f32.mxu0 %v1646
        %2730 = vmatmul.mubr.f32.gmra.mrb[0].mxu0 %v1645
        %v2731 = vpop.f32.mrb[0].mxu0
        %v2732 = vadd.f32 %v2507, %v2731
        %v2733 = vpop.f32.mrb[0].mxu0
        %2734 = vmatprep.mubr.f32.mxu0 %v1655
        %2735 = vmatmul.mubr.f32.gmra.mrb[0].mxu0 %v1654
        %v2736 = vpop.f32.mrb[0].mxu0
        %v2737 = vadd.f32 %v2512, %v2736
        %v2738 = vpop.f32.mrb[0].mxu0
        %2739 = vmatprep.mubr.f32.mxu0 %v1664
        %2740 = vmatmul.mubr.f32.gmra.mrb[0].mxu0 %v1663
        %v2741 = vpop.f32.mrb[0].mxu0
        %v2742 = vadd.f32 %v2517, %v2741
        %v2743 = vpop.f32.mrb[0].mxu0
        %2744 = vmatprep.mubr.f32.mxu0 %v1673
        %2745 = vmatmul.mubr.f32.gmra.mrb[0].mxu0 %v1672
        %v2746 = vpop.f32.mrb[0].mxu0
        %v2747 = vadd.f32 %v2522, %v2746
        %v2748 = vpop.f32.mrb[0].mxu0
        %2749 = vmatprep.mubr.f32.mxu0 %v1682
        %2750 = vmatmul.mubr.f32.gmra.mrb[0].mxu0 %v1681
        %v2751 = vpop.f32.mrb[0].mxu0
        %v2752 = vadd.f32 %v2527, %v2751
        %v2753 = vpop.f32.mrb[0].mxu0
        %2754 = vmatprep.mubr.f32.mxu0 %v1691
        %2755 = vmatmul.mubr.f32.gmra.mrb[0].mxu0 %v1690
        %v2756 = vpop.f32.mrb[0].mxu0
        %v2757 = vadd.f32 %v2532, %v2756
        %v2758 = vpop.f32.mrb[0].mxu0
        %2759 = vmatprep.mubr.f32.mxu0 %v1700
        %2760 = vmatmul.mubr.f32.gmra.mrb[0].mxu0 %v1699
        %v2761 = vpop.f32.mrb[0].mxu0
        %v2762 = vadd.f32 %v2537, %v2761
        %v2763 = vpop.f32.mrb[0].mxu0
        %2764 = vmatprep.mubr.f32.mxu0 %v1709
        %2765 = vmatmul.mubr.f32.gmra.mrb[0].mxu0 %v1708
        %v2766 = vpop.f32.mrb[0].mxu0
        %v2767 = vadd.f32 %v2542, %v2766
        %v2768 = vpop.f32.mrb[0].mxu0
        %2769 = vmatprep.mubr.f32.mxu0 %v1718
        %2770 = vmatmul.mubr.f32.gmra.mrb[0].mxu0 %v1717
        %v2771 = vpop.f32.mrb[0].mxu0
        %v2772 = vadd.f32 %v2547, %v2771
        %v2773 = vpop.f32.mrb[0].mxu0
        %2774 = vmatprep.mubr.f32.mxu0 %v1727
        %2775 = vmatmul.mubr.f32.gmra.mrb[0].mxu0 %v1726
        %v2776 = vpop.f32.mrb[0].mxu0
        %v2777 = vadd.f32 %v2552, %v2776
        %v2778 = vpop.f32.mrb[0].mxu0
        %2779 = vdwg.mxu0
        %2780 = vmatprep.subr.mxu0 0.0
        %2781 = vmatpush1.msra.mxu0 %v1857
        %2782 = vmatprep.subr.mxu0 0.0
        %2783 = vmatpush1.msra.mxu0 %v1858
        %2784 = vmatprep.subr.mxu0 0.0
        %2785 = vmatpush1.msra.mxu0 %v1859
        %2786 = vmatprep.subr.mxu0 0.0
        %2787 = vmatpush1.msra.mxu0 %v1860
        %2788 = vmatprep.subr.mxu0 0.0
        %2789 = vmatpush1.msra.mxu0 %v1861
        %2790 = vmatprep.subr.mxu0 0.0
        %2791 = vmatpush1.msra.mxu0 %v1862
        %2792 = vmatprep.subr.mxu0 0.0
        %2793 = vmatpush1.msra.mxu0 %v1863
        %2794 = vmatprep.subr.mxu0 0.0
        %2795 = vmatpush1.msra.mxu0 %v1864
        %2796 = vmatprep.subr.mxu0 0.0
        %2797 = vmatpush1.msra.mxu0 %v1865
        %2798 = vmatprep.subr.mxu0 0.0
        %2799 = vmatpush1.msra.mxu0 %v1866
        %2800 = vmatprep.subr.mxu0 0.0
        %2801 = vmatpush1.msra.mxu0 %v1867
        %2802 = vmatprep.subr.mxu0 0.0
        %2803 = vmatpush1.msra.mxu0 %v1868
        %2804 = vmatprep.subr.mxu0 0.0
        %2805 = vmatpush1.msra.mxu0 %v1869
        %2806 = vmatprep.subr.mxu0 0.0
        %2807 = vmatpush1.msra.mxu0 %v1870
        %2808 = vmatprep.subr.mxu0 0.0
        %2809 = vmatpush1.msra.mxu0 %v1871
        %2810 = vmatprep.subr.mxu0 0.0
        %2811 = vmatpush1.msra.mxu0 %v1872
        %2812 = vmatprep.subr.mxu0 0.0
        %2813 = vmatpush1.msra.mxu0 0.0
        %2814 = vmatprep.subr.mxu0 0.0
        %2815 = vmatpush1.msra.mxu0 0.0
        %2816 = vmatprep.subr.mxu0 0.0
        %2817 = vmatpush1.msra.mxu0 0.0
        %2818 = vmatprep.subr.mxu0 0.0
        %2819 = vmatpush1.msra.mxu0 0.0
        %2820 = vmatprep.subr.mxu0 0.0
        %2821 = vmatpush1.msra.mxu0 0.0
        %2822 = vmatprep.subr.mxu0 0.0
        %2823 = vmatpush1.msra.mxu0 0.0
        %2824 = vmatprep.subr.mxu0 0.0
        %2825 = vmatpush1.msra.mxu0 0.0
        %2826 = vmatprep.subr.mxu0 0.0
        %2827 = vmatpush1.msra.mxu0 0.0
        %2828 = vmatprep.subr.mxu0 0.0
        %2829 = vmatpush1.msra.mxu0 0.0
        %2830 = vmatprep.subr.mxu0 0.0
        %2831 = vmatpush1.msra.mxu0 0.0
        %2832 = vmatprep.subr.mxu0 0.0
        %2833 = vmatpush1.msra.mxu0 0.0
        %2834 = vmatprep.subr.mxu0 0.0
        %2835 = vmatpush1.msra.mxu0 0.0
        %2836 = vmatprep.subr.mxu0 0.0
        %2837 = vmatpush1.msra.mxu0 0.0
        %2838 = vmatprep.subr.mxu0 0.0
        %2839 = vmatpush1.msra.mxu0 0.0
        %2840 = vmatprep.subr.mxu0 0.0
        %2841 = vmatpush1.msra.mxu0 0.0
        %2842 = vmatprep.subr.mxu0 0.0
        %2843 = vmatpush1.msra.mxu0 0.0
        %2844 = vmatprep.mubr.f32.mxu0 0.0
        %2845 = vmatmul.mubr.f32.gmra.mrb[0].mxu0 %v1449
        %v2846 = vpop.f32.mrb[0].mxu0
        %v2847 = vadd.f32 %v2622, %v2846
        %v2848 = vpop.f32.mrb[0].mxu0
        %2849 = vmatprep.mubr.f32.mxu0 0.0
        %2850 = vmatmul.mubr.f32.gmra.mrb[0].mxu0 %v1458
        %v2851 = vpop.f32.mrb[0].mxu0
        %v2852 = vadd.f32 %v2627, %v2851
        %v2853 = vpop.f32.mrb[0].mxu0
        %2854 = vmatprep.mubr.f32.mxu0 0.0
        %2855 = vmatmul.mubr.f32.gmra.mrb[0].mxu0 %v1467
        %v2856 = vpop.f32.mrb[0].mxu0
        %v2857 = vadd.f32 %v2632, %v2856
        %v2858 = vpop.f32.mrb[0].mxu0
        %2859 = vmatprep.mubr.f32.mxu0 0.0
        %2860 = vmatmul.mubr.f32.gmra.mrb[0].mxu0 %v1476
        %v2861 = vpop.f32.mrb[0].mxu0
        %v2862 = vadd.f32 %v2637, %v2861
        %v2863 = vpop.f32.mrb[0].mxu0
        %2864 = vmatprep.mubr.f32.mxu0 0.0
        %2865 = vmatmul.mubr.f32.gmra.mrb[0].mxu0 %v1485
        %v2866 = vpop.f32.mrb[0].mxu0
        %v2867 = vadd.f32 %v2642, %v2866
        %v2868 = vpop.f32.mrb[0].mxu0
        %2869 = vmatprep.mubr.f32.mxu0 0.0
        %2870 = vmatmul.mubr.f32.gmra.mrb[0].mxu0 %v1494
        %v2871 = vpop.f32.mrb[0].mxu0
        %v2872 = vadd.f32 %v2647, %v2871
        %v2873 = vpop.f32.mrb[0].mxu0
        %2874 = vmatprep.mubr.f32.mxu0 0.0
        %2875 = vmatmul.mubr.f32.gmra.mrb[0].mxu0 %v1503
        %v2876 = vpop.f32.mrb[0].mxu0
        %v2877 = vadd.f32 %v2652, %v2876
        %v2878 = vpop.f32.mrb[0].mxu0
        %2879 = vmatprep.mubr.f32.mxu0 0.0
        %2880 = vmatmul.mubr.f32.gmra.mrb[0].mxu0 %v1512
        %v2881 = vpop.f32.mrb[0].mxu0
        %v2882 = vadd.f32 %v2657, %v2881
        %v2883 = vpop.f32.mrb[0].mxu0
        %2884 = vmatprep.mubr.f32.mxu0 0.0
        %2885 = vmatmul.mubr.f32.gmra.mrb[0].mxu0 %v1521
        %v2886 = vpop.f32.mrb[0].mxu0
        %v2887 = vadd.f32 %v2662, %v2886
        %v2888 = vpop.f32.mrb[0].mxu0
        %2889 = vmatprep.mubr.f32.mxu0 0.0
        %2890 = vmatmul.mubr.f32.gmra.mrb[0].mxu0 %v1530
        %v2891 = vpop.f32.mrb[0].mxu0
        %v2892 = vadd.f32 %v2667, %v2891
        %v2893 = vpop.f32.mrb[0].mxu0
        %2894 = vmatprep.mubr.f32.mxu0 0.0
        %2895 = vmatmul.mubr.f32.gmra.mrb[0].mxu0 %v1539
        %v2896 = vpop.f32.mrb[0].mxu0
        %v2897 = vadd.f32 %v2672, %v2896
        %v2898 = vpop.f32.mrb[0].mxu0
        %2899 = vmatprep.mubr.f32.mxu0 0.0
        %2900 = vmatmul.mubr.f32.gmra.mrb[0].mxu0 %v1548
        %v2901 = vpop.f32.mrb[0].mxu0
        %v2902 = vadd.f32 %v2677, %v2901
        %v2903 = vpop.f32.mrb[0].mxu0
        %2904 = vmatprep.mubr.f32.mxu0 0.0
        %2905 = vmatmul.mubr.f32.gmra.mrb[0].mxu0 %v1557
        %v2906 = vpop.f32.mrb[0].mxu0
        %v2907 = vadd.f32 %v2682, %v2906
        %v2908 = vpop.f32.mrb[0].mxu0
        %2909 = vmatprep.mubr.f32.mxu0 0.0
        %2910 = vmatmul.mubr.f32.gmra.mrb[0].mxu0 %v1566
        %v2911 = vpop.f32.mrb[0].mxu0
        %v2912 = vadd.f32 %v2687, %v2911
        %v2913 = vpop.f32.mrb[0].mxu0
        %2914 = vmatprep.mubr.f32.mxu0 0.0
        %2915 = vmatmul.mubr.f32.gmra.mrb[0].mxu0 %v1575
        %v2916 = vpop.f32.mrb[0].mxu0
        %v2917 = vadd.f32 %v2692, %v2916
        %v2918 = vpop.f32.mrb[0].mxu0
        %2919 = vmatprep.mubr.f32.mxu0 0.0
        %2920 = vmatmul.mubr.f32.gmra.mrb[0].mxu0 %v1584
        %v2921 = vpop.f32.mrb[0].mxu0
        %v2922 = vadd.f32 %v2697, %v2921
        %v2923 = vpop.f32.mrb[0].mxu0
        %2924 = vmatprep.mubr.f32.mxu0 0.0
        %2925 = vmatmul.mubr.f32.gmra.mrb[0].mxu0 %v1593
        %v2926 = vpop.f32.mrb[0].mxu0
        %v2927 = vadd.f32 %v2702, %v2926
        %v2928 = vpop.f32.mrb[0].mxu0
        %2929 = vmatprep.mubr.f32.mxu0 0.0
        %2930 = vmatmul.mubr.f32.gmra.mrb[0].mxu0 %v1602
        %v2931 = vpop.f32.mrb[0].mxu0
        %v2932 = vadd.f32 %v2707, %v2931
        %v2933 = vpop.f32.mrb[0].mxu0
        %2934 = vmatprep.mubr.f32.mxu0 0.0
        %2935 = vmatmul.mubr.f32.gmra.mrb[0].mxu0 %v1611
        %v2936 = vpop.f32.mrb[0].mxu0
        %v2937 = vadd.f32 %v2712, %v2936
        %v2938 = vpop.f32.mrb[0].mxu0
        %2939 = vmatprep.mubr.f32.mxu0 0.0
        %2940 = vmatmul.mubr.f32.gmra.mrb[0].mxu0 %v1620
        %v2941 = vpop.f32.mrb[0].mxu0
        %v2942 = vadd.f32 %v2717, %v2941
        %v2943 = vpop.f32.mrb[0].mxu0
        %2944 = vmatprep.mubr.f32.mxu0 0.0
        %2945 = vmatmul.mubr.f32.gmra.mrb[0].mxu0 %v1629
        %v2946 = vpop.f32.mrb[0].mxu0
        %v2947 = vadd.f32 %v2722, %v2946
        %v2948 = vpop.f32.mrb[0].mxu0
        %2949 = vmatprep.mubr.f32.mxu0 0.0
        %2950 = vmatmul.mubr.f32.gmra.mrb[0].mxu0 %v1638
        %v2951 = vpop.f32.mrb[0].mxu0
        %v2952 = vadd.f32 %v2727, %v2951
        %v2953 = vpop.f32.mrb[0].mxu0
        %2954 = vmatprep.mubr.f32.mxu0 0.0
        %2955 = vmatmul.mubr.f32.gmra.mrb[0].mxu0 %v1647
        %v2956 = vpop.f32.mrb[0].mxu0
        %v2957 = vadd.f32 %v2732, %v2956
        %v2958 = vpop.f32.mrb[0].mxu0
        %2959 = vmatprep.mubr.f32.mxu0 0.0
        %2960 = vmatmul.mubr.f32.gmra.mrb[0].mxu0 %v1656
        %v2961 = vpop.f32.mrb[0].mxu0
        %v2962 = vadd.f32 %v2737, %v2961
        %v2963 = vpop.f32.mrb[0].mxu0
        %2964 = vmatprep.mubr.f32.mxu0 0.0
        %2965 = vmatmul.mubr.f32.gmra.mrb[0].mxu0 %v1665
        %v2966 = vpop.f32.mrb[0].mxu0
        %v2967 = vadd.f32 %v2742, %v2966
        %v2968 = vpop.f32.mrb[0].mxu0
        %2969 = vmatprep.mubr.f32.mxu0 0.0
        %2970 = vmatmul.mubr.f32.gmra.mrb[0].mxu0 %v1674
        %v2971 = vpop.f32.mrb[0].mxu0
        %v2972 = vadd.f32 %v2747, %v2971
        %v2973 = vpop.f32.mrb[0].mxu0
        %2974 = vmatprep.mubr.f32.mxu0 0.0
        %2975 = vmatmul.mubr.f32.gmra.mrb[0].mxu0 %v1683
        %v2976 = vpop.f32.mrb[0].mxu0
        %v2977 = vadd.f32 %v2752, %v2976
        %v2978 = vpop.f32.mrb[0].mxu0
        %2979 = vmatprep.mubr.f32.mxu0 0.0
        %2980 = vmatmul.mubr.f32.gmra.mrb[0].mxu0 %v1692
        %v2981 = vpop.f32.mrb[0].mxu0
        %v2982 = vadd.f32 %v2757, %v2981
        %v2983 = vpop.f32.mrb[0].mxu0
        %2984 = vmatprep.mubr.f32.mxu0 0.0
        %2985 = vmatmul.mubr.f32.gmra.mrb[0].mxu0 %v1701
        %v2986 = vpop.f32.mrb[0].mxu0
        %v2987 = vadd.f32 %v2762, %v2986
        %v2988 = vpop.f32.mrb[0].mxu0
        %2989 = vmatprep.mubr.f32.mxu0 0.0
        %2990 = vmatmul.mubr.f32.gmra.mrb[0].mxu0 %v1710
        %v2991 = vpop.f32.mrb[0].mxu0
        %v2992 = vadd.f32 %v2767, %v2991
        %v2993 = vpop.f32.mrb[0].mxu0
        %2994 = vmatprep.mubr.f32.mxu0 0.0
        %2995 = vmatmul.mubr.f32.gmra.mrb[0].mxu0 %v1719
        %v2996 = vpop.f32.mrb[0].mxu0
        %v2997 = vadd.f32 %v2772, %v2996
        %v2998 = vpop.f32.mrb[0].mxu0
        %2999 = vmatprep.mubr.f32.mxu0 0.0
        %3000 = vmatmul.mubr.f32.gmra.mrb[0].mxu0 %v1728
        %v3001 = vpop.f32.mrb[0].mxu0
        %v3002 = vadd.f32 %v2777, %v3001
        %v3003 = vpop.f32.mrb[0].mxu0
        %3004 = vdwg.mxu0
        %v3005 = vmax.f32 %v2847, 0.0
        %v3006 = vmax.f32 %v2852, 0.0
        %v3007 = vmax.f32 %v2857, 0.0
        %v3008 = vmax.f32 %v2862, 0.0
        %v3009 = vmax.f32 %v2867, 0.0
        %v3010 = vmax.f32 %v2872, 0.0
        %v3011 = vmax.f32 %v2877, 0.0
        %v3012 = vmax.f32 %v2882, 0.0
        %v3013 = vmax.f32 %v2887, 0.0
        %v3014 = vmax.f32 %v2892, 0.0
        %v3015 = vmax.f32 %v2897, 0.0
        %v3016 = vmax.f32 %v2902, 0.0
        %v3017 = vmax.f32 %v2907, 0.0
        %v3018 = vmax.f32 %v2912, 0.0
        %v3019 = vmax.f32 %v2917, 0.0
        %v3020 = vmax.f32 %v2922, 0.0
        %v3021 = vmax.f32 %v2927, 0.0
        %v3022 = vmax.f32 %v2932, 0.0
        %v3023 = vmax.f32 %v2937, 0.0
        %v3024 = vmax.f32 %v2942, 0.0
        %v3025 = vmax.f32 %v2947, 0.0
        %v3026 = vmax.f32 %v2952, 0.0
        %v3027 = vmax.f32 %v2957, 0.0
        %v3028 = vmax.f32 %v2962, 0.0
        %v3029 = vmax.f32 %v2967, 0.0
        %v3030 = vmax.f32 %v2972, 0.0
        %v3031 = vmax.f32 %v2977, 0.0
        %v3032 = vmax.f32 %v2982, 0.0
        %v3033 = vmax.f32 %v2987, 0.0
        %v3034 = vmax.f32 %v2992, 0.0
        %v3035 = vmax.f32 %v2997, 0.0
        %v3036 = vmax.f32 %v3002, 0.0
        %v3037 = vld [vmem:[%s5] sm:$0xff]
        %v3038 = vld [vmem:[%s5 + $0x8] sm:$0xff]
        %v3039 = vld [vmem:[%s5 + $0x10] sm:$0xff]
        %v3040 = vld [vmem:[%s5 + $0x18] sm:$0xff]
        %v3041 = vld [vmem:[%s5 + $0x20] sm:$0xff]
        %v3042 = vld [vmem:[%s5 + $0x28] sm:$0xff]
        %v3043 = vld [vmem:[%s5 + $0x30] sm:$0xff]
        %v3044 = vld [vmem:[%s5 + $0x38] sm:$0xff]
        %v3045 = vld [vmem:[%s5 + $0x40] sm:$0xff]
        %v3046 = vld [vmem:[%s5 + $0x48] sm:$0xff]
        %v3047 = vld [vmem:[%s5 + $0x50] sm:$0xff]
        %v3048 = vld [vmem:[%s5 + $0x58] sm:$0xff]
        %v3049 = vld [vmem:[%s5 + $0x60] sm:$0xff]
        %v3050 = vld [vmem:[%s5 + $0x68] sm:$0xff]
        %v3051 = vld [vmem:[%s5 + $0x70] sm:$0xff]
        %v3052 = vld [vmem:[%s5 + $0x78] sm:$0xff]
        %v3053 = vld [vmem:[%s6] sm:$0x1]
        %v3055 = vlaneseq
        %v3056 = vshrl.u32 %v3055, 7
        %v3057 = vsub.s32 0, %v3056
        %v3058 = vrot.slane %v3053, %v3057
        %3060 = vmatprep.subr.mxu0 0.0
        %3061 = vmatpush1.msra.mxu0 %v3037
        %3062 = vmatprep.subr.mxu0 0.0
        %3063 = vmatpush1.msra.mxu0 %v3038
        %3064 = vmatprep.subr.mxu0 0.0
        %3065 = vmatpush1.msra.mxu0 %v3039
        %3066 = vmatprep.subr.mxu0 0.0
        %3067 = vmatpush1.msra.mxu0 %v3040
        %3068 = vmatprep.subr.mxu0 0.0
        %3069 = vmatpush1.msra.mxu0 %v3041
        %3070 = vmatprep.subr.mxu0 0.0
        %3071 = vmatpush1.msra.mxu0 %v3042
        %3072 = vmatprep.subr.mxu0 0.0
        %3073 = vmatpush1.msra.mxu0 %v3043
        %3074 = vmatprep.subr.mxu0 0.0
        %3075 = vmatpush1.msra.mxu0 %v3044
        %3076 = vmatprep.subr.mxu0 0.0
        %3077 = vmatpush1.msra.mxu0 %v3045
        %3078 = vmatprep.subr.mxu0 0.0
        %3079 = vmatpush1.msra.mxu0 %v3046
        %3080 = vmatprep.subr.mxu0 0.0
        %3081 = vmatpush1.msra.mxu0 %v3047
        %3082 = vmatprep.subr.mxu0 0.0
        %3083 = vmatpush1.msra.mxu0 %v3048
        %3084 = vmatprep.subr.mxu0 0.0
        %3085 = vmatpush1.msra.mxu0 %v3049
        %3086 = vmatprep.subr.mxu0 0.0
        %3087 = vmatpush1.msra.mxu0 %v3050
        %3088 = vmatprep.subr.mxu0 0.0
        %3089 = vmatpush1.msra.mxu0 %v3051
        %3090 = vmatprep.subr.mxu0 0.0
        %3091 = vmatpush1.msra.mxu0 %v3052
        %3092 = vmatprep.subr.mxu0 0.0
        %3093 = vmatpush1.msra.mxu0 0.0
        %3094 = vmatprep.subr.mxu0 0.0
        %3095 = vmatpush1.msra.mxu0 0.0
        %3096 = vmatprep.subr.mxu0 0.0
        %3097 = vmatpush1.msra.mxu0 0.0
        %3098 = vmatprep.subr.mxu0 0.0
        %3099 = vmatpush1.msra.mxu0 0.0
        %3100 = vmatprep.subr.mxu0 0.0
        %3101 = vmatpush1.msra.mxu0 0.0
        %3102 = vmatprep.subr.mxu0 0.0
        %3103 = vmatpush1.msra.mxu0 0.0
        %3104 = vmatprep.subr.mxu0 0.0
        %3105 = vmatpush1.msra.mxu0 0.0
        %3106 = vmatprep.subr.mxu0 0.0
        %3107 = vmatpush1.msra.mxu0 0.0
        %3108 = vmatprep.subr.mxu0 0.0
        %3109 = vmatpush1.msra.mxu0 0.0
        %3110 = vmatprep.subr.mxu0 0.0
        %3111 = vmatpush1.msra.mxu0 0.0
        %3112 = vmatprep.subr.mxu0 0.0
        %3113 = vmatpush1.msra.mxu0 0.0
        %3114 = vmatprep.subr.mxu0 0.0
        %3115 = vmatpush1.msra.mxu0 0.0
        %3116 = vmatprep.subr.mxu0 0.0
        %3117 = vmatpush1.msra.mxu0 0.0
        %3118 = vmatprep.subr.mxu0 0.0
        %3119 = vmatpush1.msra.mxu0 0.0
        %3120 = vmatprep.subr.mxu0 0.0
        %3121 = vmatpush1.msra.mxu0 0.0
        %3122 = vmatprep.subr.mxu0 0.0
        %3123 = vmatpush1.msra.mxu0 0.0
        %3124 = vmatprep.mubr.f32.mxu0 0.0
        %3125 = vmatmul.mubr.f32.gmra.mrb[0].mxu0 %v3005
        %v3126 = vpop.f32.mrb[0].mxu0
        %v3127 = vadd.f32 %v3058, %v3126
        %v3128 = vpop.f32.mrb[0].mxu0
        %3129 = vmatprep.mubr.f32.mxu0 0.0
        %3130 = vmatmul.mubr.f32.gmra.mrb[0].mxu0 %v3006
        %v3131 = vpop.f32.mrb[0].mxu0
        %v3132 = vadd.f32 %v3058, %v3131
        %v3133 = vpop.f32.mrb[0].mxu0
        %3134 = vmatprep.mubr.f32.mxu0 0.0
        %3135 = vmatmul.mubr.f32.gmra.mrb[0].mxu0 %v3007
        %v3136 = vpop.f32.mrb[0].mxu0
        %v3137 = vadd.f32 %v3058, %v3136
        %v3138 = vpop.f32.mrb[0].mxu0
        %3139 = vmatprep.mubr.f32.mxu0 0.0
        %3140 = vmatmul.mubr.f32.gmra.mrb[0].mxu0 %v3008
        %v3141 = vpop.f32.mrb[0].mxu0
        %v3142 = vadd.f32 %v3058, %v3141
        %v3143 = vpop.f32.mrb[0].mxu0
        %3144 = vmatprep.mubr.f32.mxu0 0.0
        %3145 = vmatmul.mubr.f32.gmra.mrb[0].mxu0 %v3009
        %v3146 = vpop.f32.mrb[0].mxu0
        %v3147 = vadd.f32 %v3058, %v3146
        %v3148 = vpop.f32.mrb[0].mxu0
        %3149 = vmatprep.mubr.f32.mxu0 0.0
        %3150 = vmatmul.mubr.f32.gmra.mrb[0].mxu0 %v3010
        %v3151 = vpop.f32.mrb[0].mxu0
        %v3152 = vadd.f32 %v3058, %v3151
        %v3153 = vpop.f32.mrb[0].mxu0
        %3154 = vmatprep.mubr.f32.mxu0 0.0
        %3155 = vmatmul.mubr.f32.gmra.mrb[0].mxu0 %v3011
        %v3156 = vpop.f32.mrb[0].mxu0
        %v3157 = vadd.f32 %v3058, %v3156
        %v3158 = vpop.f32.mrb[0].mxu0
        %3159 = vmatprep.mubr.f32.mxu0 0.0
        %3160 = vmatmul.mubr.f32.gmra.mrb[0].mxu0 %v3012
        %v3161 = vpop.f32.mrb[0].mxu0
        %v3162 = vadd.f32 %v3058, %v3161
        %v3163 = vpop.f32.mrb[0].mxu0
        %3164 = vmatprep.mubr.f32.mxu0 0.0
        %3165 = vmatmul.mubr.f32.gmra.mrb[0].mxu0 %v3013
        %v3166 = vpop.f32.mrb[0].mxu0
        %v3167 = vadd.f32 %v3058, %v3166
        %v3168 = vpop.f32.mrb[0].mxu0
        %3169 = vmatprep.mubr.f32.mxu0 0.0
        %3170 = vmatmul.mubr.f32.gmra.mrb[0].mxu0 %v3014
        %v3171 = vpop.f32.mrb[0].mxu0
        %v3172 = vadd.f32 %v3058, %v3171
        %v3173 = vpop.f32.mrb[0].mxu0
        %3174 = vmatprep.mubr.f32.mxu0 0.0
        %3175 = vmatmul.mubr.f32.gmra.mrb[0].mxu0 %v3015
        %v3176 = vpop.f32.mrb[0].mxu0
        %v3177 = vadd.f32 %v3058, %v3176
        %v3178 = vpop.f32.mrb[0].mxu0
        %3179 = vmatprep.mubr.f32.mxu0 0.0
        %3180 = vmatmul.mubr.f32.gmra.mrb[0].mxu0 %v3016
        %v3181 = vpop.f32.mrb[0].mxu0
        %v3182 = vadd.f32 %v3058, %v3181
        %v3183 = vpop.f32.mrb[0].mxu0
        %3184 = vmatprep.mubr.f32.mxu0 0.0
        %3185 = vmatmul.mubr.f32.gmra.mrb[0].mxu0 %v3017
        %v3186 = vpop.f32.mrb[0].mxu0
        %v3187 = vadd.f32 %v3058, %v3186
        %v3188 = vpop.f32.mrb[0].mxu0
        %3189 = vmatprep.mubr.f32.mxu0 0.0
        %3190 = vmatmul.mubr.f32.gmra.mrb[0].mxu0 %v3018
        %v3191 = vpop.f32.mrb[0].mxu0
        %v3192 = vadd.f32 %v3058, %v3191
        %v3193 = vpop.f32.mrb[0].mxu0
        %3194 = vmatprep.mubr.f32.mxu0 0.0
        %3195 = vmatmul.mubr.f32.gmra.mrb[0].mxu0 %v3019
        %v3196 = vpop.f32.mrb[0].mxu0
        %v3197 = vadd.f32 %v3058, %v3196
        %v3198 = vpop.f32.mrb[0].mxu0
        %3199 = vmatprep.mubr.f32.mxu0 0.0
        %3200 = vmatmul.mubr.f32.gmra.mrb[0].mxu0 %v3020
        %v3201 = vpop.f32.mrb[0].mxu0
        %v3202 = vadd.f32 %v3058, %v3201
        %v3203 = vpop.f32.mrb[0].mxu0
        %3204 = vmatprep.mubr.f32.mxu0 0.0
        %3205 = vmatmul.mubr.f32.gmra.mrb[0].mxu0 %v3021
        %v3206 = vpop.f32.mrb[0].mxu0
        %v3207 = vadd.f32 %v3058, %v3206
        %v3208 = vpop.f32.mrb[0].mxu0
        %3209 = vmatprep.mubr.f32.mxu0 0.0
        %3210 = vmatmul.mubr.f32.gmra.mrb[0].mxu0 %v3022
        %v3211 = vpop.f32.mrb[0].mxu0
        %v3212 = vadd.f32 %v3058, %v3211
        %v3213 = vpop.f32.mrb[0].mxu0
        %3214 = vmatprep.mubr.f32.mxu0 0.0
        %3215 = vmatmul.mubr.f32.gmra.mrb[0].mxu0 %v3023
        %v3216 = vpop.f32.mrb[0].mxu0
        %v3217 = vadd.f32 %v3058, %v3216
        %v3218 = vpop.f32.mrb[0].mxu0
        %3219 = vmatprep.mubr.f32.mxu0 0.0
        %3220 = vmatmul.mubr.f32.gmra.mrb[0].mxu0 %v3024
        %v3221 = vpop.f32.mrb[0].mxu0
        %v3222 = vadd.f32 %v3058, %v3221
        %v3223 = vpop.f32.mrb[0].mxu0
        %3224 = vmatprep.mubr.f32.mxu0 0.0
        %3225 = vmatmul.mubr.f32.gmra.mrb[0].mxu0 %v3025
        %v3226 = vpop.f32.mrb[0].mxu0
        %v3227 = vadd.f32 %v3058, %v3226
        %v3228 = vpop.f32.mrb[0].mxu0
        %3229 = vmatprep.mubr.f32.mxu0 0.0
        %3230 = vmatmul.mubr.f32.gmra.mrb[0].mxu0 %v3026
        %v3231 = vpop.f32.mrb[0].mxu0
        %v3232 = vadd.f32 %v3058, %v3231
        %v3233 = vpop.f32.mrb[0].mxu0
        %3234 = vmatprep.mubr.f32.mxu0 0.0
        %3235 = vmatmul.mubr.f32.gmra.mrb[0].mxu0 %v3027
        %v3236 = vpop.f32.mrb[0].mxu0
        %v3237 = vadd.f32 %v3058, %v3236
        %v3238 = vpop.f32.mrb[0].mxu0
        %3239 = vmatprep.mubr.f32.mxu0 0.0
        %3240 = vmatmul.mubr.f32.gmra.mrb[0].mxu0 %v3028
        %v3241 = vpop.f32.mrb[0].mxu0
        %v3242 = vadd.f32 %v3058, %v3241
        %v3243 = vpop.f32.mrb[0].mxu0
        %3244 = vmatprep.mubr.f32.mxu0 0.0
        %3245 = vmatmul.mubr.f32.gmra.mrb[0].mxu0 %v3029
        %v3246 = vpop.f32.mrb[0].mxu0
        %v3247 = vadd.f32 %v3058, %v3246
        %v3248 = vpop.f32.mrb[0].mxu0
        %3249 = vmatprep.mubr.f32.mxu0 0.0
        %3250 = vmatmul.mubr.f32.gmra.mrb[0].mxu0 %v3030
        %v3251 = vpop.f32.mrb[0].mxu0
        %v3252 = vadd.f32 %v3058, %v3251
        %v3253 = vpop.f32.mrb[0].mxu0
        %3254 = vmatprep.mubr.f32.mxu0 0.0
        %3255 = vmatmul.mubr.f32.gmra.mrb[0].mxu0 %v3031
        %v3256 = vpop.f32.mrb[0].mxu0
        %v3257 = vadd.f32 %v3058, %v3256
        %v3258 = vpop.f32.mrb[0].mxu0
        %3259 = vmatprep.mubr.f32.mxu0 0.0
        %3260 = vmatmul.mubr.f32.gmra.mrb[0].mxu0 %v3032
        %v3261 = vpop.f32.mrb[0].mxu0
        %v3262 = vadd.f32 %v3058, %v3261
        %v3263 = vpop.f32.mrb[0].mxu0
        %3264 = vmatprep.mubr.f32.mxu0 0.0
        %3265 = vmatmul.mubr.f32.gmra.mrb[0].mxu0 %v3033
        %v3266 = vpop.f32.mrb[0].mxu0
        %v3267 = vadd.f32 %v3058, %v3266
        %v3268 = vpop.f32.mrb[0].mxu0
        %3269 = vmatprep.mubr.f32.mxu0 0.0
        %3270 = vmatmul.mubr.f32.gmra.mrb[0].mxu0 %v3034
        %v3271 = vpop.f32.mrb[0].mxu0
        %v3272 = vadd.f32 %v3058, %v3271
        %v3273 = vpop.f32.mrb[0].mxu0
        %3274 = vmatprep.mubr.f32.mxu0 0.0
        %3275 = vmatmul.mubr.f32.gmra.mrb[0].mxu0 %v3035
        %v3276 = vpop.f32.mrb[0].mxu0
        %v3277 = vadd.f32 %v3058, %v3276
        %v3278 = vpop.f32.mrb[0].mxu0
        %3279 = vmatprep.mubr.f32.mxu0 0.0
        %3280 = vmatmul.mubr.f32.gmra.mrb[0].mxu0 %v3036
        %v3281 = vpop.f32.mrb[0].mxu0
        %v3282 = vadd.f32 %v3058, %v3281
        %v3283 = vpop.f32.mrb[0].mxu0
        %3284 = vdwg.mxu0
        %v3285 = vld [vmem:[%s7] sm:$0xff]
        %v3286 = vld [vmem:[%s7 + $0x8] sm:$0xff]
        %3287 = vmatprep.subr.mxu0 0.0
        %3288 = vmatpush1.msra.mxu0 %v3285
        %3289 = vmatprep.subr.mxu0 0.0
        %3290 = vmatpush1.msra.mxu0 %v3286
        %3291 = vmatprep.subr.mxu0 0.0
        %3292 = vmatpush1.msra.mxu0 0.0
        %3293 = vmatprep.subr.mxu0 0.0
        %3294 = vmatpush1.msra.mxu0 0.0
        %3295 = vmatprep.subr.mxu0 0.0
        %3296 = vmatpush1.msra.mxu0 0.0
        %3297 = vmatprep.subr.mxu0 0.0
        %3298 = vmatpush1.msra.mxu0 0.0
        %3299 = vmatprep.subr.mxu0 0.0
        %3300 = vmatpush1.msra.mxu0 0.0
        %3301 = vmatprep.subr.mxu0 0.0
        %3302 = vmatpush1.msra.mxu0 0.0
        %3303 = vmatprep.subr.mxu0 0.0
        %3304 = vmatpush1.msra.mxu0 0.0
        %3305 = vmatprep.subr.mxu0 0.0
        %3306 = vmatpush1.msra.mxu0 0.0
        %3307 = vmatprep.subr.mxu0 0.0
        %3308 = vmatpush1.msra.mxu0 0.0
        %3309 = vmatprep.subr.mxu0 0.0
        %3310 = vmatpush1.msra.mxu0 0.0
        %3311 = vmatprep.subr.mxu0 0.0
        %3312 = vmatpush1.msra.mxu0 0.0
        %3313 = vmatprep.subr.mxu0 0.0
        %3314 = vmatpush1.msra.mxu0 0.0
        %3315 = vmatprep.subr.mxu0 0.0
        %3316 = vmatpush1.msra.mxu0 0.0
        %3317 = vmatprep.subr.mxu0 0.0
        %3318 = vmatpush1.msra.mxu0 0.0
        %3319 = vmatprep.subr.mxu0 0.0
        %3320 = vmatpush1.msra.mxu0 0.0
        %3321 = vmatprep.subr.mxu0 0.0
        %3322 = vmatpush1.msra.mxu0 0.0
        %3323 = vmatprep.subr.mxu0 0.0
        %3324 = vmatpush1.msra.mxu0 0.0
        %3325 = vmatprep.subr.mxu0 0.0
        %3326 = vmatpush1.msra.mxu0 0.0
        %3327 = vmatprep.subr.mxu0 0.0
        %3328 = vmatpush1.msra.mxu0 0.0
        %3329 = vmatprep.subr.mxu0 0.0
        %3330 = vmatpush1.msra.mxu0 0.0
        %3331 = vmatprep.subr.mxu0 0.0
        %3332 = vmatpush1.msra.mxu0 0.0
        %3333 = vmatprep.subr.mxu0 0.0
        %3334 = vmatpush1.msra.mxu0 0.0
        %3335 = vmatprep.subr.mxu0 0.0
        %3336 = vmatpush1.msra.mxu0 0.0
        %3337 = vmatprep.subr.mxu0 0.0
        %3338 = vmatpush1.msra.mxu0 0.0
        %3339 = vmatprep.subr.mxu0 0.0
        %3340 = vmatpush1.msra.mxu0 0.0
        %3341 = vmatprep.subr.mxu0 0.0
        %3342 = vmatpush1.msra.mxu0 0.0
        %3343 = vmatprep.subr.mxu0 0.0
        %3344 = vmatpush1.msra.mxu0 0.0
        %3345 = vmatprep.subr.mxu0 0.0
        %3346 = vmatpush1.msra.mxu0 0.0
        %3347 = vmatprep.subr.mxu0 0.0
        %3348 = vmatpush1.msra.mxu0 0.0
        %3349 = vmatprep.subr.mxu0 0.0
        %3350 = vmatpush1.msra.mxu0 0.0
        %3351 = vmatprep.mubr.f32.mxu0 0.0
        %3352 = vmatmul.mubr.f32.gmra.mrb[0].mxu0 %v479
        %v3353 = vpop.f32.mrb[0].mxu0
        %v3354 = vadd.f32 0.0, %v3353
        %v3355 = vpop.f32.mrb[0].mxu0
        %3356 = vmatprep.mubr.f32.mxu0 0.0
        %3357 = vmatmul.mubr.f32.gmra.mrb[0].mxu0 %v482
        %v3358 = vpop.f32.mrb[0].mxu0
        %v3359 = vadd.f32 0.0, %v3358
        %v3360 = vpop.f32.mrb[0].mxu0
        %3361 = vmatprep.mubr.f32.mxu0 0.0
        %3362 = vmatmul.mubr.f32.gmra.mrb[0].mxu0 %v485
        %v3363 = vpop.f32.mrb[0].mxu0
        %v3364 = vadd.f32 0.0, %v3363
        %v3365 = vpop.f32.mrb[0].mxu0
        %3366 = vmatprep.mubr.f32.mxu0 0.0
        %3367 = vmatmul.mubr.f32.gmra.mrb[0].mxu0 %v488
        %v3368 = vpop.f32.mrb[0].mxu0
        %v3369 = vadd.f32 0.0, %v3368
        %v3370 = vpop.f32.mrb[0].mxu0
        %3371 = vmatprep.mubr.f32.mxu0 0.0
        %3372 = vmatmul.mubr.f32.gmra.mrb[0].mxu0 %v491
        %v3373 = vpop.f32.mrb[0].mxu0
        %v3374 = vadd.f32 0.0, %v3373
        %v3375 = vpop.f32.mrb[0].mxu0
        %3376 = vmatprep.mubr.f32.mxu0 0.0
        %3377 = vmatmul.mubr.f32.gmra.mrb[0].mxu0 %v494
        %v3378 = vpop.f32.mrb[0].mxu0
        %v3379 = vadd.f32 0.0, %v3378
        %v3380 = vpop.f32.mrb[0].mxu0
        %3381 = vmatprep.mubr.f32.mxu0 0.0
        %3382 = vmatmul.mubr.f32.gmra.mrb[0].mxu0 %v497
        %v3383 = vpop.f32.mrb[0].mxu0
        %v3384 = vadd.f32 0.0, %v3383
        %v3385 = vpop.f32.mrb[0].mxu0
        %3386 = vmatprep.mubr.f32.mxu0 0.0
        %3387 = vmatmul.mubr.f32.gmra.mrb[0].mxu0 %v500
        %v3388 = vpop.f32.mrb[0].mxu0
        %v3389 = vadd.f32 0.0, %v3388
        %v3390 = vpop.f32.mrb[0].mxu0
        %3391 = vmatprep.mubr.f32.mxu0 0.0
        %3392 = vmatmul.mubr.f32.gmra.mrb[0].mxu0 %v503
        %v3393 = vpop.f32.mrb[0].mxu0
        %v3394 = vadd.f32 0.0, %v3393
        %v3395 = vpop.f32.mrb[0].mxu0
        %3396 = vmatprep.mubr.f32.mxu0 0.0
        %3397 = vmatmul.mubr.f32.gmra.mrb[0].mxu0 %v506
        %v3398 = vpop.f32.mrb[0].mxu0
        %v3399 = vadd.f32 0.0, %v3398
        %v3400 = vpop.f32.mrb[0].mxu0
        %3401 = vmatprep.mubr.f32.mxu0 0.0
        %3402 = vmatmul.mubr.f32.gmra.mrb[0].mxu0 %v509
        %v3403 = vpop.f32.mrb[0].mxu0
        %v3404 = vadd.f32 0.0, %v3403
        %v3405 = vpop.f32.mrb[0].mxu0
        %3406 = vmatprep.mubr.f32.mxu0 0.0
        %3407 = vmatmul.mubr.f32.gmra.mrb[0].mxu0 %v512
        %v3408 = vpop.f32.mrb[0].mxu0
        %v3409 = vadd.f32 0.0, %v3408
        %v3410 = vpop.f32.mrb[0].mxu0
        %3411 = vmatprep.mubr.f32.mxu0 0.0
        %3412 = vmatmul.mubr.f32.gmra.mrb[0].mxu0 %v515
        %v3413 = vpop.f32.mrb[0].mxu0
        %v3414 = vadd.f32 0.0, %v3413
        %v3415 = vpop.f32.mrb[0].mxu0
        %3416 = vmatprep.mubr.f32.mxu0 0.0
        %3417 = vmatmul.mubr.f32.gmra.mrb[0].mxu0 %v518
        %v3418 = vpop.f32.mrb[0].mxu0
        %v3419 = vadd.f32 0.0, %v3418
        %v3420 = vpop.f32.mrb[0].mxu0
        %3421 = vmatprep.mubr.f32.mxu0 0.0
        %3422 = vmatmul.mubr.f32.gmra.mrb[0].mxu0 %v521
        %v3423 = vpop.f32.mrb[0].mxu0
        %v3424 = vadd.f32 0.0, %v3423
        %v3425 = vpop.f32.mrb[0].mxu0
        %3426 = vmatprep.mubr.f32.mxu0 0.0
        %3427 = vmatmul.mubr.f32.gmra.mrb[0].mxu0 %v524
        %v3428 = vpop.f32.mrb[0].mxu0
        %v3429 = vadd.f32 0.0, %v3428
        %v3430 = vpop.f32.mrb[0].mxu0
        %3431 = vmatprep.mubr.f32.mxu0 0.0
        %3432 = vmatmul.mubr.f32.gmra.mrb[0].mxu0 %v527
        %v3433 = vpop.f32.mrb[0].mxu0
        %v3434 = vadd.f32 0.0, %v3433
        %v3435 = vpop.f32.mrb[0].mxu0
        %3436 = vmatprep.mubr.f32.mxu0 0.0
        %3437 = vmatmul.mubr.f32.gmra.mrb[0].mxu0 %v530
        %v3438 = vpop.f32.mrb[0].mxu0
        %v3439 = vadd.f32 0.0, %v3438
        %v3440 = vpop.f32.mrb[0].mxu0
        %3441 = vmatprep.mubr.f32.mxu0 0.0
        %3442 = vmatmul.mubr.f32.gmra.mrb[0].mxu0 %v533
        %v3443 = vpop.f32.mrb[0].mxu0
        %v3444 = vadd.f32 0.0, %v3443
        %v3445 = vpop.f32.mrb[0].mxu0
        %3446 = vmatprep.mubr.f32.mxu0 0.0
        %3447 = vmatmul.mubr.f32.gmra.mrb[0].mxu0 %v536
        %v3448 = vpop.f32.mrb[0].mxu0
        %v3449 = vadd.f32 0.0, %v3448
        %v3450 = vpop.f32.mrb[0].mxu0
        %3451 = vmatprep.mubr.f32.mxu0 0.0
        %3452 = vmatmul.mubr.f32.gmra.mrb[0].mxu0 %v539
        %v3453 = vpop.f32.mrb[0].mxu0
        %v3454 = vadd.f32 0.0, %v3453
        %v3455 = vpop.f32.mrb[0].mxu0
        %3456 = vmatprep.mubr.f32.mxu0 0.0
        %3457 = vmatmul.mubr.f32.gmra.mrb[0].mxu0 %v542
        %v3458 = vpop.f32.mrb[0].mxu0
        %v3459 = vadd.f32 0.0, %v3458
        %v3460 = vpop.f32.mrb[0].mxu0
        %3461 = vmatprep.mubr.f32.mxu0 0.0
        %3462 = vmatmul.mubr.f32.gmra.mrb[0].mxu0 %v545
        %v3463 = vpop.f32.mrb[0].mxu0
        %v3464 = vadd.f32 0.0, %v3463
        %v3465 = vpop.f32.mrb[0].mxu0
        %3466 = vmatprep.mubr.f32.mxu0 0.0
        %3467 = vmatmul.mubr.f32.gmra.mrb[0].mxu0 %v548
        %v3468 = vpop.f32.mrb[0].mxu0
        %v3469 = vadd.f32 0.0, %v3468
        %v3470 = vpop.f32.mrb[0].mxu0
        %3471 = vmatprep.mubr.f32.mxu0 0.0
        %3472 = vmatmul.mubr.f32.gmra.mrb[0].mxu0 %v551
        %v3473 = vpop.f32.mrb[0].mxu0
        %v3474 = vadd.f32 0.0, %v3473
        %v3475 = vpop.f32.mrb[0].mxu0
        %3476 = vmatprep.mubr.f32.mxu0 0.0
        %3477 = vmatmul.mubr.f32.gmra.mrb[0].mxu0 %v554
        %v3478 = vpop.f32.mrb[0].mxu0
        %v3479 = vadd.f32 0.0, %v3478
        %v3480 = vpop.f32.mrb[0].mxu0
        %3481 = vmatprep.mubr.f32.mxu0 0.0
        %3482 = vmatmul.mubr.f32.gmra.mrb[0].mxu0 %v557
        %v3483 = vpop.f32.mrb[0].mxu0
        %v3484 = vadd.f32 0.0, %v3483
        %v3485 = vpop.f32.mrb[0].mxu0
        %3486 = vmatprep.mubr.f32.mxu0 0.0
        %3487 = vmatmul.mubr.f32.gmra.mrb[0].mxu0 %v560
        %v3488 = vpop.f32.mrb[0].mxu0
        %v3489 = vadd.f32 0.0, %v3488
        %v3490 = vpop.f32.mrb[0].mxu0
        %3491 = vmatprep.mubr.f32.mxu0 0.0
        %3492 = vmatmul.mubr.f32.gmra.mrb[0].mxu0 %v563
        %v3493 = vpop.f32.mrb[0].mxu0
        %v3494 = vadd.f32 0.0, %v3493
        %v3495 = vpop.f32.mrb[0].mxu0
        %3496 = vmatprep.mubr.f32.mxu0 0.0
        %3497 = vmatmul.mubr.f32.gmra.mrb[0].mxu0 %v566
        %v3498 = vpop.f32.mrb[0].mxu0
        %v3499 = vadd.f32 0.0, %v3498
        %v3500 = vpop.f32.mrb[0].mxu0
        %3501 = vmatprep.mubr.f32.mxu0 0.0
        %3502 = vmatmul.mubr.f32.gmra.mrb[0].mxu0 %v569
        %v3503 = vpop.f32.mrb[0].mxu0
        %v3504 = vadd.f32 0.0, %v3503
        %v3505 = vpop.f32.mrb[0].mxu0
        %3506 = vmatprep.mubr.f32.mxu0 0.0
        %3507 = vmatmul.mubr.f32.gmra.mrb[0].mxu0 %v572
        %v3508 = vpop.f32.mrb[0].mxu0
        %v3509 = vadd.f32 0.0, %v3508
        %v3510 = vpop.f32.mrb[0].mxu0
        %3511 = vdwg.mxu0
        %v3512 = vadd.f32 %v3127, %v3354
        %v3513 = vadd.f32 %v3132, %v3359
        %v3514 = vadd.f32 %v3137, %v3364
        %v3515 = vadd.f32 %v3142, %v3369
        %v3516 = vadd.f32 %v3147, %v3374
        %v3517 = vadd.f32 %v3152, %v3379
        %v3518 = vadd.f32 %v3157, %v3384
        %v3519 = vadd.f32 %v3162, %v3389
        %v3520 = vadd.f32 %v3167, %v3394
        %v3521 = vadd.f32 %v3172, %v3399
        %v3522 = vadd.f32 %v3177, %v3404
        %v3523 = vadd.f32 %v3182, %v3409
        %v3524 = vadd.f32 %v3187, %v3414
        %v3525 = vadd.f32 %v3192, %v3419
        %v3526 = vadd.f32 %v3197, %v3424
        %v3527 = vadd.f32 %v3202, %v3429
        %v3528 = vadd.f32 %v3207, %v3434
        %v3529 = vadd.f32 %v3212, %v3439
        %v3530 = vadd.f32 %v3217, %v3444
        %v3531 = vadd.f32 %v3222, %v3449
        %v3532 = vadd.f32 %v3227, %v3454
        %v3533 = vadd.f32 %v3232, %v3459
        %v3534 = vadd.f32 %v3237, %v3464
        %v3535 = vadd.f32 %v3242, %v3469
        %v3536 = vadd.f32 %v3247, %v3474
        %v3537 = vadd.f32 %v3252, %v3479
        %v3538 = vadd.f32 %v3257, %v3484
        %v3539 = vadd.f32 %v3262, %v3489
        %v3540 = vadd.f32 %v3267, %v3494
        %v3541 = vadd.f32 %v3272, %v3499
        %v3542 = vadd.f32 %v3277, %v3504
        %v3543 = vadd.f32 %v3282, %v3509
        %v3544 = vld [vmem:[%s8] sm:$0x1]
        %v3546 = vlaneseq
        %v3547 = vshrl.u32 %v3546, 7
        %v3548 = vsub.s32 0, %v3547
        %v3549 = vrot.slane %v3544, %v3548
        %v3551 = vadd.f32 %v3512, %v3549
        %v3552 = vadd.f32 %v3513, %v3549
        %v3553 = vadd.f32 %v3514, %v3549
        %v3554 = vadd.f32 %v3515, %v3549
        %v3555 = vadd.f32 %v3516, %v3549
        %v3556 = vadd.f32 %v3517, %v3549
        %v3557 = vadd.f32 %v3518, %v3549
        %v3558 = vadd.f32 %v3519, %v3549
        %v3559 = vadd.f32 %v3520, %v3549
        %v3560 = vadd.f32 %v3521, %v3549
        %v3561 = vadd.f32 %v3522, %v3549
        %v3562 = vadd.f32 %v3523, %v3549
        %v3563 = vadd.f32 %v3524, %v3549
        %v3564 = vadd.f32 %v3525, %v3549
        %v3565 = vadd.f32 %v3526, %v3549
        %v3566 = vadd.f32 %v3527, %v3549
        %v3567 = vadd.f32 %v3528, %v3549
        %v3568 = vadd.f32 %v3529, %v3549
        %v3569 = vadd.f32 %v3530, %v3549
        %v3570 = vadd.f32 %v3531, %v3549
        %v3571 = vadd.f32 %v3532, %v3549
        %v3572 = vadd.f32 %v3533, %v3549
        %v3573 = vadd.f32 %v3534, %v3549
        %v3574 = vadd.f32 %v3535, %v3549
        %v3575 = vadd.f32 %v3536, %v3549
        %v3576 = vadd.f32 %v3537, %v3549
        %v3577 = vadd.f32 %v3538, %v3549
        %v3578 = vadd.f32 %v3539, %v3549
        %v3579 = vadd.f32 %v3540, %v3549
        %v3580 = vadd.f32 %v3541, %v3549
        %v3581 = vadd.f32 %v3542, %v3549
        %v3582 = vadd.f32 %v3543, %v3549
        %3583 = vst [vmem:[%s340] sm:$0xff] %v3551
        %3584 = vst [vmem:[%s340 + $0x8] sm:$0xff] %v3552
        %3585 = vst [vmem:[%s340 + $0x10] sm:$0xff] %v3553
        %3586 = vst [vmem:[%s340 + $0x18] sm:$0xff] %v3554
        %3587 = vst [vmem:[%s340 + $0x20] sm:$0xff] %v3555
        %3588 = vst [vmem:[%s340 + $0x28] sm:$0xff] %v3556
        %3589 = vst [vmem:[%s340 + $0x30] sm:$0xff] %v3557
        %3590 = vst [vmem:[%s340 + $0x38] sm:$0xff] %v3558
        %3591 = vst [vmem:[%s340 + $0x40] sm:$0xff] %v3559
        %3592 = vst [vmem:[%s340 + $0x48] sm:$0xff] %v3560
        %3593 = vst [vmem:[%s340 + $0x50] sm:$0xff] %v3561
        %3594 = vst [vmem:[%s340 + $0x58] sm:$0xff] %v3562
        %3595 = vst [vmem:[%s340 + $0x60] sm:$0xff] %v3563
        %3596 = vst [vmem:[%s340 + $0x68] sm:$0xff] %v3564
        %3597 = vst [vmem:[%s340 + $0x70] sm:$0xff] %v3565
        %3598 = vst [vmem:[%s340 + $0x78] sm:$0xff] %v3566
        %3599 = vst [vmem:[%s340 + $0x80] sm:$0xff] %v3567
        %3600 = vst [vmem:[%s340 + $0x88] sm:$0xff] %v3568
        %3601 = vst [vmem:[%s340 + $0x90] sm:$0xff] %v3569
        %3602 = vst [vmem:[%s340 + $0x98] sm:$0xff] %v3570
        %3603 = vst [vmem:[%s340 + $0xa0] sm:$0xff] %v3571
        %3604 = vst [vmem:[%s340 + $0xa8] sm:$0xff] %v3572
        %3605 = vst [vmem:[%s340 + $0xb0] sm:$0xff] %v3573
        %3606 = vst [vmem:[%s340 + $0xb8] sm:$0xff] %v3574
        %3607 = vst [vmem:[%s340 + $0xc0] sm:$0xff] %v3575
        %3608 = vst [vmem:[%s340 + $0xc8] sm:$0xff] %v3576
        %3609 = vst [vmem:[%s340 + $0xd0] sm:$0xff] %v3577
        %3610 = vst [vmem:[%s340 + $0xd8] sm:$0xff] %v3578
        %3611 = vst [vmem:[%s340 + $0xe0] sm:$0xff] %v3579
        %3612 = vst [vmem:[%s340 + $0xe8] sm:$0xff] %v3580
        %3613 = vst [vmem:[%s340 + $0xf0] sm:$0xff] %v3581
        %3614 = vst [vmem:[%s340 + $0xf8] sm:$0xff] %v3582
        %s3615 = sand.u32 %s226, 1
        %s3616 = scalar_lea.sflag [#allocation6], %s3615
        %s3617 = sand.u32 %s226, 1
        %s3618 = smul.addr %s3617, 256
        %s3619 = scalar_lea.vmem [#allocation7], %s3618
        // Predicated region
        $region65: #{tpu_custom_call.1} parent=55 // pred_check
          %p3620 = pneg %p236
        $region66: #{tpu_custom_call.1} parent=55 // pred_check_branch
          %3622 = sbr.rel (%p3620) target = $region68
        $region67: #{tpu_custom_call.1} parent=55 // pred_region
          %s3624 = ssub.s32 4096, 4096
          %3625 = vsyncadd %s3616, %s3624
          %s3626 = smul.addr %s24, 32
          %s3627 = smul.addr %s3626, 128
          %s3628 = scalar_lea.hbm %s9, %s3627
          %s3629 = sshll.u32 %s3619, 4
          %s3630 = int_to_ptr.vmem [resolvable:$true] %s3629
          %3635 = dma.vmem_to_hbm [thread:$0]  %s3630, 4096, %s3628, %s3616, 128, 128, 8
        $region68: #{tpu_custom_call.1} parent=55 // pred_fallthru
          _
      $region56: #{tpu_custom_call.1} parent=5 // pred_fallthru
        _
      %p3636 = scmp.le.s32.totalorder 2, %s19
      // Predicated region
      $region69: #{tpu_custom_call.1} parent=5 // pred_check
        %p3637 = pneg %p3636
      $region70: #{tpu_custom_call.1} parent=5 // pred_check_branch
        %3639 = sbr.rel (%p3637) target = $region72
      $region71: #{tpu_custom_call.1} parent=5 // pred_region
        %s3640 = ssub.s32 %s19, 2
        // Predicated region
        $region73: #{tpu_custom_call.1} parent=71 // pred_check
          %p3641 = pneg %p242
        $region74: #{tpu_custom_call.1} parent=71 // pred_check_branch
          %3643 = sbr.rel (%p3641) target = $region76
        $region75: #{tpu_custom_call.1} parent=71 // pred_region
          %s3644 = sand.u32 %s227, 1
          %s3645 = scalar_lea.sflag [#allocation6], %s3644
          %s3646 = sand.u32 %s227, 1
          %s3647 = smul.addr %s3646, 256
          %s3648 = scalar_lea.vmem [#allocation7], %s3647
          %3649 = dma.done %s3645, 4096
        $region76: #{tpu_custom_call.1} parent=71 // pred_fallthru
          _
      $region72: #{tpu_custom_call.1} parent=5 // pred_fallthru
        _
    $region6: #{tpu_custom_call.1} parent=1 // loop_footer
      %s23 = sadd.s32 1, %s19
    $region7: #{tpu_custom_call.1} parent=1 // loop_footer_branch
      %18 = sbr.rel target = $region3
    $region8: #{tpu_custom_call.1} parent=1 // loop_exit
      _
    %3650 = vsyncpa [#allocation5], 1
    %s3651 = scalar_lea.sflag [#allocation5], 1
    %3652 = vsyncpa %s3651, 1
    %3653 = vsyncpa [#allocation6], 1
    %s3654 = scalar_lea.sflag [#allocation6], 1
    %3655 = vsyncpa %s3654, 1

</llo_original>
